<compile_context>
chip_gen: v7x
topology: tpu7x:2x2x1
jax: 0.10.0
libtpu: 0.0.40
codegen_flags: <defaults>
</compile_context>

<pallas_src>
import functools

import jax
import jax.numpy as jnp
from jax.experimental import pallas as pl
from jax.experimental.pallas import tpu as pltpu

_LANE = 128


# ----------------------------------------------------------------------------
# Fused Pallas kernel: embedding + LSTM1 + LSTM2 (interleaved) + MLP head
# ----------------------------------------------------------------------------
def _fused_lstm_kernel(
    ids_ref,      # (T*B, 1) int32  time-major flattened token ids (row = t*B + b)
    e1_ref,       # (V, 4*Hp1) f32  fused emb@W_ih1 + b1, gate order [i|f|o|g], gate-padded
    w_hh1_ref,    # (Hp1, 4*Hp1)    hidden->gates layer 1 (rows+gate cols padded to 128)
    w_ih2_ref,    # (Hp1, 4*H2)     input->gates layer 2 (rows padded to 128)
    w_hh2_ref,    # (H2, 4*H2)
    b2_ref,       # (1, 4*H2)       combined bias (b_ih + b_hh), gate order [i|f|o|g]
    fc1_w_ref,    # (H2, Fp)
    fc1_b_ref,    # (1, Fp)
    fc2_w_ref,    # (Fp, Cp)
    fc2_b_ref,    # (1, Cp)
    out_ref,      # (B, Cp)         lane-dense padded logits
):
    f32 = jnp.float32
    TB = ids_ref.shape[0]
    B = out_ref.shape[0]
    T = TB // B
    V = e1_ref.shape[0]
    Hp1 = w_hh1_ref.shape[0]
    H2 = w_hh2_ref.shape[0]

    # ---- Embedding + layer-1 input projection + bias, all as ONE tiny matmul ----
    ids = ids_ref[...]                                                    # (T*B, 1)
    onehot = (jax.lax.broadcasted_iota(jnp.int32, (TB, V), 1) == ids).astype(f32)
    gx1 = jnp.dot(onehot, e1_ref[...], preferred_element_type=f32)        # (T*B, 4*Hp1)

    w_hh1 = w_hh1_ref[...]
    w_ih2 = w_ih2_ref[...]
    w_hh2 = w_hh2_ref[...]
    b2 = b2_ref[...]

    def lstm_step(gates, c, hsize):
        """Gate order [i|f|o|g]; all slices are 128-lane aligned."""
        sig = jax.nn.sigmoid(gates[:, :3 * hsize])        # [i | f | o]   (one EUP pass)
        g_g = jnp.tanh(gates[:, 3 * hsize:])              # [g]           (hsize lanes only)
        i_g = sig[:, :hsize]
        f_g = sig[:, hsize:2 * hsize]
        o_g = sig[:, 2 * hsize:3 * hsize]
        c_new = f_g * c + i_g * g_g
        h_new = o_g * jnp.tanh(c_new)
        return h_new, c_new

    def l2_step(h1_in, h2, c2):
        g2 = (jnp.dot(h1_in, w_ih2, preferred_element_type=f32)
              + jnp.dot(h2, w_hh2, preferred_element_type=f32) + b2)
        return lstm_step(g2, c2, H2)

    h1 = jnp.zeros((B, Hp1), f32)
    c1 = jnp.zeros((B, Hp1), f32)
    h2 = jnp.zeros((B, H2), f32)
    c2 = jnp.zeros((B, H2), f32)

    # ---- Interleaved recurrence: layer-1 step t || layer-2 step t-1 ----
    for t in range(T):  # static T -> fully unrolled, scheduler sees both chains
        g1 = gx1[t * B:(t + 1) * B, :] + jnp.dot(h1, w_hh1, preferred_element_type=f32)
        new_h1, c1 = lstm_step(g1, c1, Hp1)
        if t >= 1:
            # consumes h1_{t-1}; independent of layer-1 step t above -> co-issues
            h2, c2 = l2_step(h1, h2, c2)
        h1 = new_h1
    # final layer-2 step consumes h1_{T-1}; only h2[T-1] is needed downstream
    h2, c2 = l2_step(h1, h2, c2)
    # dropout1 / dropout2 / dropout3: identity (inference)

    # ---- MLP head (lane-dense padded widths) ----
    hid = jnp.maximum(
        jnp.dot(h2, fc1_w_ref[...], preferred_element_type=f32) + fc1_b_ref[...], 0.0)
    out_ref[...] = (jnp.dot(hid, fc2_w_ref[...], preferred_element_type=f32)
                    + fc2_b_ref[...])


# ----------------------------------------------------------------------------
# Weight preparation (one-time, outside the kernel)
# ----------------------------------------------------------------------------
_VMEM = pl.BlockSpec(memory_space=pltpu.MemorySpace.VMEM)


def _reorder_gates(w, h):
    """PyTorch gate column order [i|f|g|o] -> [i|f|o|g] (blocks of width h)."""
    i, f, g, o = (w[..., k * h:(k + 1) * h] for k in range(4))
    return jnp.concatenate([i, f, o, g], axis=-1)


def _pad_gate_cols(w, h, hp):
    """Pad each of the 4 gate blocks from width h to hp with zero columns."""
    if h == hp:
        return w
    pad = [(0, 0)] * (w.ndim - 1) + [(0, hp - h)]
    return jnp.concatenate(
        [jnp.pad(w[..., k * h:(k + 1) * h], pad) for k in range(4)], axis=-1)


def _pad_rows(w, rp):
    return jnp.pad(w, ((0, rp - w.shape[0]), (0, 0))) if rp > w.shape[0] else w


def prepare_params(params):
    """Fold embedding into W_ih1, reorder gates to [i|f|o|g], pad to lane widths."""
    H1 = params["w_hh1"].shape[0]                     # 64
    H2 = params["w_hh2"].shape[0]                     # 128
    Hp1 = ((H1 + _LANE - 1) // _LANE) * _LANE         # 128
    F = params["fc1_w_t"].shape[1]                    # 50
    C = params["fc2_w_t"].shape[1]                    # num_classes
    Fp = ((F + _LANE - 1) // _LANE) * _LANE           # 128
    Cp = ((C + _LANE - 1) // _LANE) * _LANE           # 128

    # Layer 1: frozen embedding + bias folded into a single (V, 4*Hp1) table.
    w_ih1 = _pad_gate_cols(_reorder_gates(params["w_ih1"], H1), H1, Hp1)
    b1 = _pad_gate_cols(_reorder_gates(params["b1"].reshape(1, -1), H1), H1, Hp1)
    e1 = params["embedding"] @ w_ih1 + b1             # (V, 4*Hp1)
    w_hh1 = _pad_rows(
        _pad_gate_cols(_reorder_gates(params["w_hh1"], H1), H1, Hp1), Hp1)

    # Layer 2: gate reorder; input rows padded (padded h1 lanes are always 0).
    w_ih2 = _pad_rows(_reorder_gates(params["w_ih2"], H2), Hp1)
    w_hh2 = _reorder_gates(params["w_hh2"], H2)
    b2 = _reorder_gates(params["b2"].reshape(1, -1), H2)

    # MLP head: lane-dense padded widths.
    fc1_w = jnp.pad(params["fc1_w_t"], ((0, 0), (0, Fp - F)))
    fc1_b = jnp.pad(params["fc1_b"].reshape(1, -1), ((0, 0), (0, Fp - F)))
    fc2_w = jnp.pad(params["fc2_w_t"], ((0, Fp - F), (0, Cp - C)))
    fc2_b = jnp.pad(params["fc2_b"].reshape(1, -1), ((0, 0), (0, Cp - C)))

    return {
        "e1": e1, "w_hh1": w_hh1,
        "w_ih2": w_ih2, "w_hh2": w_hh2, "b2": b2,
        "fc1_w": fc1_w, "fc1_b": fc1_b, "fc2_w": fc2_w, "fc2_b": fc2_b,
    }


@functools.partial(jax.jit, static_argnames=("num_classes",))
def lstm_model_forward(token_ids, prepped, num_classes=3):
    """token_ids: (B, T) int32 -> logits (B, num_classes)."""
    B, T = token_ids.shape
    Cp = prepped["fc2_w"].shape[1]
    # batch-first -> time-major flattened ids (row t*B + b); tiny int transpose in XLA.
    ids_tm = jnp.transpose(token_ids).reshape(T * B, 1).astype(jnp.int32)
    out_padded = pl.pallas_call(
        _fused_lstm_kernel,
        out_shape=jax.ShapeDtypeStruct((B, Cp), jnp.float32),
        in_specs=[_VMEM] * 10,
        out_specs=_VMEM,
    )(
        ids_tm, prepped["e1"], prepped["w_hh1"],
        prepped["w_ih2"], prepped["w_hh2"], prepped["b2"],
        prepped["fc1_w"], prepped["fc1_b"], prepped["fc2_w"], prepped["fc2_b"],
    )
    return out_padded[:, :num_classes]


# ----------------------------------------------------------------------------
# Pure-JAX reference (sanity check; PyTorch gate order i,f,g,o)
# ----------------------------------------------------------------------------
def _lstm_ref(x_tm, w_ih_t, w_hh_t, bias):
    H = w_hh_t.shape[0]

    def step(carry, x_t):
        h, c = carry
        gates = x_t @ w_ih_t + h @ w_hh_t + bias
        i_g = jax.nn.sigmoid(gates[:, 0 * H:1 * H])
        f_g = jax.nn.sigmoid(gates[:, 1 * H:2 * H])
        g_g = jnp.tanh(gates[:, 2 * H:3 * H])
        o_g = jax.nn.sigmoid(gates[:, 3 * H:4 * H])
        c = f_g * c + i_g * g_g
        h = o_g * jnp.tanh(c)
        return (h, c), h

    B = x_tm.shape[1]
    init = (jnp.zeros((B, H), jnp.float32), jnp.zeros((B, H), jnp.float32))
    _, hs = jax.lax.scan(step, init, x_tm)
    return hs


def _ref_forward(token_ids, params):
    emb = params["embedding"][token_ids]
    x_tm = jnp.transpose(emb, (1, 0, 2))
    h1 = _lstm_ref(x_tm, params["w_ih1"], params["w_hh1"], params["b1"])
    h2 = _lstm_ref(h1, params["w_ih2"], params["w_hh2"], params["b2"])
    last = h2[-1]
    h = jnp.maximum(last @ params["fc1_w_t"] + params["fc1_b"], 0.0)
    return h @ params["fc2_w_t"] + params["fc2_b"]


# ----------------------------------------------------------------------------
# Deterministic parameter construction (matches module __init__ shapes)
# ----------------------------------------------------------------------------
def make_params(key, vocab_size=32, embed_dim=100, hidden_size=64, num_classes=3):
    ks = jax.random.split(key, 10)
    H1, H2 = hidden_size, hidden_size * 2

    def u(k, shape, scale):
        return jax.random.uniform(k, shape, jnp.float32, -scale, scale)

    s1 = 1.0 / jnp.sqrt(H1)
    s2 = 1.0 / jnp.sqrt(H2)
    return {
        # nn.Embedding.from_pretrained(embedding_matrix)  (frozen)
        "embedding": jax.random.normal(ks[0], (vocab_size, embed_dim), jnp.float32),
        # lstm1: input 100 -> hidden 64 (weights stored pre-transposed: (in, 4H))
        "w_ih1": u(ks[1], (embed_dim, 4 * H1), s1),
        "w_hh1": u(ks[2], (H1, 4 * H1), s1),
        "b1": u(ks[3], (4 * H1,), s1),          # b_ih + b_hh combined (sum real ckpt biases)
        # lstm2: input 64 -> hidden 128
        "w_ih2": u(ks[4], (H1, 4 * H2), s2),
        "w_hh2": u(ks[5], (H2, 4 * H2), s2),
        "b2": u(ks[6], (4 * H2,), s2),
        # fc1: 128 -> 50 ; fc2: 50 -> num_classes  (stored transposed: (in, out))
        "fc1_w_t": u(ks[7], (H2, 50), 1.0 / jnp.sqrt(H2)),
        "fc1_b": jnp.zeros((50,), jnp.float32),
        "fc2_w_t": u(ks[8], (50, num_classes), 1.0 / jnp.sqrt(50.0)),
        "fc2_b": jnp.zeros((num_classes,), jnp.float32),
    }


if __name__ == "__main__":
    key = jax.random.PRNGKey(0)
    k_param, k_tok = jax.random.split(key)

    B, T, VOCAB, C = 2, 8, 32, 3
    params = make_params(k_param, vocab_size=VOCAB, num_classes=C)
    token_ids = jax.random.randint(k_tok, (B, T), 0, VOCAB, dtype=jnp.int32)

    prepped = prepare_params(params)
    logits = lstm_model_forward(token_ids, prepped, num_classes=C)
    jax.block_until_ready(logits)

    ref = _ref_forward(token_ids, params)
    assert logits.shape == (B, C)
    assert jnp.allclose(logits, ref, atol=1e-4, rtol=1e-4), "Pallas/ref mismatch"

    print("KERNEL_OK")
</pallas_src>

<mosaic_0001>
module attributes {stable_mosaic.version = 11 : i64} {
  func.func @_fused_lstm_kernel(%arg0: memref<16x1xi32, #tpu.memory_space<vmem>>, %arg1: memref<32x512xf32, #tpu.memory_space<vmem>>, %arg2: memref<128x512xf32, #tpu.memory_space<vmem>>, %arg3: memref<128x512xf32, #tpu.memory_space<vmem>>, %arg4: memref<128x512xf32, #tpu.memory_space<vmem>>, %arg5: memref<1x512xf32, #tpu.memory_space<vmem>>, %arg6: memref<128x128xf32, #tpu.memory_space<vmem>>, %arg7: memref<1x128xf32, #tpu.memory_space<vmem>>, %arg8: memref<128x128xf32, #tpu.memory_space<vmem>>, %arg9: memref<1x128xf32, #tpu.memory_space<vmem>>, %arg10: memref<2x128xf32, #tpu.memory_space<vmem>>) attributes {dimension_semantics = [], scalar_prefetch = 0 : i64, scratch_operands = 0 : i64, tpu.core_type = #tpu.core_type<tc>} {
    %c0 = arith.constant 0 : index
    %c0_0 = arith.constant 0 : index
    %0 = vector.load %arg0[%c0, %c0_0] : memref<16x1xi32, #tpu.memory_space<vmem>>, vector<16x1xi32>
    %1 = tpu.iota {dimensions = array<i32: 1>} : vector<16x32xi32>
    %2 = vector.broadcast %0 : vector<16x1xi32> to vector<16x32xi32>
    %3 = arith.cmpi eq, %1, %2 : vector<16x32xi32>
    %4 = arith.extui %3 : vector<16x32xi1> to vector<16x32xi32>
    %5 = arith.sitofp %4 : vector<16x32xi32> to vector<16x32xf32>
    %c0_1 = arith.constant 0 : index
    %c0_2 = arith.constant 0 : index
    %6 = vector.load %arg1[%c0_1, %c0_2] : memref<32x512xf32, #tpu.memory_space<vmem>>, vector<32x512xf32>
    %cst = arith.constant dense<0.000000e+00> : vector<16x512xf32>
    %7 = tpu.matmul %5, %6, %cst {dimension_numbers = #tpu.dot_dimension_numbers<[1], [0], [0], [1], [0, 0, 1, 1], [], []>} : vector<16x32xf32>, vector<32x512xf32>, vector<16x512xf32> -> vector<16x512xf32>
    %c0_3 = arith.constant 0 : index
    %c0_4 = arith.constant 0 : index
    %8 = vector.load %arg2[%c0_3, %c0_4] : memref<128x512xf32, #tpu.memory_space<vmem>>, vector<128x512xf32>
    %c0_5 = arith.constant 0 : index
    %c0_6 = arith.constant 0 : index
    %9 = vector.load %arg3[%c0_5, %c0_6] : memref<128x512xf32, #tpu.memory_space<vmem>>, vector<128x512xf32>
    %c0_7 = arith.constant 0 : index
    %c0_8 = arith.constant 0 : index
    %10 = vector.load %arg4[%c0_7, %c0_8] : memref<128x512xf32, #tpu.memory_space<vmem>>, vector<128x512xf32>
    %c0_9 = arith.constant 0 : index
    %c0_10 = arith.constant 0 : index
    %11 = vector.load %arg5[%c0_9, %c0_10] : memref<1x512xf32, #tpu.memory_space<vmem>>, vector<1x512xf32>
    %cst_11 = arith.constant 0.000000e+00 : f32
    %12 = vector.broadcast %cst_11 : f32 to vector<2x128xf32>
    %cst_12 = arith.constant 0.000000e+00 : f32
    %13 = vector.broadcast %cst_12 : f32 to vector<2x128xf32>
    %cst_13 = arith.constant 0.000000e+00 : f32
    %14 = vector.broadcast %cst_13 : f32 to vector<2x128xf32>
    %cst_14 = arith.constant 0.000000e+00 : f32
    %15 = vector.broadcast %cst_14 : f32 to vector<2x128xf32>
    %16 = vector.extract_strided_slice %7 {offsets = [0, 0], sizes = [2, 512], strides = [1, 1]} : vector<16x512xf32> to vector<2x512xf32>
    %cst_15 = arith.constant dense<0.000000e+00> : vector<2x512xf32>
    %17 = tpu.matmul %12, %8, %cst_15 {dimension_numbers = #tpu.dot_dimension_numbers<[1], [0], [0], [1], [0, 0, 1, 1], [], []>} : vector<2x128xf32>, vector<128x512xf32>, vector<2x512xf32> -> vector<2x512xf32>
    %18 = arith.addf %16, %17 : vector<2x512xf32>
    %19 = vector.extract_strided_slice %18 {offsets = [0, 0], sizes = [2, 384], strides = [1, 1]} : vector<2x512xf32> to vector<2x384xf32>
    %20 = arith.negf %19 : vector<2x384xf32>
    %21 = math.exp %20 : vector<2x384xf32>
    %cst_16 = arith.constant 1.000000e+00 : f32
    %22 = vector.broadcast %cst_16 : f32 to vector<2x384xf32>
    %23 = arith.addf %22, %21 : vector<2x384xf32>
    %24 = arith.divf %22, %23 : vector<2x384xf32>
    %25 = vector.extract_strided_slice %18 {offsets = [0, 384], sizes = [2, 128], strides = [1, 1]} : vector<2x512xf32> to vector<2x128xf32>
    %26 = math.tanh %25 : vector<2x128xf32>
    %27 = vector.extract_strided_slice %24 {offsets = [0, 0], sizes = [2, 128], strides = [1, 1]} : vector<2x384xf32> to vector<2x128xf32>
    %28 = vector.extract_strided_slice %24 {offsets = [0, 128], sizes = [2, 128], strides = [1, 1]} : vector<2x384xf32> to vector<2x128xf32>
    %29 = vector.extract_strided_slice %24 {offsets = [0, 256], sizes = [2, 128], strides = [1, 1]} : vector<2x384xf32> to vector<2x128xf32>
    %30 = arith.mulf %28, %13 : vector<2x128xf32>
    %31 = arith.mulf %27, %26 : vector<2x128xf32>
    %32 = arith.addf %30, %31 : vector<2x128xf32>
    %33 = math.tanh %32 : vector<2x128xf32>
    %34 = arith.mulf %29, %33 : vector<2x128xf32>
    %35 = vector.extract_strided_slice %7 {offsets = [2, 0], sizes = [2, 512], strides = [1, 1]} : vector<16x512xf32> to vector<2x512xf32>
    %cst_17 = arith.constant dense<0.000000e+00> : vector<2x512xf32>
    %36 = tpu.matmul %34, %8, %cst_17 {dimension_numbers = #tpu.dot_dimension_numbers<[1], [0], [0], [1], [0, 0, 1, 1], [], []>} : vector<2x128xf32>, vector<128x512xf32>, vector<2x512xf32> -> vector<2x512xf32>
    %37 = arith.addf %35, %36 : vector<2x512xf32>
    %38 = vector.extract_strided_slice %37 {offsets = [0, 0], sizes = [2, 384], strides = [1, 1]} : vector<2x512xf32> to vector<2x384xf32>
    %39 = arith.negf %38 : vector<2x384xf32>
    %40 = math.exp %39 : vector<2x384xf32>
    %cst_18 = arith.constant 1.000000e+00 : f32
    %41 = vector.broadcast %cst_18 : f32 to vector<2x384xf32>
    %42 = arith.addf %41, %40 : vector<2x384xf32>
    %43 = arith.divf %41, %42 : vector<2x384xf32>
    %44 = vector.extract_strided_slice %37 {offsets = [0, 384], sizes = [2, 128], strides = [1, 1]} : vector<2x512xf32> to vector<2x128xf32>
    %45 = math.tanh %44 : vector<2x128xf32>
    %46 = vector.extract_strided_slice %43 {offsets = [0, 0], sizes = [2, 128], strides = [1, 1]} : vector<2x384xf32> to vector<2x128xf32>
    %47 = vector.extract_strided_slice %43 {offsets = [0, 128], sizes = [2, 128], strides = [1, 1]} : vector<2x384xf32> to vector<2x128xf32>
    %48 = vector.extract_strided_slice %43 {offsets = [0, 256], sizes = [2, 128], strides = [1, 1]} : vector<2x384xf32> to vector<2x128xf32>
    %49 = arith.mulf %47, %32 : vector<2x128xf32>
    %50 = arith.mulf %46, %45 : vector<2x128xf32>
    %51 = arith.addf %49, %50 : vector<2x128xf32>
    %52 = math.tanh %51 : vector<2x128xf32>
    %53 = arith.mulf %48, %52 : vector<2x128xf32>
    %cst_19 = arith.constant dense<0.000000e+00> : vector<2x512xf32>
    %54 = tpu.matmul %34, %9, %cst_19 {dimension_numbers = #tpu.dot_dimension_numbers<[1], [0], [0], [1], [0, 0, 1, 1], [], []>} : vector<2x128xf32>, vector<128x512xf32>, vector<2x512xf32> -> vector<2x512xf32>
    %cst_20 = arith.constant dense<0.000000e+00> : vector<2x512xf32>
    %55 = tpu.matmul %14, %10, %cst_20 {dimension_numbers = #tpu.dot_dimension_numbers<[1], [0], [0], [1], [0, 0, 1, 1], [], []>} : vector<2x128xf32>, vector<128x512xf32>, vector<2x512xf32> -> vector<2x512xf32>
    %56 = arith.addf %54, %55 : vector<2x512xf32>
    %57 = vector.broadcast %11 : vector<1x512xf32> to vector<2x512xf32>
    %58 = arith.addf %56, %57 : vector<2x512xf32>
    %59 = vector.extract_strided_slice %58 {offsets = [0, 0], sizes = [2, 384], strides = [1, 1]} : vector<2x512xf32> to vector<2x384xf32>
    %60 = arith.negf %59 : vector<2x384xf32>
    %61 = math.exp %60 : vector<2x384xf32>
    %cst_21 = arith.constant 1.000000e+00 : f32
    %62 = vector.broadcast %cst_21 : f32 to vector<2x384xf32>
    %63 = arith.addf %62, %61 : vector<2x384xf32>
    %64 = arith.divf %62, %63 : vector<2x384xf32>
    %65 = vector.extract_strided_slice %58 {offsets = [0, 384], sizes = [2, 128], strides = [1, 1]} : vector<2x512xf32> to vector<2x128xf32>
    %66 = math.tanh %65 : vector<2x128xf32>
    %67 = vector.extract_strided_slice %64 {offsets = [0, 0], sizes = [2, 128], strides = [1, 1]} : vector<2x384xf32> to vector<2x128xf32>
    %68 = vector.extract_strided_slice %64 {offsets = [0, 128], sizes = [2, 128], strides = [1, 1]} : vector<2x384xf32> to vector<2x128xf32>
    %69 = vector.extract_strided_slice %64 {offsets = [0, 256], sizes = [2, 128], strides = [1, 1]} : vector<2x384xf32> to vector<2x128xf32>
    %70 = arith.mulf %68, %15 : vector<2x128xf32>
    %71 = arith.mulf %67, %66 : vector<2x128xf32>
    %72 = arith.addf %70, %71 : vector<2x128xf32>
    %73 = math.tanh %72 : vector<2x128xf32>
    %74 = arith.mulf %69, %73 : vector<2x128xf32>
    %75 = vector.extract_strided_slice %7 {offsets = [4, 0], sizes = [2, 512], strides = [1, 1]} : vector<16x512xf32> to vector<2x512xf32>
    %cst_22 = arith.constant dense<0.000000e+00> : vector<2x512xf32>
    %76 = tpu.matmul %53, %8, %cst_22 {dimension_numbers = #tpu.dot_dimension_numbers<[1], [0], [0], [1], [0, 0, 1, 1], [], []>} : vector<2x128xf32>, vector<128x512xf32>, vector<2x512xf32> -> vector<2x512xf32>
    %77 = arith.addf %75, %76 : vector<2x512xf32>
    %78 = vector.extract_strided_slice %77 {offsets = [0, 0], sizes = [2, 384], strides = [1, 1]} : vector<2x512xf32> to vector<2x384xf32>
    %79 = arith.negf %78 : vector<2x384xf32>
    %80 = math.exp %79 : vector<2x384xf32>
    %cst_23 = arith.constant 1.000000e+00 : f32
    %81 = vector.broadcast %cst_23 : f32 to vector<2x384xf32>
    %82 = arith.addf %81, %80 : vector<2x384xf32>
    %83 = arith.divf %81, %82 : vector<2x384xf32>
    %84 = vector.extract_strided_slice %77 {offsets = [0, 384], sizes = [2, 128], strides = [1, 1]} : vector<2x512xf32> to vector<2x128xf32>
    %85 = math.tanh %84 : vector<2x128xf32>
    %86 = vector.extract_strided_slice %83 {offsets = [0, 0], sizes = [2, 128], strides = [1, 1]} : vector<2x384xf32> to vector<2x128xf32>
    %87 = vector.extract_strided_slice %83 {offsets = [0, 128], sizes = [2, 128], strides = [1, 1]} : vector<2x384xf32> to vector<2x128xf32>
    %88 = vector.extract_strided_slice %83 {offsets = [0, 256], sizes = [2, 128], strides = [1, 1]} : vector<2x384xf32> to vector<2x128xf32>
    %89 = arith.mulf %87, %51 : vector<2x128xf32>
    %90 = arith.mulf %86, %85 : vector<2x128xf32>
    %91 = arith.addf %89, %90 : vector<2x128xf32>
    %92 = math.tanh %91 : vector<2x128xf32>
    %93 = arith.mulf %88, %92 : vector<2x128xf32>
    %cst_24 = arith.constant dense<0.000000e+00> : vector<2x512xf32>
    %94 = tpu.matmul %53, %9, %cst_24 {dimension_numbers = #tpu.dot_dimension_numbers<[1], [0], [0], [1], [0, 0, 1, 1], [], []>} : vector<2x128xf32>, vector<128x512xf32>, vector<2x512xf32> -> vector<2x512xf32>
    %cst_25 = arith.constant dense<0.000000e+00> : vector<2x512xf32>
    %95 = tpu.matmul %74, %10, %cst_25 {dimension_numbers = #tpu.dot_dimension_numbers<[1], [0], [0], [1], [0, 0, 1, 1], [], []>} : vector<2x128xf32>, vector<128x512xf32>, vector<2x512xf32> -> vector<2x512xf32>
    %96 = arith.addf %94, %95 : vector<2x512xf32>
    %97 = vector.broadcast %11 : vector<1x512xf32> to vector<2x512xf32>
    %98 = arith.addf %96, %97 : vector<2x512xf32>
    %99 = vector.extract_strided_slice %98 {offsets = [0, 0], sizes = [2, 384], strides = [1, 1]} : vector<2x512xf32> to vector<2x384xf32>
    %100 = arith.negf %99 : vector<2x384xf32>
    %101 = math.exp %100 : vector<2x384xf32>
    %cst_26 = arith.constant 1.000000e+00 : f32
    %102 = vector.broadcast %cst_26 : f32 to vector<2x384xf32>
    %103 = arith.addf %102, %101 : vector<2x384xf32>
    %104 = arith.divf %102, %103 : vector<2x384xf32>
    %105 = vector.extract_strided_slice %98 {offsets = [0, 384], sizes = [2, 128], strides = [1, 1]} : vector<2x512xf32> to vector<2x128xf32>
    %106 = math.tanh %105 : vector<2x128xf32>
    %107 = vector.extract_strided_slice %104 {offsets = [0, 0], sizes = [2, 128], strides = [1, 1]} : vector<2x384xf32> to vector<2x128xf32>
    %108 = vector.extract_strided_slice %104 {offsets = [0, 128], sizes = [2, 128], strides = [1, 1]} : vector<2x384xf32> to vector<2x128xf32>
    %109 = vector.extract_strided_slice %104 {offsets = [0, 256], sizes = [2, 128], strides = [1, 1]} : vector<2x384xf32> to vector<2x128xf32>
    %110 = arith.mulf %108, %72 : vector<2x128xf32>
    %111 = arith.mulf %107, %106 : vector<2x128xf32>
    %112 = arith.addf %110, %111 : vector<2x128xf32>
    %113 = math.tanh %112 : vector<2x128xf32>
    %114 = arith.mulf %109, %113 : vector<2x128xf32>
    %115 = vector.extract_strided_slice %7 {offsets = [6, 0], sizes = [2, 512], strides = [1, 1]} : vector<16x512xf32> to vector<2x512xf32>
    %cst_27 = arith.constant dense<0.000000e+00> : vector<2x512xf32>
    %116 = tpu.matmul %93, %8, %cst_27 {dimension_numbers = #tpu.dot_dimension_numbers<[1], [0], [0], [1], [0, 0, 1, 1], [], []>} : vector<2x128xf32>, vector<128x512xf32>, vector<2x512xf32> -> vector<2x512xf32>
    %117 = arith.addf %115, %116 : vector<2x512xf32>
    %118 = vector.extract_strided_slice %117 {offsets = [0, 0], sizes = [2, 384], strides = [1, 1]} : vector<2x512xf32> to vector<2x384xf32>
    %119 = arith.negf %118 : vector<2x384xf32>
    %120 = math.exp %119 : vector<2x384xf32>
    %cst_28 = arith.constant 1.000000e+00 : f32
    %121 = vector.broadcast %cst_28 : f32 to vector<2x384xf32>
    %122 = arith.addf %121, %120 : vector<2x384xf32>
    %123 = arith.divf %121, %122 : vector<2x384xf32>
    %124 = vector.extract_strided_slice %117 {offsets = [0, 384], sizes = [2, 128], strides = [1, 1]} : vector<2x512xf32> to vector<2x128xf32>
    %125 = math.tanh %124 : vector<2x128xf32>
    %126 = vector.extract_strided_slice %123 {offsets = [0, 0], sizes = [2, 128], strides = [1, 1]} : vector<2x384xf32> to vector<2x128xf32>
    %127 = vector.extract_strided_slice %123 {offsets = [0, 128], sizes = [2, 128], strides = [1, 1]} : vector<2x384xf32> to vector<2x128xf32>
    %128 = vector.extract_strided_slice %123 {offsets = [0, 256], sizes = [2, 128], strides = [1, 1]} : vector<2x384xf32> to vector<2x128xf32>
    %129 = arith.mulf %127, %91 : vector<2x128xf32>
    %130 = arith.mulf %126, %125 : vector<2x128xf32>
    %131 = arith.addf %129, %130 : vector<2x128xf32>
    %132 = math.tanh %131 : vector<2x128xf32>
    %133 = arith.mulf %128, %132 : vector<2x128xf32>
    %cst_29 = arith.constant dense<0.000000e+00> : vector<2x512xf32>
    %134 = tpu.matmul %93, %9, %cst_29 {dimension_numbers = #tpu.dot_dimension_numbers<[1], [0], [0], [1], [0, 0, 1, 1], [], []>} : vector<2x128xf32>, vector<128x512xf32>, vector<2x512xf32> -> vector<2x512xf32>
    %cst_30 = arith.constant dense<0.000000e+00> : vector<2x512xf32>
    %135 = tpu.matmul %114, %10, %cst_30 {dimension_numbers = #tpu.dot_dimension_numbers<[1], [0], [0], [1], [0, 0, 1, 1], [], []>} : vector<2x128xf32>, vector<128x512xf32>, vector<2x512xf32> -> vector<2x512xf32>
    %136 = arith.addf %134, %135 : vector<2x512xf32>
    %137 = vector.broadcast %11 : vector<1x512xf32> to vector<2x512xf32>
    %138 = arith.addf %136, %137 : vector<2x512xf32>
    %139 = vector.extract_strided_slice %138 {offsets = [0, 0], sizes = [2, 384], strides = [1, 1]} : vector<2x512xf32> to vector<2x384xf32>
    %140 = arith.negf %139 : vector<2x384xf32>
    %141 = math.exp %140 : vector<2x384xf32>
    %cst_31 = arith.constant 1.000000e+00 : f32
    %142 = vector.broadcast %cst_31 : f32 to vector<2x384xf32>
    %143 = arith.addf %142, %141 : vector<2x384xf32>
    %144 = arith.divf %142, %143 : vector<2x384xf32>
    %145 = vector.extract_strided_slice %138 {offsets = [0, 384], sizes = [2, 128], strides = [1, 1]} : vector<2x512xf32> to vector<2x128xf32>
    %146 = math.tanh %145 : vector<2x128xf32>
    %147 = vector.extract_strided_slice %144 {offsets = [0, 0], sizes = [2, 128], strides = [1, 1]} : vector<2x384xf32> to vector<2x128xf32>
    %148 = vector.extract_strided_slice %144 {offsets = [0, 128], sizes = [2, 128], strides = [1, 1]} : vector<2x384xf32> to vector<2x128xf32>
    %149 = vector.extract_strided_slice %144 {offsets = [0, 256], sizes = [2, 128], strides = [1, 1]} : vector<2x384xf32> to vector<2x128xf32>
    %150 = arith.mulf %148, %112 : vector<2x128xf32>
    %151 = arith.mulf %147, %146 : vector<2x128xf32>
    %152 = arith.addf %150, %151 : vector<2x128xf32>
    %153 = math.tanh %152 : vector<2x128xf32>
    %154 = arith.mulf %149, %153 : vector<2x128xf32>
    %155 = vector.extract_strided_slice %7 {offsets = [8, 0], sizes = [2, 512], strides = [1, 1]} : vector<16x512xf32> to vector<2x512xf32>
    %cst_32 = arith.constant dense<0.000000e+00> : vector<2x512xf32>
    %156 = tpu.matmul %133, %8, %cst_32 {dimension_numbers = #tpu.dot_dimension_numbers<[1], [0], [0], [1], [0, 0, 1, 1], [], []>} : vector<2x128xf32>, vector<128x512xf32>, vector<2x512xf32> -> vector<2x512xf32>
    %157 = arith.addf %155, %156 : vector<2x512xf32>
    %158 = vector.extract_strided_slice %157 {offsets = [0, 0], sizes = [2, 384], strides = [1, 1]} : vector<2x512xf32> to vector<2x384xf32>
    %159 = arith.negf %158 : vector<2x384xf32>
    %160 = math.exp %159 : vector<2x384xf32>
    %cst_33 = arith.constant 1.000000e+00 : f32
    %161 = vector.broadcast %cst_33 : f32 to vector<2x384xf32>
    %162 = arith.addf %161, %160 : vector<2x384xf32>
    %163 = arith.divf %161, %162 : vector<2x384xf32>
    %164 = vector.extract_strided_slice %157 {offsets = [0, 384], sizes = [2, 128], strides = [1, 1]} : vector<2x512xf32> to vector<2x128xf32>
    %165 = math.tanh %164 : vector<2x128xf32>
    %166 = vector.extract_strided_slice %163 {offsets = [0, 0], sizes = [2, 128], strides = [1, 1]} : vector<2x384xf32> to vector<2x128xf32>
    %167 = vector.extract_strided_slice %163 {offsets = [0, 128], sizes = [2, 128], strides = [1, 1]} : vector<2x384xf32> to vector<2x128xf32>
    %168 = vector.extract_strided_slice %163 {offsets = [0, 256], sizes = [2, 128], strides = [1, 1]} : vector<2x384xf32> to vector<2x128xf32>
    %169 = arith.mulf %167, %131 : vector<2x128xf32>
    %170 = arith.mulf %166, %165 : vector<2x128xf32>
    %171 = arith.addf %169, %170 : vector<2x128xf32>
    %172 = math.tanh %171 : vector<2x128xf32>
    %173 = arith.mulf %168, %172 : vector<2x128xf32>
    %cst_34 = arith.constant dense<0.000000e+00> : vector<2x512xf32>
    %174 = tpu.matmul %133, %9, %cst_34 {dimension_numbers = #tpu.dot_dimension_numbers<[1], [0], [0], [1], [0, 0, 1, 1], [], []>} : vector<2x128xf32>, vector<128x512xf32>, vector<2x512xf32> -> vector<2x512xf32>
    %cst_35 = arith.constant dense<0.000000e+00> : vector<2x512xf32>
    %175 = tpu.matmul %154, %10, %cst_35 {dimension_numbers = #tpu.dot_dimension_numbers<[1], [0], [0], [1], [0, 0, 1, 1], [], []>} : vector<2x128xf32>, vector<128x512xf32>, vector<2x512xf32> -> vector<2x512xf32>
    %176 = arith.addf %174, %175 : vector<2x512xf32>
    %177 = vector.broadcast %11 : vector<1x512xf32> to vector<2x512xf32>
    %178 = arith.addf %176, %177 : vector<2x512xf32>
    %179 = vector.extract_strided_slice %178 {offsets = [0, 0], sizes = [2, 384], strides = [1, 1]} : vector<2x512xf32> to vector<2x384xf32>
    %180 = arith.negf %179 : vector<2x384xf32>
    %181 = math.exp %180 : vector<2x384xf32>
    %cst_36 = arith.constant 1.000000e+00 : f32
    %182 = vector.broadcast %cst_36 : f32 to vector<2x384xf32>
    %183 = arith.addf %182, %181 : vector<2x384xf32>
    %184 = arith.divf %182, %183 : vector<2x384xf32>
    %185 = vector.extract_strided_slice %178 {offsets = [0, 384], sizes = [2, 128], strides = [1, 1]} : vector<2x512xf32> to vector<2x128xf32>
    %186 = math.tanh %185 : vector<2x128xf32>
    %187 = vector.extract_strided_slice %184 {offsets = [0, 0], sizes = [2, 128], strides = [1, 1]} : vector<2x384xf32> to vector<2x128xf32>
    %188 = vector.extract_strided_slice %184 {offsets = [0, 128], sizes = [2, 128], strides = [1, 1]} : vector<2x384xf32> to vector<2x128xf32>
    %189 = vector.extract_strided_slice %184 {offsets = [0, 256], sizes = [2, 128], strides = [1, 1]} : vector<2x384xf32> to vector<2x128xf32>
    %190 = arith.mulf %188, %152 : vector<2x128xf32>
    %191 = arith.mulf %187, %186 : vector<2x128xf32>
    %192 = arith.addf %190, %191 : vector<2x128xf32>
    %193 = math.tanh %192 : vector<2x128xf32>
    %194 = arith.mulf %189, %193 : vector<2x128xf32>
    %195 = vector.extract_strided_slice %7 {offsets = [10, 0], sizes = [2, 512], strides = [1, 1]} : vector<16x512xf32> to vector<2x512xf32>
    %cst_37 = arith.constant dense<0.000000e+00> : vector<2x512xf32>
    %196 = tpu.matmul %173, %8, %cst_37 {dimension_numbers = #tpu.dot_dimension_numbers<[1], [0], [0], [1], [0, 0, 1, 1], [], []>} : vector<2x128xf32>, vector<128x512xf32>, vector<2x512xf32> -> vector<2x512xf32>
    %197 = arith.addf %195, %196 : vector<2x512xf32>
    %198 = vector.extract_strided_slice %197 {offsets = [0, 0], sizes = [2, 384], strides = [1, 1]} : vector<2x512xf32> to vector<2x384xf32>
    %199 = arith.negf %198 : vector<2x384xf32>
    %200 = math.exp %199 : vector<2x384xf32>
    %cst_38 = arith.constant 1.000000e+00 : f32
    %201 = vector.broadcast %cst_38 : f32 to vector<2x384xf32>
    %202 = arith.addf %201, %200 : vector<2x384xf32>
    %203 = arith.divf %201, %202 : vector<2x384xf32>
    %204 = vector.extract_strided_slice %197 {offsets = [0, 384], sizes = [2, 128], strides = [1, 1]} : vector<2x512xf32> to vector<2x128xf32>
    %205 = math.tanh %204 : vector<2x128xf32>
    %206 = vector.extract_strided_slice %203 {offsets = [0, 0], sizes = [2, 128], strides = [1, 1]} : vector<2x384xf32> to vector<2x128xf32>
    %207 = vector.extract_strided_slice %203 {offsets = [0, 128], sizes = [2, 128], strides = [1, 1]} : vector<2x384xf32> to vector<2x128xf32>
    %208 = vector.extract_strided_slice %203 {offsets = [0, 256], sizes = [2, 128], strides = [1, 1]} : vector<2x384xf32> to vector<2x128xf32>
    %209 = arith.mulf %207, %171 : vector<2x128xf32>
    %210 = arith.mulf %206, %205 : vector<2x128xf32>
    %211 = arith.addf %209, %210 : vector<2x128xf32>
    %212 = math.tanh %211 : vector<2x128xf32>
    %213 = arith.mulf %208, %212 : vector<2x128xf32>
    %cst_39 = arith.constant dense<0.000000e+00> : vector<2x512xf32>
    %214 = tpu.matmul %173, %9, %cst_39 {dimension_numbers = #tpu.dot_dimension_numbers<[1], [0], [0], [1], [0, 0, 1, 1], [], []>} : vector<2x128xf32>, vector<128x512xf32>, vector<2x512xf32> -> vector<2x512xf32>
    %cst_40 = arith.constant dense<0.000000e+00> : vector<2x512xf32>
    %215 = tpu.matmul %194, %10, %cst_40 {dimension_numbers = #tpu.dot_dimension_numbers<[1], [0], [0], [1], [0, 0, 1, 1], [], []>} : vector<2x128xf32>, vector<128x512xf32>, vector<2x512xf32> -> vector<2x512xf32>
    %216 = arith.addf %214, %215 : vector<2x512xf32>
    %217 = vector.broadcast %11 : vector<1x512xf32> to vector<2x512xf32>
    %218 = arith.addf %216, %217 : vector<2x512xf32>
    %219 = vector.extract_strided_slice %218 {offsets = [0, 0], sizes = [2, 384], strides = [1, 1]} : vector<2x512xf32> to vector<2x384xf32>
    %220 = arith.negf %219 : vector<2x384xf32>
    %221 = math.exp %220 : vector<2x384xf32>
    %cst_41 = arith.constant 1.000000e+00 : f32
    %222 = vector.broadcast %cst_41 : f32 to vector<2x384xf32>
    %223 = arith.addf %222, %221 : vector<2x384xf32>
    %224 = arith.divf %222, %223 : vector<2x384xf32>
    %225 = vector.extract_strided_slice %218 {offsets = [0, 384], sizes = [2, 128], strides = [1, 1]} : vector<2x512xf32> to vector<2x128xf32>
    %226 = math.tanh %225 : vector<2x128xf32>
    %227 = vector.extract_strided_slice %224 {offsets = [0, 0], sizes = [2, 128], strides = [1, 1]} : vector<2x384xf32> to vector<2x128xf32>
    %228 = vector.extract_strided_slice %224 {offsets = [0, 128], sizes = [2, 128], strides = [1, 1]} : vector<2x384xf32> to vector<2x128xf32>
    %229 = vector.extract_strided_slice %224 {offsets = [0, 256], sizes = [2, 128], strides = [1, 1]} : vector<2x384xf32> to vector<2x128xf32>
    %230 = arith.mulf %228, %192 : vector<2x128xf32>
    %231 = arith.mulf %227, %226 : vector<2x128xf32>
    %232 = arith.addf %230, %231 : vector<2x128xf32>
    %233 = math.tanh %232 : vector<2x128xf32>
    %234 = arith.mulf %229, %233 : vector<2x128xf32>
    %235 = vector.extract_strided_slice %7 {offsets = [12, 0], sizes = [2, 512], strides = [1, 1]} : vector<16x512xf32> to vector<2x512xf32>
    %cst_42 = arith.constant dense<0.000000e+00> : vector<2x512xf32>
    %236 = tpu.matmul %213, %8, %cst_42 {dimension_numbers = #tpu.dot_dimension_numbers<[1], [0], [0], [1], [0, 0, 1, 1], [], []>} : vector<2x128xf32>, vector<128x512xf32>, vector<2x512xf32> -> vector<2x512xf32>
    %237 = arith.addf %235, %236 : vector<2x512xf32>
    %238 = vector.extract_strided_slice %237 {offsets = [0, 0], sizes = [2, 384], strides = [1, 1]} : vector<2x512xf32> to vector<2x384xf32>
    %239 = arith.negf %238 : vector<2x384xf32>
    %240 = math.exp %239 : vector<2x384xf32>
    %cst_43 = arith.constant 1.000000e+00 : f32
    %241 = vector.broadcast %cst_43 : f32 to vector<2x384xf32>
    %242 = arith.addf %241, %240 : vector<2x384xf32>
    %243 = arith.divf %241, %242 : vector<2x384xf32>
    %244 = vector.extract_strided_slice %237 {offsets = [0, 384], sizes = [2, 128], strides = [1, 1]} : vector<2x512xf32> to vector<2x128xf32>
    %245 = math.tanh %244 : vector<2x128xf32>
    %246 = vector.extract_strided_slice %243 {offsets = [0, 0], sizes = [2, 128], strides = [1, 1]} : vector<2x384xf32> to vector<2x128xf32>
    %247 = vector.extract_strided_slice %243 {offsets = [0, 128], sizes = [2, 128], strides = [1, 1]} : vector<2x384xf32> to vector<2x128xf32>
    %248 = vector.extract_strided_slice %243 {offsets = [0, 256], sizes = [2, 128], strides = [1, 1]} : vector<2x384xf32> to vector<2x128xf32>
    %249 = arith.mulf %247, %211 : vector<2x128xf32>
    %250 = arith.mulf %246, %245 : vector<2x128xf32>
    %251 = arith.addf %249, %250 : vector<2x128xf32>
    %252 = math.tanh %251 : vector<2x128xf32>
    %253 = arith.mulf %248, %252 : vector<2x128xf32>
    %cst_44 = arith.constant dense<0.000000e+00> : vector<2x512xf32>
    %254 = tpu.matmul %213, %9, %cst_44 {dimension_numbers = #tpu.dot_dimension_numbers<[1], [0], [0], [1], [0, 0, 1, 1], [], []>} : vector<2x128xf32>, vector<128x512xf32>, vector<2x512xf32> -> vector<2x512xf32>
    %cst_45 = arith.constant dense<0.000000e+00> : vector<2x512xf32>
    %255 = tpu.matmul %234, %10, %cst_45 {dimension_numbers = #tpu.dot_dimension_numbers<[1], [0], [0], [1], [0, 0, 1, 1], [], []>} : vector<2x128xf32>, vector<128x512xf32>, vector<2x512xf32> -> vector<2x512xf32>
    %256 = arith.addf %254, %255 : vector<2x512xf32>
    %257 = vector.broadcast %11 : vector<1x512xf32> to vector<2x512xf32>
    %258 = arith.addf %256, %257 : vector<2x512xf32>
    %259 = vector.extract_strided_slice %258 {offsets = [0, 0], sizes = [2, 384], strides = [1, 1]} : vector<2x512xf32> to vector<2x384xf32>
    %260 = arith.negf %259 : vector<2x384xf32>
    %261 = math.exp %260 : vector<2x384xf32>
    %cst_46 = arith.constant 1.000000e+00 : f32
    %262 = vector.broadcast %cst_46 : f32 to vector<2x384xf32>
    %263 = arith.addf %262, %261 : vector<2x384xf32>
    %264 = arith.divf %262, %263 : vector<2x384xf32>
    %265 = vector.extract_strided_slice %258 {offsets = [0, 384], sizes = [2, 128], strides = [1, 1]} : vector<2x512xf32> to vector<2x128xf32>
    %266 = math.tanh %265 : vector<2x128xf32>
    %267 = vector.extract_strided_slice %264 {offsets = [0, 0], sizes = [2, 128], strides = [1, 1]} : vector<2x384xf32> to vector<2x128xf32>
    %268 = vector.extract_strided_slice %264 {offsets = [0, 128], sizes = [2, 128], strides = [1, 1]} : vector<2x384xf32> to vector<2x128xf32>
    %269 = vector.extract_strided_slice %264 {offsets = [0, 256], sizes = [2, 128], strides = [1, 1]} : vector<2x384xf32> to vector<2x128xf32>
    %270 = arith.mulf %268, %232 : vector<2x128xf32>
    %271 = arith.mulf %267, %266 : vector<2x128xf32>
    %272 = arith.addf %270, %271 : vector<2x128xf32>
    %273 = math.tanh %272 : vector<2x128xf32>
    %274 = arith.mulf %269, %273 : vector<2x128xf32>
    %275 = vector.extract_strided_slice %7 {offsets = [14, 0], sizes = [2, 512], strides = [1, 1]} : vector<16x512xf32> to vector<2x512xf32>
    %cst_47 = arith.constant dense<0.000000e+00> : vector<2x512xf32>
    %276 = tpu.matmul %253, %8, %cst_47 {dimension_numbers = #tpu.dot_dimension_numbers<[1], [0], [0], [1], [0, 0, 1, 1], [], []>} : vector<2x128xf32>, vector<128x512xf32>, vector<2x512xf32> -> vector<2x512xf32>
    %277 = arith.addf %275, %276 : vector<2x512xf32>
    %278 = vector.extract_strided_slice %277 {offsets = [0, 0], sizes = [2, 384], strides = [1, 1]} : vector<2x512xf32> to vector<2x384xf32>
    %279 = arith.negf %278 : vector<2x384xf32>
    %280 = math.exp %279 : vector<2x384xf32>
    %cst_48 = arith.constant 1.000000e+00 : f32
    %281 = vector.broadcast %cst_48 : f32 to vector<2x384xf32>
    %282 = arith.addf %281, %280 : vector<2x384xf32>
    %283 = arith.divf %281, %282 : vector<2x384xf32>
    %284 = vector.extract_strided_slice %277 {offsets = [0, 384], sizes = [2, 128], strides = [1, 1]} : vector<2x512xf32> to vector<2x128xf32>
    %285 = math.tanh %284 : vector<2x128xf32>
    %286 = vector.extract_strided_slice %283 {offsets = [0, 0], sizes = [2, 128], strides = [1, 1]} : vector<2x384xf32> to vector<2x128xf32>
    %287 = vector.extract_strided_slice %283 {offsets = [0, 128], sizes = [2, 128], strides = [1, 1]} : vector<2x384xf32> to vector<2x128xf32>
    %288 = vector.extract_strided_slice %283 {offsets = [0, 256], sizes = [2, 128], strides = [1, 1]} : vector<2x384xf32> to vector<2x128xf32>
    %289 = arith.mulf %287, %251 : vector<2x128xf32>
    %290 = arith.mulf %286, %285 : vector<2x128xf32>
    %291 = arith.addf %289, %290 : vector<2x128xf32>
    %292 = math.tanh %291 : vector<2x128xf32>
    %293 = arith.mulf %288, %292 : vector<2x128xf32>
    %cst_49 = arith.constant dense<0.000000e+00> : vector<2x512xf32>
    %294 = tpu.matmul %253, %9, %cst_49 {dimension_numbers = #tpu.dot_dimension_numbers<[1], [0], [0], [1], [0, 0, 1, 1], [], []>} : vector<2x128xf32>, vector<128x512xf32>, vector<2x512xf32> -> vector<2x512xf32>
    %cst_50 = arith.constant dense<0.000000e+00> : vector<2x512xf32>
    %295 = tpu.matmul %274, %10, %cst_50 {dimension_numbers = #tpu.dot_dimension_numbers<[1], [0], [0], [1], [0, 0, 1, 1], [], []>} : vector<2x128xf32>, vector<128x512xf32>, vector<2x512xf32> -> vector<2x512xf32>
    %296 = arith.addf %294, %295 : vector<2x512xf32>
    %297 = vector.broadcast %11 : vector<1x512xf32> to vector<2x512xf32>
    %298 = arith.addf %296, %297 : vector<2x512xf32>
    %299 = vector.extract_strided_slice %298 {offsets = [0, 0], sizes = [2, 384], strides = [1, 1]} : vector<2x512xf32> to vector<2x384xf32>
    %300 = arith.negf %299 : vector<2x384xf32>
    %301 = math.exp %300 : vector<2x384xf32>
    %cst_51 = arith.constant 1.000000e+00 : f32
    %302 = vector.broadcast %cst_51 : f32 to vector<2x384xf32>
    %303 = arith.addf %302, %301 : vector<2x384xf32>
    %304 = arith.divf %302, %303 : vector<2x384xf32>
    %305 = vector.extract_strided_slice %298 {offsets = [0, 384], sizes = [2, 128], strides = [1, 1]} : vector<2x512xf32> to vector<2x128xf32>
    %306 = math.tanh %305 : vector<2x128xf32>
    %307 = vector.extract_strided_slice %304 {offsets = [0, 0], sizes = [2, 128], strides = [1, 1]} : vector<2x384xf32> to vector<2x128xf32>
    %308 = vector.extract_strided_slice %304 {offsets = [0, 128], sizes = [2, 128], strides = [1, 1]} : vector<2x384xf32> to vector<2x128xf32>
    %309 = vector.extract_strided_slice %304 {offsets = [0, 256], sizes = [2, 128], strides = [1, 1]} : vector<2x384xf32> to vector<2x128xf32>
    %310 = arith.mulf %308, %272 : vector<2x128xf32>
    %311 = arith.mulf %307, %306 : vector<2x128xf32>
    %312 = arith.addf %310, %311 : vector<2x128xf32>
    %313 = math.tanh %312 : vector<2x128xf32>
    %314 = arith.mulf %309, %313 : vector<2x128xf32>
    %cst_52 = arith.constant dense<0.000000e+00> : vector<2x512xf32>
    %315 = tpu.matmul %293, %9, %cst_52 {dimension_numbers = #tpu.dot_dimension_numbers<[1], [0], [0], [1], [0, 0, 1, 1], [], []>} : vector<2x128xf32>, vector<128x512xf32>, vector<2x512xf32> -> vector<2x512xf32>
    %cst_53 = arith.constant dense<0.000000e+00> : vector<2x512xf32>
    %316 = tpu.matmul %314, %10, %cst_53 {dimension_numbers = #tpu.dot_dimension_numbers<[1], [0], [0], [1], [0, 0, 1, 1], [], []>} : vector<2x128xf32>, vector<128x512xf32>, vector<2x512xf32> -> vector<2x512xf32>
    %317 = arith.addf %315, %316 : vector<2x512xf32>
    %318 = vector.broadcast %11 : vector<1x512xf32> to vector<2x512xf32>
    %319 = arith.addf %317, %318 : vector<2x512xf32>
    %320 = vector.extract_strided_slice %319 {offsets = [0, 0], sizes = [2, 384], strides = [1, 1]} : vector<2x512xf32> to vector<2x384xf32>
    %321 = arith.negf %320 : vector<2x384xf32>
    %322 = math.exp %321 : vector<2x384xf32>
    %cst_54 = arith.constant 1.000000e+00 : f32
    %323 = vector.broadcast %cst_54 : f32 to vector<2x384xf32>
    %324 = arith.addf %323, %322 : vector<2x384xf32>
    %325 = arith.divf %323, %324 : vector<2x384xf32>
    %326 = vector.extract_strided_slice %319 {offsets = [0, 384], sizes = [2, 128], strides = [1, 1]} : vector<2x512xf32> to vector<2x128xf32>
    %327 = math.tanh %326 : vector<2x128xf32>
    %328 = vector.extract_strided_slice %325 {offsets = [0, 0], sizes = [2, 128], strides = [1, 1]} : vector<2x384xf32> to vector<2x128xf32>
    %329 = vector.extract_strided_slice %325 {offsets = [0, 128], sizes = [2, 128], strides = [1, 1]} : vector<2x384xf32> to vector<2x128xf32>
    %330 = vector.extract_strided_slice %325 {offsets = [0, 256], sizes = [2, 128], strides = [1, 1]} : vector<2x384xf32> to vector<2x128xf32>
    %331 = arith.mulf %329, %312 : vector<2x128xf32>
    %332 = arith.mulf %328, %327 : vector<2x128xf32>
    %333 = arith.addf %331, %332 : vector<2x128xf32>
    %334 = math.tanh %333 : vector<2x128xf32>
    %335 = arith.mulf %330, %334 : vector<2x128xf32>
    %c0_55 = arith.constant 0 : index
    %c0_56 = arith.constant 0 : index
    %336 = vector.load %arg6[%c0_55, %c0_56] : memref<128x128xf32, #tpu.memory_space<vmem>>, vector<128x128xf32>
    %cst_57 = arith.constant dense<0.000000e+00> : vector<2x128xf32>
    %337 = tpu.matmul %335, %336, %cst_57 {dimension_numbers = #tpu.dot_dimension_numbers<[1], [0], [0], [1], [0, 0, 1, 1], [], []>} : vector<2x128xf32>, vector<128x128xf32>, vector<2x128xf32> -> vector<2x128xf32>
    %c0_58 = arith.constant 0 : index
    %c0_59 = arith.constant 0 : index
    %338 = vector.load %arg7[%c0_58, %c0_59] : memref<1x128xf32, #tpu.memory_space<vmem>>, vector<1x128xf32>
    %339 = vector.broadcast %338 : vector<1x128xf32> to vector<2x128xf32>
    %340 = arith.addf %337, %339 : vector<2x128xf32>
    %cst_60 = arith.constant 0.000000e+00 : f32
    %341 = vector.broadcast %cst_60 : f32 to vector<2x128xf32>
    %342 = arith.maximumf %340, %341 : vector<2x128xf32>
    %c0_61 = arith.constant 0 : index
    %c0_62 = arith.constant 0 : index
    %343 = vector.load %arg8[%c0_61, %c0_62] : memref<128x128xf32, #tpu.memory_space<vmem>>, vector<128x128xf32>
    %cst_63 = arith.constant dense<0.000000e+00> : vector<2x128xf32>
    %344 = tpu.matmul %342, %343, %cst_63 {dimension_numbers = #tpu.dot_dimension_numbers<[1], [0], [0], [1], [0, 0, 1, 1], [], []>} : vector<2x128xf32>, vector<128x128xf32>, vector<2x128xf32> -> vector<2x128xf32>
    %c0_64 = arith.constant 0 : index
    %c0_65 = arith.constant 0 : index
    %345 = vector.load %arg9[%c0_64, %c0_65] : memref<1x128xf32, #tpu.memory_space<vmem>>, vector<1x128xf32>
    %346 = vector.broadcast %345 : vector<1x128xf32> to vector<2x128xf32>
    %347 = arith.addf %344, %346 : vector<2x128xf32>
    %c0_66 = arith.constant 0 : index
    %c0_67 = arith.constant 0 : index
    %348 = vector.load %arg10[%c0_66, %c0_67] : memref<2x128xf32, #tpu.memory_space<vmem>>, vector<2x128xf32>
    tpu.vector_store %arg10[%c0_66, %c0_67], %347 {strides = array<i32>} : memref<2x128xf32, #tpu.memory_space<vmem>>, vector<2x128xf32>,
    return
  }
}

</mosaic_0001>

<llo_original>
// kernel: lstm_model_forward.1
$region0: #{lstm_model_forward.1}
  #allocation0 [shape = 'u32[]', space=smem, size = 0x4, offset = 0x4, fixed_abs, tag = 'smem constant byte address 0x4 - core index']
  #allocation1 [shape = 'u32[144,128]{1,0:T(1,128)}', space=vmem, size = 0x12000, scoped, tag = 'internal scratch']
  %s0 = inlined_call_operand.vmem [shape: s32[16,1], index: 0, kind: input, shape index: {}]
  %s1 = inlined_call_operand.hbm [shape: f32[32,512], index: 1, kind: input, shape index: {}]
  %s2 = inlined_call_operand.hbm [shape: f32[128,512], index: 2, kind: input, shape index: {}]
  %s3 = inlined_call_operand.hbm [shape: f32[128,512], index: 3, kind: input, shape index: {}]
  %s4 = inlined_call_operand.hbm [shape: f32[128,512], index: 4, kind: input, shape index: {}]
  %s5 = inlined_call_operand.vmem [shape: f32[1,512], index: 5, kind: input, shape index: {}]
  %s6 = inlined_call_operand.hbm [shape: f32[128,128], index: 6, kind: input, shape index: {}]
  %s7 = inlined_call_operand.vmem [shape: f32[1,128], index: 7, kind: input, shape index: {}]
  %s8 = inlined_call_operand.hbm [shape: f32[128,128], index: 8, kind: input, shape index: {}]
  %s9 = inlined_call_operand.vmem [shape: f32[1,128], index: 9, kind: input, shape index: {}]
  %s10 = inlined_call_operand.hbm [shape: f32[2,128], index: 10, kind: output, shape index: {}]
  %s11 = sld [smem:[#allocation0]]
  $region74: #{lstm_model_forward.1} parent=0
    _
  %s13 = ssub.s32 1, %s11
  %s14 = scalar_select 0, %s13, %s11
  $region1: #{lstm_model_forward.1} parent=0
    #allocation2 [shape = 'u8[65536]{0}', space=vmem, size = 0x10000, scoped, tag = 'input window, operand 1, single buffered']
    #allocation3 [shape = 's32[1]{0}', space=sflag, size = 0x4, scoped, tag = 'scoped memory for lstm_model_forward.1']
    #allocation4 [shape = 's32[1]{0}', space=sflag, size = 0x4, scoped, tag = 'scoped memory for lstm_model_forward.1']
    #allocation5 [shape = 'u8[262144]{0}', space=vmem, size = 0x40000, scoped, tag = 'input window, operand 2, single buffered']
    #allocation6 [shape = 's32[1]{0}', space=sflag, size = 0x4, scoped, tag = 'scoped memory for lstm_model_forward.1']
    #allocation7 [shape = 'u8[262144]{0}', space=vmem, size = 0x40000, scoped, tag = 'input window, operand 3, single buffered']
    #allocation8 [shape = 'u8[262144]{0}', space=vmem, size = 0x40000, scoped, tag = 'input window, operand 4, single buffered']
    #allocation9 [shape = 's32[1]{0}', space=sflag, size = 0x4, scoped, tag = 'scoped memory for lstm_model_forward.1']
    #allocation10 [shape = 'u8[65536]{0}', space=vmem, size = 0x10000, scoped, tag = 'input window, operand 6, single buffered']
    #allocation11 [shape = 'u8[65536]{0}', space=vmem, size = 0x10000, scoped, tag = 'input window, operand 8, single buffered']
    #allocation12 [shape = 's32[1]{0}', space=sflag, size = 0x4, scoped, tag = 'scoped memory for lstm_model_forward.1']
    #allocation13 [shape = 'u8[1024]{0}', space=vmem, size = 0x400, scoped, tag = 'output window, operand 0, single buffered']
    %15 = vsyncpa [#allocation3], 0
    %16 = vsyncpa [#allocation6], 0
    %17 = vsyncpa [#allocation9], 0
    %18 = vsyncpa [#allocation12], 0
    %19 = vsyncpa [#allocation4], 0
    // Predicated region
    $region2: #{lstm_model_forward.1} parent=1 // pred_check
      _
    $region3: #{lstm_model_forward.1} parent=1 // pred_check_branch
      %21 = sbr.rel (0) target = $region5
    $region4: #{lstm_model_forward.1} parent=1 // pred_region
      _
    $region5: #{lstm_model_forward.1} parent=1 // pred_fallthru
      _
    // Predicated region
    $region6: #{lstm_model_forward.1} parent=1 // pred_check
      _
    $region7: #{lstm_model_forward.1} parent=1 // pred_check_branch
      %23 = sbr.rel (0) target = $region9
    $region8: #{lstm_model_forward.1} parent=1 // pred_region
      %s25 = ssub.s32 2048, 2048
      %26 = vsyncadd [#allocation3], %s25
      %s27 = sshll.u32 [#allocation2], 4
      %s28 = int_to_ptr.vmem [resolvable:$true] %s27
      %33 = dma.hbm_to_vmem [thread:$0]  %s1, 2048, %s28, [#allocation3], 512, 512, 32
    $region9: #{lstm_model_forward.1} parent=1 // pred_fallthru
      _
    // Predicated region
    $region10: #{lstm_model_forward.1} parent=1 // pred_check
      _
    $region11: #{lstm_model_forward.1} parent=1 // pred_check_branch
      %35 = sbr.rel (0) target = $region13
    $region12: #{lstm_model_forward.1} parent=1 // pred_region
      %s37 = ssub.s32 8192, 8192
      %38 = vsyncadd [#allocation6], %s37
      %s39 = sshll.u32 [#allocation5], 4
      %s40 = int_to_ptr.vmem [resolvable:$true] %s39
      %45 = dma.hbm_to_vmem [thread:$0]  %s2, 8192, %s40, [#allocation6], 512, 512, 32
    $region13: #{lstm_model_forward.1} parent=1 // pred_fallthru
      _
    // Predicated region
    $region14: #{lstm_model_forward.1} parent=1 // pred_check
      _
    $region15: #{lstm_model_forward.1} parent=1 // pred_check_branch
      %47 = sbr.rel (0) target = $region17
    $region16: #{lstm_model_forward.1} parent=1 // pred_region
      %s49 = ssub.s32 8192, 8192
      %50 = vsyncadd [#allocation6], %s49
      %s51 = sshll.u32 [#allocation7], 4
      %s52 = int_to_ptr.vmem [resolvable:$true] %s51
      %57 = dma.hbm_to_vmem [thread:$0]  %s3, 8192, %s52, [#allocation6], 512, 512, 32
    $region17: #{lstm_model_forward.1} parent=1 // pred_fallthru
      _
    // Predicated region
    $region18: #{lstm_model_forward.1} parent=1 // pred_check
      _
    $region19: #{lstm_model_forward.1} parent=1 // pred_check_branch
      %59 = sbr.rel (0) target = $region21
    $region20: #{lstm_model_forward.1} parent=1 // pred_region
      %s61 = ssub.s32 8192, 8192
      %62 = vsyncadd [#allocation9], %s61
      %s63 = sshll.u32 [#allocation8], 4
      %s64 = int_to_ptr.vmem [resolvable:$true] %s63
      %69 = dma.hbm_to_vmem [thread:$0]  %s4, 8192, %s64, [#allocation9], 512, 512, 32
    $region21: #{lstm_model_forward.1} parent=1 // pred_fallthru
      _
    // Predicated region
    $region22: #{lstm_model_forward.1} parent=1 // pred_check
      _
    $region23: #{lstm_model_forward.1} parent=1 // pred_check_branch
      %71 = sbr.rel (0) target = $region25
    $region24: #{lstm_model_forward.1} parent=1 // pred_region
      _
    $region25: #{lstm_model_forward.1} parent=1 // pred_fallthru
      _
    // Predicated region
    $region26: #{lstm_model_forward.1} parent=1 // pred_check
      _
    $region27: #{lstm_model_forward.1} parent=1 // pred_check_branch
      %73 = sbr.rel (0) target = $region29
    $region28: #{lstm_model_forward.1} parent=1 // pred_region
      %s75 = ssub.s32 2048, 2048
      %76 = vsyncadd [#allocation9], %s75
      %s77 = sshll.u32 [#allocation10], 4
      %s78 = int_to_ptr.vmem [resolvable:$true] %s77
      %83 = dma.hbm_to_vmem [thread:$0]  %s6, 2048, %s78, [#allocation9], 128, 128, 8
    $region29: #{lstm_model_forward.1} parent=1 // pred_fallthru
      _
    // Predicated region
    $region30: #{lstm_model_forward.1} parent=1 // pred_check
      _
    $region31: #{lstm_model_forward.1} parent=1 // pred_check_branch
      %85 = sbr.rel (0) target = $region33
    $region32: #{lstm_model_forward.1} parent=1 // pred_region
      _
    $region33: #{lstm_model_forward.1} parent=1 // pred_fallthru
      _
    // Predicated region
    $region34: #{lstm_model_forward.1} parent=1 // pred_check
      _
    $region35: #{lstm_model_forward.1} parent=1 // pred_check_branch
      %87 = sbr.rel (0) target = $region37
    $region36: #{lstm_model_forward.1} parent=1 // pred_region
      %s89 = ssub.s32 2048, 2048
      %90 = vsyncadd [#allocation12], %s89
      %s91 = sshll.u32 [#allocation11], 4
      %s92 = int_to_ptr.vmem [resolvable:$true] %s91
      %97 = dma.hbm_to_vmem [thread:$0]  %s8, 2048, %s92, [#allocation12], 128, 128, 8
    $region37: #{lstm_model_forward.1} parent=1 // pred_fallthru
      _
    // Predicated region
    $region38: #{lstm_model_forward.1} parent=1 // pred_check
      _
    $region39: #{lstm_model_forward.1} parent=1 // pred_check_branch
      %99 = sbr.rel (0) target = $region41
    $region40: #{lstm_model_forward.1} parent=1 // pred_region
      _
    $region41: #{lstm_model_forward.1} parent=1 // pred_fallthru
      _
    // Predicated region
    $region42: #{lstm_model_forward.1} parent=1 // pred_check
      _
    $region43: #{lstm_model_forward.1} parent=1 // pred_check_branch
      %101 = sbr.rel (0) target = $region45
    $region44: #{lstm_model_forward.1} parent=1 // pred_region
      %102 = dma.done [#allocation3], 2048
    $region45: #{lstm_model_forward.1} parent=1 // pred_fallthru
      _
    // Predicated region
    $region46: #{lstm_model_forward.1} parent=1 // pred_check
      _
    $region47: #{lstm_model_forward.1} parent=1 // pred_check_branch
      %104 = sbr.rel (0) target = $region49
    $region48: #{lstm_model_forward.1} parent=1 // pred_region
      %105 = dma.done [#allocation6], 8192
    $region49: #{lstm_model_forward.1} parent=1 // pred_fallthru
      _
    // Predicated region
    $region50: #{lstm_model_forward.1} parent=1 // pred_check
      _
    $region51: #{lstm_model_forward.1} parent=1 // pred_check_branch
      %107 = sbr.rel (0) target = $region53
    $region52: #{lstm_model_forward.1} parent=1 // pred_region
      %108 = dma.done [#allocation6], 8192
    $region53: #{lstm_model_forward.1} parent=1 // pred_fallthru
      _
    // Predicated region
    $region54: #{lstm_model_forward.1} parent=1 // pred_check
      _
    $region55: #{lstm_model_forward.1} parent=1 // pred_check_branch
      %110 = sbr.rel (0) target = $region57
    $region56: #{lstm_model_forward.1} parent=1 // pred_region
      %111 = dma.done [#allocation9], 8192
    $region57: #{lstm_model_forward.1} parent=1 // pred_fallthru
      _
    // Predicated region
    $region58: #{lstm_model_forward.1} parent=1 // pred_check
      _
    $region59: #{lstm_model_forward.1} parent=1 // pred_check_branch
      %113 = sbr.rel (0) target = $region61
    $region60: #{lstm_model_forward.1} parent=1 // pred_region
      %114 = dma.done [#allocation9], 2048
    $region61: #{lstm_model_forward.1} parent=1 // pred_fallthru
      _
    // Predicated region
    $region62: #{lstm_model_forward.1} parent=1 // pred_check
      _
    $region63: #{lstm_model_forward.1} parent=1 // pred_check_branch
      %116 = sbr.rel (0) target = $region65
    $region64: #{lstm_model_forward.1} parent=1 // pred_region
      %117 = dma.done [#allocation12], 2048
    $region65: #{lstm_model_forward.1} parent=1 // pred_fallthru
      _
    %v118 = vld [vmem:[%s0] sm:$0xff]
    %v119 = vld [vmem:[%s0 + $0x8] sm:$0xff]
    %v120 = vlaneseq
    %v121 = vand.u32 %v120, 127
    %122 = vset.pattern.permute.xlu0 0
    %123 = vperm.xlu0 %122, %v118
    %v124 = vpop.permute.xlu0 %123
    %125 = vset.pattern.permute.xlu0 0
    %126 = vperm.xlu0 %125, %v119
    %v127 = vpop.permute.xlu0 %126
    %vm128 = vcmp.eq.s32.totalorder %v121, %v124
    %vm129 = vcmp.eq.s32.totalorder %v121, %v127
    %v130 = vsel %vm128, 1, 0
    %v131 = vsel %vm129, 1, 0
    %v132 = vcvt.s32.f32 %v130
    %v133 = vcvt.s32.f32 %v131
    %v134 = vld [vmem:[#allocation2] sm:$0xff]
    %v135 = vld [vmem:[#allocation2 + $0x8] sm:$0xff]
    %v136 = vld [vmem:[#allocation2 + $0x10] sm:$0xff]
    %v137 = vld [vmem:[#allocation2 + $0x18] sm:$0xff]
    %v138 = vld [vmem:[#allocation2 + $0x20] sm:$0xff]
    %v139 = vld [vmem:[#allocation2 + $0x28] sm:$0xff]
    %v140 = vld [vmem:[#allocation2 + $0x30] sm:$0xff]
    %v141 = vld [vmem:[#allocation2 + $0x38] sm:$0xff]
    %v142 = vld [vmem:[#allocation2 + $0x40] sm:$0xff]
    %v143 = vld [vmem:[#allocation2 + $0x48] sm:$0xff]
    %v144 = vld [vmem:[#allocation2 + $0x50] sm:$0xff]
    %v145 = vld [vmem:[#allocation2 + $0x58] sm:$0xff]
    %v146 = vld [vmem:[#allocation2 + $0x60] sm:$0xff]
    %v147 = vld [vmem:[#allocation2 + $0x68] sm:$0xff]
    %v148 = vld [vmem:[#allocation2 + $0x70] sm:$0xff]
    %v149 = vld [vmem:[#allocation2 + $0x78] sm:$0xff]
    %vm150 = vcmask 261120
    %v152 = vsel %vm150, %v132, 0
    %v155 = vsel %vm150, %v133, 0
    %157 = vmatprep.subr.mxu0 %v135
    %158 = vmatpush1.msra.mxu0 %v134
    %159 = vmatprep.subr.mxu0 %v139
    %160 = vmatpush1.msra.mxu0 %v138
    %161 = vmatprep.subr.mxu0 %v143
    %162 = vmatpush1.msra.mxu0 %v142
    %163 = vmatprep.subr.mxu0 %v147
    %164 = vmatpush1.msra.mxu0 %v146
    %165 = vmatprep.subr.mxu0 0.0
    %166 = vmatpush1.msra.mxu0 0.0
    %167 = vmatprep.subr.mxu0 0.0
    %168 = vmatpush1.msra.mxu0 0.0
    %169 = vmatprep.subr.mxu0 0.0
    %170 = vmatpush1.msra.mxu0 0.0
    %171 = vmatprep.subr.mxu0 0.0
    %172 = vmatpush1.msra.mxu0 0.0
    %173 = vmatprep.subr.mxu0 0.0
    %174 = vmatpush1.msra.mxu0 0.0
    %175 = vmatprep.subr.mxu0 0.0
    %176 = vmatpush1.msra.mxu0 0.0
    %177 = vmatprep.subr.mxu0 0.0
    %178 = vmatpush1.msra.mxu0 0.0
    %179 = vmatprep.subr.mxu0 0.0
    %180 = vmatpush1.msra.mxu0 0.0
    %181 = vmatprep.subr.mxu0 0.0
    %182 = vmatpush1.msra.mxu0 0.0
    %183 = vmatprep.subr.mxu0 0.0
    %184 = vmatpush1.msra.mxu0 0.0
    %185 = vmatprep.subr.mxu0 0.0
    %186 = vmatpush1.msra.mxu0 0.0
    %187 = vmatprep.subr.mxu0 0.0
    %188 = vmatpush1.msra.mxu0 0.0
    %189 = vmatprep.subr.mxu0 0.0
    %190 = vmatpush1.msra.mxu0 0.0
    %191 = vmatprep.subr.mxu0 0.0
    %192 = vmatpush1.msra.mxu0 0.0
    %193 = vmatprep.subr.mxu0 0.0
    %194 = vmatpush1.msra.mxu0 0.0
    %195 = vmatprep.subr.mxu0 0.0
    %196 = vmatpush1.msra.mxu0 0.0
    %197 = vmatprep.subr.mxu0 0.0
    %198 = vmatpush1.msra.mxu0 0.0
    %199 = vmatprep.subr.mxu0 0.0
    %200 = vmatpush1.msra.mxu0 0.0
    %201 = vmatprep.subr.mxu0 0.0
    %202 = vmatpush1.msra.mxu0 0.0
    %203 = vmatprep.subr.mxu0 0.0
    %204 = vmatpush1.msra.mxu0 0.0
    %205 = vmatprep.subr.mxu0 0.0
    %206 = vmatpush1.msra.mxu0 0.0
    %207 = vmatprep.subr.mxu0 0.0
    %208 = vmatpush1.msra.mxu0 0.0
    %209 = vmatprep.subr.mxu0 0.0
    %210 = vmatpush1.msra.mxu0 0.0
    %211 = vmatprep.subr.mxu0 0.0
    %212 = vmatpush1.msra.mxu0 0.0
    %213 = vmatprep.subr.mxu0 0.0
    %214 = vmatpush1.msra.mxu0 0.0
    %215 = vmatprep.subr.mxu0 0.0
    %216 = vmatpush1.msra.mxu0 0.0
    %217 = vmatprep.subr.mxu0 0.0
    %218 = vmatpush1.msra.mxu0 0.0
    %219 = vmatprep.subr.mxu0 0.0
    %220 = vmatpush1.msra.mxu0 0.0
    %221 = vmatprep.mubr.f32.mxu0 0.0
    %222 = vmatmul.mubr.f32.gmra.mrb[0].mxu0 %v152
    %v223 = vpop.f32.mrb[0].mxu0
    %v224 = vadd.f32 0.0, %v223
    %v225 = vpop.f32.mrb[0].mxu0
    %v226 = vadd.f32 0.0, %v225
    %227 = vmatprep.mubr.f32.mxu0 0.0
    %228 = vmatmul.mubr.f32.gmra.mrb[0].mxu0 %v155
    %v229 = vpop.f32.mrb[0].mxu0
    %v230 = vadd.f32 0.0, %v229
    %v231 = vpop.f32.mrb[0].mxu0
    %v232 = vadd.f32 0.0, %v231
    %233 = vdwg.mxu0
    %234 = vmatprep.subr.mxu0 %v137
    %235 = vmatpush1.msra.mxu0 %v136
    %236 = vmatprep.subr.mxu0 %v141
    %237 = vmatpush1.msra.mxu0 %v140
    %238 = vmatprep.subr.mxu0 %v145
    %239 = vmatpush1.msra.mxu0 %v144
    %240 = vmatprep.subr.mxu0 %v149
    %241 = vmatpush1.msra.mxu0 %v148
    %242 = vmatprep.subr.mxu0 0.0
    %243 = vmatpush1.msra.mxu0 0.0
    %244 = vmatprep.subr.mxu0 0.0
    %245 = vmatpush1.msra.mxu0 0.0
    %246 = vmatprep.subr.mxu0 0.0
    %247 = vmatpush1.msra.mxu0 0.0
    %248 = vmatprep.subr.mxu0 0.0
    %249 = vmatpush1.msra.mxu0 0.0
    %250 = vmatprep.subr.mxu0 0.0
    %251 = vmatpush1.msra.mxu0 0.0
    %252 = vmatprep.subr.mxu0 0.0
    %253 = vmatpush1.msra.mxu0 0.0
    %254 = vmatprep.subr.mxu0 0.0
    %255 = vmatpush1.msra.mxu0 0.0
    %256 = vmatprep.subr.mxu0 0.0
    %257 = vmatpush1.msra.mxu0 0.0
    %258 = vmatprep.subr.mxu0 0.0
    %259 = vmatpush1.msra.mxu0 0.0
    %260 = vmatprep.subr.mxu0 0.0
    %261 = vmatpush1.msra.mxu0 0.0
    %262 = vmatprep.subr.mxu0 0.0
    %263 = vmatpush1.msra.mxu0 0.0
    %264 = vmatprep.subr.mxu0 0.0
    %265 = vmatpush1.msra.mxu0 0.0
    %266 = vmatprep.subr.mxu0 0.0
    %267 = vmatpush1.msra.mxu0 0.0
    %268 = vmatprep.subr.mxu0 0.0
    %269 = vmatpush1.msra.mxu0 0.0
    %270 = vmatprep.subr.mxu0 0.0
    %271 = vmatpush1.msra.mxu0 0.0
    %272 = vmatprep.subr.mxu0 0.0
    %273 = vmatpush1.msra.mxu0 0.0
    %274 = vmatprep.subr.mxu0 0.0
    %275 = vmatpush1.msra.mxu0 0.0
    %276 = vmatprep.subr.mxu0 0.0
    %277 = vmatpush1.msra.mxu0 0.0
    %278 = vmatprep.subr.mxu0 0.0
    %279 = vmatpush1.msra.mxu0 0.0
    %280 = vmatprep.subr.mxu0 0.0
    %281 = vmatpush1.msra.mxu0 0.0
    %282 = vmatprep.subr.mxu0 0.0
    %283 = vmatpush1.msra.mxu0 0.0
    %284 = vmatprep.subr.mxu0 0.0
    %285 = vmatpush1.msra.mxu0 0.0
    %286 = vmatprep.subr.mxu0 0.0
    %287 = vmatpush1.msra.mxu0 0.0
    %288 = vmatprep.subr.mxu0 0.0
    %289 = vmatpush1.msra.mxu0 0.0
    %290 = vmatprep.subr.mxu0 0.0
    %291 = vmatpush1.msra.mxu0 0.0
    %292 = vmatprep.subr.mxu0 0.0
    %293 = vmatpush1.msra.mxu0 0.0
    %294 = vmatprep.subr.mxu0 0.0
    %295 = vmatpush1.msra.mxu0 0.0
    %296 = vmatprep.subr.mxu0 0.0
    %297 = vmatpush1.msra.mxu0 0.0
    %298 = vmatprep.mubr.f32.mxu0 0.0
    %299 = vmatmul.mubr.f32.gmra.mrb[0].mxu0 %v152
    %v300 = vpop.f32.mrb[0].mxu0
    %v301 = vadd.f32 0.0, %v300
    %v302 = vpop.f32.mrb[0].mxu0
    %v303 = vadd.f32 0.0, %v302
    %304 = vmatprep.mubr.f32.mxu0 0.0
    %305 = vmatmul.mubr.f32.gmra.mrb[0].mxu0 %v155
    %v306 = vpop.f32.mrb[0].mxu0
    %v307 = vadd.f32 0.0, %v306
    %v308 = vpop.f32.mrb[0].mxu0
    %v309 = vadd.f32 0.0, %v308
    %310 = vdwg.mxu0
    %v311 = vld [vmem:[#allocation5] sm:$0xff]
    %v312 = vld [vmem:[#allocation5 + $0x8] sm:$0xff]
    %v313 = vld [vmem:[#allocation5 + $0x10] sm:$0xff]
    %v314 = vld [vmem:[#allocation5 + $0x18] sm:$0xff]
    %v315 = vld [vmem:[#allocation5 + $0x20] sm:$0xff]
    %v316 = vld [vmem:[#allocation5 + $0x28] sm:$0xff]
    %v317 = vld [vmem:[#allocation5 + $0x30] sm:$0xff]
    %v318 = vld [vmem:[#allocation5 + $0x38] sm:$0xff]
    %v319 = vld [vmem:[#allocation5 + $0x40] sm:$0xff]
    %v320 = vld [vmem:[#allocation5 + $0x48] sm:$0xff]
    %v321 = vld [vmem:[#allocation5 + $0x50] sm:$0xff]
    %v322 = vld [vmem:[#allocation5 + $0x58] sm:$0xff]
    %v323 = vld [vmem:[#allocation5 + $0x60] sm:$0xff]
    %v324 = vld [vmem:[#allocation5 + $0x68] sm:$0xff]
    %v325 = vld [vmem:[#allocation5 + $0x70] sm:$0xff]
    %v326 = vld [vmem:[#allocation5 + $0x78] sm:$0xff]
    %v327 = vld [vmem:[#allocation5 + $0x80] sm:$0xff]
    %v328 = vld [vmem:[#allocation5 + $0x88] sm:$0xff]
    %v329 = vld [vmem:[#allocation5 + $0x90] sm:$0xff]
    %v330 = vld [vmem:[#allocation5 + $0x98] sm:$0xff]
    %v331 = vld [vmem:[#allocation5 + $0xa0] sm:$0xff]
    %v332 = vld [vmem:[#allocation5 + $0xa8] sm:$0xff]
    %v333 = vld [vmem:[#allocation5 + $0xb0] sm:$0xff]
    %v334 = vld [vmem:[#allocation5 + $0xb8] sm:$0xff]
    %v335 = vld [vmem:[#allocation5 + $0xc0] sm:$0xff]
    %v336 = vld [vmem:[#allocation5 + $0xc8] sm:$0xff]
    %v337 = vld [vmem:[#allocation5 + $0xd0] sm:$0xff]
    %v338 = vld [vmem:[#allocation5 + $0xd8] sm:$0xff]
    %v339 = vld [vmem:[#allocation5 + $0xe0] sm:$0xff]
    %v340 = vld [vmem:[#allocation5 + $0xe8] sm:$0xff]
    %v341 = vld [vmem:[#allocation5 + $0xf0] sm:$0xff]
    %v342 = vld [vmem:[#allocation5 + $0xf8] sm:$0xff]
    %v343 = vld [vmem:[#allocation5 + $0x100] sm:$0xff]
    %v344 = vld [vmem:[#allocation5 + $0x108] sm:$0xff]
    %v345 = vld [vmem:[#allocation5 + $0x110] sm:$0xff]
    %v346 = vld [vmem:[#allocation5 + $0x118] sm:$0xff]
    %v347 = vld [vmem:[#allocation5 + $0x120] sm:$0xff]
    %v348 = vld [vmem:[#allocation5 + $0x128] sm:$0xff]
    %v349 = vld [vmem:[#allocation5 + $0x130] sm:$0xff]
    %v350 = vld [vmem:[#allocation5 + $0x138] sm:$0xff]
    %v351 = vld [vmem:[#allocation5 + $0x140] sm:$0xff]
    %v352 = vld [vmem:[#allocation5 + $0x148] sm:$0xff]
    %v353 = vld [vmem:[#allocation5 + $0x150] sm:$0xff]
    %v354 = vld [vmem:[#allocation5 + $0x158] sm:$0xff]
    %v355 = vld [vmem:[#allocation5 + $0x160] sm:$0xff]
    %v356 = vld [vmem:[#allocation5 + $0x168] sm:$0xff]
    %v357 = vld [vmem:[#allocation5 + $0x170] sm:$0xff]
    %v358 = vld [vmem:[#allocation5 + $0x178] sm:$0xff]
    %v359 = vld [vmem:[#allocation5 + $0x180] sm:$0xff]
    %v360 = vld [vmem:[#allocation5 + $0x188] sm:$0xff]
    %v361 = vld [vmem:[#allocation5 + $0x190] sm:$0xff]
    %v362 = vld [vmem:[#allocation5 + $0x198] sm:$0xff]
    %v363 = vld [vmem:[#allocation5 + $0x1a0] sm:$0xff]
    %v364 = vld [vmem:[#allocation5 + $0x1a8] sm:$0xff]
    %v365 = vld [vmem:[#allocation5 + $0x1b0] sm:$0xff]
    %v366 = vld [vmem:[#allocation5 + $0x1b8] sm:$0xff]
    %v367 = vld [vmem:[#allocation5 + $0x1c0] sm:$0xff]
    %v368 = vld [vmem:[#allocation5 + $0x1c8] sm:$0xff]
    %v369 = vld [vmem:[#allocation5 + $0x1d0] sm:$0xff]
    %v370 = vld [vmem:[#allocation5 + $0x1d8] sm:$0xff]
    %v371 = vld [vmem:[#allocation5 + $0x1e0] sm:$0xff]
    %v372 = vld [vmem:[#allocation5 + $0x1e8] sm:$0xff]
    %v373 = vld [vmem:[#allocation5 + $0x1f0] sm:$0xff]
    %v374 = vld [vmem:[#allocation5 + $0x1f8] sm:$0xff]
    %v375 = vld [vmem:[#allocation7] sm:$0xff]
    %v376 = vld [vmem:[#allocation7 + $0x8] sm:$0xff]
    %v377 = vld [vmem:[#allocation7 + $0x10] sm:$0xff]
    %v378 = vld [vmem:[#allocation7 + $0x18] sm:$0xff]
    %v379 = vld [vmem:[#allocation7 + $0x20] sm:$0xff]
    %v380 = vld [vmem:[#allocation7 + $0x28] sm:$0xff]
    %v381 = vld [vmem:[#allocation7 + $0x30] sm:$0xff]
    %v382 = vld [vmem:[#allocation7 + $0x38] sm:$0xff]
    %v383 = vld [vmem:[#allocation7 + $0x40] sm:$0xff]
    %v384 = vld [vmem:[#allocation7 + $0x48] sm:$0xff]
    %v385 = vld [vmem:[#allocation7 + $0x50] sm:$0xff]
    %v386 = vld [vmem:[#allocation7 + $0x58] sm:$0xff]
    %v387 = vld [vmem:[#allocation7 + $0x60] sm:$0xff]
    %v388 = vld [vmem:[#allocation7 + $0x68] sm:$0xff]
    %v389 = vld [vmem:[#allocation7 + $0x70] sm:$0xff]
    %v390 = vld [vmem:[#allocation7 + $0x78] sm:$0xff]
    %v391 = vld [vmem:[#allocation7 + $0x80] sm:$0xff]
    %v392 = vld [vmem:[#allocation7 + $0x88] sm:$0xff]
    %v393 = vld [vmem:[#allocation7 + $0x90] sm:$0xff]
    %v394 = vld [vmem:[#allocation7 + $0x98] sm:$0xff]
    %v395 = vld [vmem:[#allocation7 + $0xa0] sm:$0xff]
    %v396 = vld [vmem:[#allocation7 + $0xa8] sm:$0xff]
    %v397 = vld [vmem:[#allocation7 + $0xb0] sm:$0xff]
    %v398 = vld [vmem:[#allocation7 + $0xb8] sm:$0xff]
    %v399 = vld [vmem:[#allocation7 + $0xc0] sm:$0xff]
    %v400 = vld [vmem:[#allocation7 + $0xc8] sm:$0xff]
    %v401 = vld [vmem:[#allocation7 + $0xd0] sm:$0xff]
    %v402 = vld [vmem:[#allocation7 + $0xd8] sm:$0xff]
    %v403 = vld [vmem:[#allocation7 + $0xe0] sm:$0xff]
    %v404 = vld [vmem:[#allocation7 + $0xe8] sm:$0xff]
    %v405 = vld [vmem:[#allocation7 + $0xf0] sm:$0xff]
    %v406 = vld [vmem:[#allocation7 + $0xf8] sm:$0xff]
    %v407 = vld [vmem:[#allocation7 + $0x100] sm:$0xff]
    %v408 = vld [vmem:[#allocation7 + $0x108] sm:$0xff]
    %v409 = vld [vmem:[#allocation7 + $0x110] sm:$0xff]
    %v410 = vld [vmem:[#allocation7 + $0x118] sm:$0xff]
    %v411 = vld [vmem:[#allocation7 + $0x120] sm:$0xff]
    %v412 = vld [vmem:[#allocation7 + $0x128] sm:$0xff]
    %v413 = vld [vmem:[#allocation7 + $0x130] sm:$0xff]
    %v414 = vld [vmem:[#allocation7 + $0x138] sm:$0xff]
    %v415 = vld [vmem:[#allocation7 + $0x140] sm:$0xff]
    %v416 = vld [vmem:[#allocation7 + $0x148] sm:$0xff]
    %v417 = vld [vmem:[#allocation7 + $0x150] sm:$0xff]
    %v418 = vld [vmem:[#allocation7 + $0x158] sm:$0xff]
    %v419 = vld [vmem:[#allocation7 + $0x160] sm:$0xff]
    %v420 = vld [vmem:[#allocation7 + $0x168] sm:$0xff]
    %v421 = vld [vmem:[#allocation7 + $0x170] sm:$0xff]
    %v422 = vld [vmem:[#allocation7 + $0x178] sm:$0xff]
    %v423 = vld [vmem:[#allocation7 + $0x180] sm:$0xff]
    %v424 = vld [vmem:[#allocation7 + $0x188] sm:$0xff]
    %v425 = vld [vmem:[#allocation7 + $0x190] sm:$0xff]
    %v426 = vld [vmem:[#allocation7 + $0x198] sm:$0xff]
    %v427 = vld [vmem:[#allocation7 + $0x1a0] sm:$0xff]
    %v428 = vld [vmem:[#allocation7 + $0x1a8] sm:$0xff]
    %v429 = vld [vmem:[#allocation7 + $0x1b0] sm:$0xff]
    %v430 = vld [vmem:[#allocation7 + $0x1b8] sm:$0xff]
    %v431 = vld [vmem:[#allocation7 + $0x1c0] sm:$0xff]
    %v432 = vld [vmem:[#allocation7 + $0x1c8] sm:$0xff]
    %v433 = vld [vmem:[#allocation7 + $0x1d0] sm:$0xff]
    %v434 = vld [vmem:[#allocation7 + $0x1d8] sm:$0xff]
    %v435 = vld [vmem:[#allocation7 + $0x1e0] sm:$0xff]
    %v436 = vld [vmem:[#allocation7 + $0x1e8] sm:$0xff]
    %v437 = vld [vmem:[#allocation7 + $0x1f0] sm:$0xff]
    %v438 = vld [vmem:[#allocation7 + $0x1f8] sm:$0xff]
    %v439 = vld [vmem:[#allocation8] sm:$0xff]
    %v440 = vld [vmem:[#allocation8 + $0x8] sm:$0xff]
    %v441 = vld [vmem:[#allocation8 + $0x10] sm:$0xff]
    %v442 = vld [vmem:[#allocation8 + $0x18] sm:$0xff]
    %v443 = vld [vmem:[#allocation8 + $0x20] sm:$0xff]
    %v444 = vld [vmem:[#allocation8 + $0x28] sm:$0xff]
    %v445 = vld [vmem:[#allocation8 + $0x30] sm:$0xff]
    %v446 = vld [vmem:[#allocation8 + $0x38] sm:$0xff]
    %v447 = vld [vmem:[#allocation8 + $0x40] sm:$0xff]
    %v448 = vld [vmem:[#allocation8 + $0x48] sm:$0xff]
    %v449 = vld [vmem:[#allocation8 + $0x50] sm:$0xff]
    %v450 = vld [vmem:[#allocation8 + $0x58] sm:$0xff]
    %v451 = vld [vmem:[#allocation8 + $0x60] sm:$0xff]
    %v452 = vld [vmem:[#allocation8 + $0x68] sm:$0xff]
    %v453 = vld [vmem:[#allocation8 + $0x70] sm:$0xff]
    %v454 = vld [vmem:[#allocation8 + $0x78] sm:$0xff]
    %v455 = vld [vmem:[#allocation8 + $0x80] sm:$0xff]
    %v456 = vld [vmem:[#allocation8 + $0x88] sm:$0xff]
    %v457 = vld [vmem:[#allocation8 + $0x90] sm:$0xff]
    %v458 = vld [vmem:[#allocation8 + $0x98] sm:$0xff]
    %v459 = vld [vmem:[#allocation8 + $0xa0] sm:$0xff]
    %v460 = vld [vmem:[#allocation8 + $0xa8] sm:$0xff]
    %v461 = vld [vmem:[#allocation8 + $0xb0] sm:$0xff]
    %v462 = vld [vmem:[#allocation8 + $0xb8] sm:$0xff]
    %v463 = vld [vmem:[#allocation8 + $0xc0] sm:$0xff]
    %v464 = vld [vmem:[#allocation8 + $0xc8] sm:$0xff]
    %v465 = vld [vmem:[#allocation8 + $0xd0] sm:$0xff]
    %v466 = vld [vmem:[#allocation8 + $0xd8] sm:$0xff]
    %v467 = vld [vmem:[#allocation8 + $0xe0] sm:$0xff]
    %v468 = vld [vmem:[#allocation8 + $0xe8] sm:$0xff]
    %v469 = vld [vmem:[#allocation8 + $0xf0] sm:$0xff]
    %v470 = vld [vmem:[#allocation8 + $0xf8] sm:$0xff]
    %v471 = vld [vmem:[#allocation8 + $0x100] sm:$0xff]
    %v472 = vld [vmem:[#allocation8 + $0x108] sm:$0xff]
    %v473 = vld [vmem:[#allocation8 + $0x110] sm:$0xff]
    %v474 = vld [vmem:[#allocation8 + $0x118] sm:$0xff]
    %v475 = vld [vmem:[#allocation8 + $0x120] sm:$0xff]
    %v476 = vld [vmem:[#allocation8 + $0x128] sm:$0xff]
    %v477 = vld [vmem:[#allocation8 + $0x130] sm:$0xff]
    %v478 = vld [vmem:[#allocation8 + $0x138] sm:$0xff]
    %v479 = vld [vmem:[#allocation8 + $0x140] sm:$0xff]
    %v480 = vld [vmem:[#allocation8 + $0x148] sm:$0xff]
    %v481 = vld [vmem:[#allocation8 + $0x150] sm:$0xff]
    %v482 = vld [vmem:[#allocation8 + $0x158] sm:$0xff]
    %v483 = vld [vmem:[#allocation8 + $0x160] sm:$0xff]
    %v484 = vld [vmem:[#allocation8 + $0x168] sm:$0xff]
    %v485 = vld [vmem:[#allocation8 + $0x170] sm:$0xff]
    %v486 = vld [vmem:[#allocation8 + $0x178] sm:$0xff]
    %v487 = vld [vmem:[#allocation8 + $0x180] sm:$0xff]
    %v488 = vld [vmem:[#allocation8 + $0x188] sm:$0xff]
    %v489 = vld [vmem:[#allocation8 + $0x190] sm:$0xff]
    %v490 = vld [vmem:[#allocation8 + $0x198] sm:$0xff]
    %v491 = vld [vmem:[#allocation8 + $0x1a0] sm:$0xff]
    %v492 = vld [vmem:[#allocation8 + $0x1a8] sm:$0xff]
    %v493 = vld [vmem:[#allocation8 + $0x1b0] sm:$0xff]
    %v494 = vld [vmem:[#allocation8 + $0x1b8] sm:$0xff]
    %v495 = vld [vmem:[#allocation8 + $0x1c0] sm:$0xff]
    %v496 = vld [vmem:[#allocation8 + $0x1c8] sm:$0xff]
    %v497 = vld [vmem:[#allocation8 + $0x1d0] sm:$0xff]
    %v498 = vld [vmem:[#allocation8 + $0x1d8] sm:$0xff]
    %v499 = vld [vmem:[#allocation8 + $0x1e0] sm:$0xff]
    %v500 = vld [vmem:[#allocation8 + $0x1e8] sm:$0xff]
    %v501 = vld [vmem:[#allocation8 + $0x1f0] sm:$0xff]
    %v502 = vld [vmem:[#allocation8 + $0x1f8] sm:$0xff]
    %v503 = vld [vmem:[%s5] sm:$0xf]
    %504 = vmatprep.subr.mxu0 %v312
    %505 = vmatpush1.msra.mxu0 %v311
    %506 = vmatprep.subr.mxu0 %v316
    %507 = vmatpush1.msra.mxu0 %v315
    %508 = vmatprep.subr.mxu0 %v320
    %509 = vmatpush1.msra.mxu0 %v319
    %510 = vmatprep.subr.mxu0 %v324
    %511 = vmatpush1.msra.mxu0 %v323
    %512 = vmatprep.subr.mxu0 %v328
    %513 = vmatpush1.msra.mxu0 %v327
    %514 = vmatprep.subr.mxu0 %v332
    %515 = vmatpush1.msra.mxu0 %v331
    %516 = vmatprep.subr.mxu0 %v336
    %517 = vmatpush1.msra.mxu0 %v335
    %518 = vmatprep.subr.mxu0 %v340
    %519 = vmatpush1.msra.mxu0 %v339
    %520 = vmatprep.subr.mxu0 %v344
    %521 = vmatpush1.msra.mxu0 %v343
    %522 = vmatprep.subr.mxu0 %v348
    %523 = vmatpush1.msra.mxu0 %v347
    %524 = vmatprep.subr.mxu0 %v352
    %525 = vmatpush1.msra.mxu0 %v351
    %526 = vmatprep.subr.mxu0 %v356
    %527 = vmatpush1.msra.mxu0 %v355
    %528 = vmatprep.subr.mxu0 %v360
    %529 = vmatpush1.msra.mxu0 %v359
    %530 = vmatprep.subr.mxu0 %v364
    %531 = vmatpush1.msra.mxu0 %v363
    %532 = vmatprep.subr.mxu0 %v368
    %533 = vmatpush1.msra.mxu0 %v367
    %534 = vmatprep.subr.mxu0 %v372
    %535 = vmatpush1.msra.mxu0 %v371
    %536 = vmatprep.subr.mxu0 0.0
    %537 = vmatpush1.msra.mxu0 0.0
    %538 = vmatprep.subr.mxu0 0.0
    %539 = vmatpush1.msra.mxu0 0.0
    %540 = vmatprep.subr.mxu0 0.0
    %541 = vmatpush1.msra.mxu0 0.0
    %542 = vmatprep.subr.mxu0 0.0
    %543 = vmatpush1.msra.mxu0 0.0
    %544 = vmatprep.subr.mxu0 0.0
    %545 = vmatpush1.msra.mxu0 0.0
    %546 = vmatprep.subr.mxu0 0.0
    %547 = vmatpush1.msra.mxu0 0.0
    %548 = vmatprep.subr.mxu0 0.0
    %549 = vmatpush1.msra.mxu0 0.0
    %550 = vmatprep.subr.mxu0 0.0
    %551 = vmatpush1.msra.mxu0 0.0
    %552 = vmatprep.subr.mxu0 0.0
    %553 = vmatpush1.msra.mxu0 0.0
    %554 = vmatprep.subr.mxu0 0.0
    %555 = vmatpush1.msra.mxu0 0.0
    %556 = vmatprep.subr.mxu0 0.0
    %557 = vmatpush1.msra.mxu0 0.0
    %558 = vmatprep.subr.mxu0 0.0
    %559 = vmatpush1.msra.mxu0 0.0
    %560 = vmatprep.subr.mxu0 0.0
    %561 = vmatpush1.msra.mxu0 0.0
    %562 = vmatprep.subr.mxu0 0.0
    %563 = vmatpush1.msra.mxu0 0.0
    %564 = vmatprep.subr.mxu0 0.0
    %565 = vmatpush1.msra.mxu0 0.0
    %566 = vmatprep.subr.mxu0 0.0
    %567 = vmatpush1.msra.mxu0 0.0
    %568 = vmatprep.mubr.f32.mxu0 0.0
    %569 = vmatmul.mubr.f32.gmra.mrb[0].mxu0 0.0
    %v570 = vpop.f32.mrb[0].mxu0
    %v571 = vadd.f32 0.0, %v570
    %v572 = vpop.f32.mrb[0].mxu0
    %v573 = vadd.f32 0.0, %v572
    %574 = vdwg.mxu0
    %575 = vmatprep.subr.mxu0 %v314
    %576 = vmatpush1.msra.mxu0 %v313
    %577 = vmatprep.subr.mxu0 %v318
    %578 = vmatpush1.msra.mxu0 %v317
    %579 = vmatprep.subr.mxu0 %v322
    %580 = vmatpush1.msra.mxu0 %v321
    %581 = vmatprep.subr.mxu0 %v326
    %582 = vmatpush1.msra.mxu0 %v325
    %583 = vmatprep.subr.mxu0 %v330
    %584 = vmatpush1.msra.mxu0 %v329
    %585 = vmatprep.subr.mxu0 %v334
    %586 = vmatpush1.msra.mxu0 %v333
    %587 = vmatprep.subr.mxu0 %v338
    %588 = vmatpush1.msra.mxu0 %v337
    %589 = vmatprep.subr.mxu0 %v342
    %590 = vmatpush1.msra.mxu0 %v341
    %591 = vmatprep.subr.mxu0 %v346
    %592 = vmatpush1.msra.mxu0 %v345
    %593 = vmatprep.subr.mxu0 %v350
    %594 = vmatpush1.msra.mxu0 %v349
    %595 = vmatprep.subr.mxu0 %v354
    %596 = vmatpush1.msra.mxu0 %v353
    %597 = vmatprep.subr.mxu0 %v358
    %598 = vmatpush1.msra.mxu0 %v357
    %599 = vmatprep.subr.mxu0 %v362
    %600 = vmatpush1.msra.mxu0 %v361
    %601 = vmatprep.subr.mxu0 %v366
    %602 = vmatpush1.msra.mxu0 %v365
    %603 = vmatprep.subr.mxu0 %v370
    %604 = vmatpush1.msra.mxu0 %v369
    %605 = vmatprep.subr.mxu0 %v374
    %606 = vmatpush1.msra.mxu0 %v373
    %607 = vmatprep.subr.mxu0 0.0
    %608 = vmatpush1.msra.mxu0 0.0
    %609 = vmatprep.subr.mxu0 0.0
    %610 = vmatpush1.msra.mxu0 0.0
    %611 = vmatprep.subr.mxu0 0.0
    %612 = vmatpush1.msra.mxu0 0.0
    %613 = vmatprep.subr.mxu0 0.0
    %614 = vmatpush1.msra.mxu0 0.0
    %615 = vmatprep.subr.mxu0 0.0
    %616 = vmatpush1.msra.mxu0 0.0
    %617 = vmatprep.subr.mxu0 0.0
    %618 = vmatpush1.msra.mxu0 0.0
    %619 = vmatprep.subr.mxu0 0.0
    %620 = vmatpush1.msra.mxu0 0.0
    %621 = vmatprep.subr.mxu0 0.0
    %622 = vmatpush1.msra.mxu0 0.0
    %623 = vmatprep.subr.mxu0 0.0
    %624 = vmatpush1.msra.mxu0 0.0
    %625 = vmatprep.subr.mxu0 0.0
    %626 = vmatpush1.msra.mxu0 0.0
    %627 = vmatprep.subr.mxu0 0.0
    %628 = vmatpush1.msra.mxu0 0.0
    %629 = vmatprep.subr.mxu0 0.0
    %630 = vmatpush1.msra.mxu0 0.0
    %631 = vmatprep.subr.mxu0 0.0
    %632 = vmatpush1.msra.mxu0 0.0
    %633 = vmatprep.subr.mxu0 0.0
    %634 = vmatpush1.msra.mxu0 0.0
    %635 = vmatprep.subr.mxu0 0.0
    %636 = vmatpush1.msra.mxu0 0.0
    %637 = vmatprep.subr.mxu0 0.0
    %638 = vmatpush1.msra.mxu0 0.0
    %639 = vmatprep.mubr.f32.mxu0 0.0
    %640 = vmatmul.mubr.f32.gmra.mrb[0].mxu0 0.0
    %v641 = vpop.f32.mrb[0].mxu0
    %v642 = vadd.f32 0.0, %v641
    %v643 = vpop.f32.mrb[0].mxu0
    %v644 = vadd.f32 0.0, %v643
    %645 = vdwg.mxu0
    %v646 = vadd.f32 %v224, %v571
    %v647 = vadd.f32 %v226, %v573
    %v648 = vadd.f32 %v301, %v642
    %v649 = vadd.f32 %v303, %v644
    %v650 = vxor.u32 %v646, 2147483648
    %v651 = vxor.u32 %v647, 2147483648
    %v652 = vxor.u32 %v648, 2147483648
    %v653 = vmul.f32 %v650, 1.442695
    %v654 = vpow.pop %v653
    %v655 = vmul.f32 %v651, 1.442695
    %v656 = vpow.pop %v655
    %v657 = vmul.f32 %v652, 1.442695
    %v658 = vpow.pop %v657
    %v659 = vadd.f32 %v654, 1.0
    %v660 = vadd.f32 %v656, 1.0
    %v661 = vadd.f32 %v658, 1.0
    %v662 = vrcp.pop %v659
    %v663 = vmul.f32 1.0, %v662
    %v664 = vrcp.pop %v660
    %v665 = vmul.f32 1.0, %v664
    %v666 = vrcp.pop %v661
    %v667 = vmul.f32 1.0, %v666
    %v668 = vtanh.pop %v649
    %v669 = vmul.f32 %v665, 0.0
    %v670 = vmul.f32 %v663, %v668
    %v671 = vadd.f32 %v669, %v670
    %v672 = vtanh.pop %v671
    %v673 = vmul.f32 %v667, %v672
    %674 = vmatprep.subr.mxu0 %v312
    %675 = vmatpush1.msra.mxu0 %v311
    %676 = vmatprep.subr.mxu0 %v316
    %677 = vmatpush1.msra.mxu0 %v315
    %678 = vmatprep.subr.mxu0 %v320
    %679 = vmatpush1.msra.mxu0 %v319
    %680 = vmatprep.subr.mxu0 %v324
    %681 = vmatpush1.msra.mxu0 %v323
    %682 = vmatprep.subr.mxu0 %v328
    %683 = vmatpush1.msra.mxu0 %v327
    %684 = vmatprep.subr.mxu0 %v332
    %685 = vmatpush1.msra.mxu0 %v331
    %686 = vmatprep.subr.mxu0 %v336
    %687 = vmatpush1.msra.mxu0 %v335
    %688 = vmatprep.subr.mxu0 %v340
    %689 = vmatpush1.msra.mxu0 %v339
    %690 = vmatprep.subr.mxu0 %v344
    %691 = vmatpush1.msra.mxu0 %v343
    %692 = vmatprep.subr.mxu0 %v348
    %693 = vmatpush1.msra.mxu0 %v347
    %694 = vmatprep.subr.mxu0 %v352
    %695 = vmatpush1.msra.mxu0 %v351
    %696 = vmatprep.subr.mxu0 %v356
    %697 = vmatpush1.msra.mxu0 %v355
    %698 = vmatprep.subr.mxu0 %v360
    %699 = vmatpush1.msra.mxu0 %v359
    %700 = vmatprep.subr.mxu0 %v364
    %701 = vmatpush1.msra.mxu0 %v363
    %702 = vmatprep.subr.mxu0 %v368
    %703 = vmatpush1.msra.mxu0 %v367
    %704 = vmatprep.subr.mxu0 %v372
    %705 = vmatpush1.msra.mxu0 %v371
    %706 = vmatprep.subr.mxu0 0.0
    %707 = vmatpush1.msra.mxu0 0.0
    %708 = vmatprep.subr.mxu0 0.0
    %709 = vmatpush1.msra.mxu0 0.0
    %710 = vmatprep.subr.mxu0 0.0
    %711 = vmatpush1.msra.mxu0 0.0
    %712 = vmatprep.subr.mxu0 0.0
    %713 = vmatpush1.msra.mxu0 0.0
    %714 = vmatprep.subr.mxu0 0.0
    %715 = vmatpush1.msra.mxu0 0.0
    %716 = vmatprep.subr.mxu0 0.0
    %717 = vmatpush1.msra.mxu0 0.0
    %718 = vmatprep.subr.mxu0 0.0
    %719 = vmatpush1.msra.mxu0 0.0
    %720 = vmatprep.subr.mxu0 0.0
    %721 = vmatpush1.msra.mxu0 0.0
    %722 = vmatprep.subr.mxu0 0.0
    %723 = vmatpush1.msra.mxu0 0.0
    %724 = vmatprep.subr.mxu0 0.0
    %725 = vmatpush1.msra.mxu0 0.0
    %726 = vmatprep.subr.mxu0 0.0
    %727 = vmatpush1.msra.mxu0 0.0
    %728 = vmatprep.subr.mxu0 0.0
    %729 = vmatpush1.msra.mxu0 0.0
    %730 = vmatprep.subr.mxu0 0.0
    %731 = vmatpush1.msra.mxu0 0.0
    %732 = vmatprep.subr.mxu0 0.0
    %733 = vmatpush1.msra.mxu0 0.0
    %734 = vmatprep.subr.mxu0 0.0
    %735 = vmatpush1.msra.mxu0 0.0
    %736 = vmatprep.subr.mxu0 0.0
    %737 = vmatpush1.msra.mxu0 0.0
    %738 = vmatprep.mubr.f32.mxu0 0.0
    %739 = vmatmul.mubr.f32.gmra.mrb[0].mxu0 %v673
    %v740 = vpop.f32.mrb[0].mxu0
    %v741 = vadd.f32 0.0, %v740
    %v742 = vpop.f32.mrb[0].mxu0
    %v743 = vadd.f32 0.0, %v742
    %744 = vdwg.mxu0
    %745 = vmatprep.subr.mxu0 %v314
    %746 = vmatpush1.msra.mxu0 %v313
    %747 = vmatprep.subr.mxu0 %v318
    %748 = vmatpush1.msra.mxu0 %v317
    %749 = vmatprep.subr.mxu0 %v322
    %750 = vmatpush1.msra.mxu0 %v321
    %751 = vmatprep.subr.mxu0 %v326
    %752 = vmatpush1.msra.mxu0 %v325
    %753 = vmatprep.subr.mxu0 %v330
    %754 = vmatpush1.msra.mxu0 %v329
    %755 = vmatprep.subr.mxu0 %v334
    %756 = vmatpush1.msra.mxu0 %v333
    %757 = vmatprep.subr.mxu0 %v338
    %758 = vmatpush1.msra.mxu0 %v337
    %759 = vmatprep.subr.mxu0 %v342
    %760 = vmatpush1.msra.mxu0 %v341
    %761 = vmatprep.subr.mxu0 %v346
    %762 = vmatpush1.msra.mxu0 %v345
    %763 = vmatprep.subr.mxu0 %v350
    %764 = vmatpush1.msra.mxu0 %v349
    %765 = vmatprep.subr.mxu0 %v354
    %766 = vmatpush1.msra.mxu0 %v353
    %767 = vmatprep.subr.mxu0 %v358
    %768 = vmatpush1.msra.mxu0 %v357
    %769 = vmatprep.subr.mxu0 %v362
    %770 = vmatpush1.msra.mxu0 %v361
    %771 = vmatprep.subr.mxu0 %v366
    %772 = vmatpush1.msra.mxu0 %v365
    %773 = vmatprep.subr.mxu0 %v370
    %774 = vmatpush1.msra.mxu0 %v369
    %775 = vmatprep.subr.mxu0 %v374
    %776 = vmatpush1.msra.mxu0 %v373
    %777 = vmatprep.subr.mxu0 0.0
    %778 = vmatpush1.msra.mxu0 0.0
    %779 = vmatprep.subr.mxu0 0.0
    %780 = vmatpush1.msra.mxu0 0.0
    %781 = vmatprep.subr.mxu0 0.0
    %782 = vmatpush1.msra.mxu0 0.0
    %783 = vmatprep.subr.mxu0 0.0
    %784 = vmatpush1.msra.mxu0 0.0
    %785 = vmatprep.subr.mxu0 0.0
    %786 = vmatpush1.msra.mxu0 0.0
    %787 = vmatprep.subr.mxu0 0.0
    %788 = vmatpush1.msra.mxu0 0.0
    %789 = vmatprep.subr.mxu0 0.0
    %790 = vmatpush1.msra.mxu0 0.0
    %791 = vmatprep.subr.mxu0 0.0
    %792 = vmatpush1.msra.mxu0 0.0
    %793 = vmatprep.subr.mxu0 0.0
    %794 = vmatpush1.msra.mxu0 0.0
    %795 = vmatprep.subr.mxu0 0.0
    %796 = vmatpush1.msra.mxu0 0.0
    %797 = vmatprep.subr.mxu0 0.0
    %798 = vmatpush1.msra.mxu0 0.0
    %799 = vmatprep.subr.mxu0 0.0
    %800 = vmatpush1.msra.mxu0 0.0
    %801 = vmatprep.subr.mxu0 0.0
    %802 = vmatpush1.msra.mxu0 0.0
    %803 = vmatprep.subr.mxu0 0.0
    %804 = vmatpush1.msra.mxu0 0.0
    %805 = vmatprep.subr.mxu0 0.0
    %806 = vmatpush1.msra.mxu0 0.0
    %807 = vmatprep.subr.mxu0 0.0
    %808 = vmatpush1.msra.mxu0 0.0
    %809 = vmatprep.mubr.f32.mxu0 0.0
    %810 = vmatmul.mubr.f32.gmra.mrb[0].mxu0 %v673
    %v811 = vpop.f32.mrb[0].mxu0
    %v812 = vadd.f32 0.0, %v811
    %v813 = vpop.f32.mrb[0].mxu0
    %v814 = vadd.f32 0.0, %v813
    %815 = vdwg.mxu0
    %v820 = vrot.slane %v741, 6
    %v821 = vrot.slane %v743, 6
    %v822 = vrot.slane %v812, 6
    %v823 = vrot.slane %v814, 6
    %v828 = vadd.f32 %v224, %v820
    %v829 = vadd.f32 %v226, %v821
    %v830 = vadd.f32 %v301, %v822
    %v831 = vadd.f32 %v303, %v823
    %v832 = vxor.u32 %v828, 2147483648
    %v833 = vxor.u32 %v829, 2147483648
    %v834 = vxor.u32 %v830, 2147483648
    %v835 = vmul.f32 %v832, 1.442695
    %v836 = vpow.pop %v835
    %v837 = vmul.f32 %v833, 1.442695
    %v838 = vpow.pop %v837
    %v839 = vmul.f32 %v834, 1.442695
    %v840 = vpow.pop %v839
    %v841 = vadd.f32 %v836, 1.0
    %v842 = vadd.f32 %v838, 1.0
    %v843 = vadd.f32 %v840, 1.0
    %v844 = vrcp.pop %v841
    %v845 = vmul.f32 1.0, %v844
    %v846 = vrcp.pop %v842
    %v847 = vmul.f32 1.0, %v846
    %v848 = vrcp.pop %v843
    %v849 = vmul.f32 1.0, %v848
    %v850 = vtanh.pop %v831
    %v852 = vrot.slane %v671, 6
    %v854 = vmul.f32 %v847, %v852
    %v855 = vmul.f32 %v845, %v850
    %v856 = vadd.f32 %v854, %v855
    %v857 = vtanh.pop %v856
    %v858 = vmul.f32 %v849, %v857
    %859 = vmatprep.subr.mxu0 %v440
    %860 = vmatpush1.msra.mxu0 %v439
    %861 = vmatprep.subr.mxu0 %v444
    %862 = vmatpush1.msra.mxu0 %v443
    %863 = vmatprep.subr.mxu0 %v448
    %864 = vmatpush1.msra.mxu0 %v447
    %865 = vmatprep.subr.mxu0 %v452
    %866 = vmatpush1.msra.mxu0 %v451
    %867 = vmatprep.subr.mxu0 %v456
    %868 = vmatpush1.msra.mxu0 %v455
    %869 = vmatprep.subr.mxu0 %v460
    %870 = vmatpush1.msra.mxu0 %v459
    %871 = vmatprep.subr.mxu0 %v464
    %872 = vmatpush1.msra.mxu0 %v463
    %873 = vmatprep.subr.mxu0 %v468
    %874 = vmatpush1.msra.mxu0 %v467
    %875 = vmatprep.subr.mxu0 %v472
    %876 = vmatpush1.msra.mxu0 %v471
    %877 = vmatprep.subr.mxu0 %v476
    %878 = vmatpush1.msra.mxu0 %v475
    %879 = vmatprep.subr.mxu0 %v480
    %880 = vmatpush1.msra.mxu0 %v479
    %881 = vmatprep.subr.mxu0 %v484
    %882 = vmatpush1.msra.mxu0 %v483
    %883 = vmatprep.subr.mxu0 %v488
    %884 = vmatpush1.msra.mxu0 %v487
    %885 = vmatprep.subr.mxu0 %v492
    %886 = vmatpush1.msra.mxu0 %v491
    %887 = vmatprep.subr.mxu0 %v496
    %888 = vmatpush1.msra.mxu0 %v495
    %889 = vmatprep.subr.mxu0 %v500
    %890 = vmatpush1.msra.mxu0 %v499
    %891 = vmatprep.subr.mxu0 0.0
    %892 = vmatpush1.msra.mxu0 0.0
    %893 = vmatprep.subr.mxu0 0.0
    %894 = vmatpush1.msra.mxu0 0.0
    %895 = vmatprep.subr.mxu0 0.0
    %896 = vmatpush1.msra.mxu0 0.0
    %897 = vmatprep.subr.mxu0 0.0
    %898 = vmatpush1.msra.mxu0 0.0
    %899 = vmatprep.subr.mxu0 0.0
    %900 = vmatpush1.msra.mxu0 0.0
    %901 = vmatprep.subr.mxu0 0.0
    %902 = vmatpush1.msra.mxu0 0.0
    %903 = vmatprep.subr.mxu0 0.0
    %904 = vmatpush1.msra.mxu0 0.0
    %905 = vmatprep.subr.mxu0 0.0
    %906 = vmatpush1.msra.mxu0 0.0
    %907 = vmatprep.subr.mxu0 0.0
    %908 = vmatpush1.msra.mxu0 0.0
    %909 = vmatprep.subr.mxu0 0.0
    %910 = vmatpush1.msra.mxu0 0.0
    %911 = vmatprep.subr.mxu0 0.0
    %912 = vmatpush1.msra.mxu0 0.0
    %913 = vmatprep.subr.mxu0 0.0
    %914 = vmatpush1.msra.mxu0 0.0
    %915 = vmatprep.subr.mxu0 0.0
    %916 = vmatpush1.msra.mxu0 0.0
    %917 = vmatprep.subr.mxu0 0.0
    %918 = vmatpush1.msra.mxu0 0.0
    %919 = vmatprep.subr.mxu0 0.0
    %920 = vmatpush1.msra.mxu0 0.0
    %921 = vmatprep.subr.mxu0 0.0
    %922 = vmatpush1.msra.mxu0 0.0
    %923 = vmatprep.mubr.f32.mxu0 0.0
    %924 = vmatmul.mubr.f32.gmra.mrb[0].mxu0 0.0
    %v925 = vpop.f32.mrb[0].mxu0
    %v926 = vadd.f32 0.0, %v925
    %v927 = vpop.f32.mrb[0].mxu0
    %v928 = vadd.f32 0.0, %v927
    %929 = vdwg.mxu0
    %930 = vmatprep.subr.mxu0 %v442
    %931 = vmatpush1.msra.mxu0 %v441
    %932 = vmatprep.subr.mxu0 %v446
    %933 = vmatpush1.msra.mxu0 %v445
    %934 = vmatprep.subr.mxu0 %v450
    %935 = vmatpush1.msra.mxu0 %v449
    %936 = vmatprep.subr.mxu0 %v454
    %937 = vmatpush1.msra.mxu0 %v453
    %938 = vmatprep.subr.mxu0 %v458
    %939 = vmatpush1.msra.mxu0 %v457
    %940 = vmatprep.subr.mxu0 %v462
    %941 = vmatpush1.msra.mxu0 %v461
    %942 = vmatprep.subr.mxu0 %v466
    %943 = vmatpush1.msra.mxu0 %v465
    %944 = vmatprep.subr.mxu0 %v470
    %945 = vmatpush1.msra.mxu0 %v469
    %946 = vmatprep.subr.mxu0 %v474
    %947 = vmatpush1.msra.mxu0 %v473
    %948 = vmatprep.subr.mxu0 %v478
    %949 = vmatpush1.msra.mxu0 %v477
    %950 = vmatprep.subr.mxu0 %v482
    %951 = vmatpush1.msra.mxu0 %v481
    %952 = vmatprep.subr.mxu0 %v486
    %953 = vmatpush1.msra.mxu0 %v485
    %954 = vmatprep.subr.mxu0 %v490
    %955 = vmatpush1.msra.mxu0 %v489
    %956 = vmatprep.subr.mxu0 %v494
    %957 = vmatpush1.msra.mxu0 %v493
    %958 = vmatprep.subr.mxu0 %v498
    %959 = vmatpush1.msra.mxu0 %v497
    %960 = vmatprep.subr.mxu0 %v502
    %961 = vmatpush1.msra.mxu0 %v501
    %962 = vmatprep.subr.mxu0 0.0
    %963 = vmatpush1.msra.mxu0 0.0
    %964 = vmatprep.subr.mxu0 0.0
    %965 = vmatpush1.msra.mxu0 0.0
    %966 = vmatprep.subr.mxu0 0.0
    %967 = vmatpush1.msra.mxu0 0.0
    %968 = vmatprep.subr.mxu0 0.0
    %969 = vmatpush1.msra.mxu0 0.0
    %970 = vmatprep.subr.mxu0 0.0
    %971 = vmatpush1.msra.mxu0 0.0
    %972 = vmatprep.subr.mxu0 0.0
    %973 = vmatpush1.msra.mxu0 0.0
    %974 = vmatprep.subr.mxu0 0.0
    %975 = vmatpush1.msra.mxu0 0.0
    %976 = vmatprep.subr.mxu0 0.0
    %977 = vmatpush1.msra.mxu0 0.0
    %978 = vmatprep.subr.mxu0 0.0
    %979 = vmatpush1.msra.mxu0 0.0
    %980 = vmatprep.subr.mxu0 0.0
    %981 = vmatpush1.msra.mxu0 0.0
    %982 = vmatprep.subr.mxu0 0.0
    %983 = vmatpush1.msra.mxu0 0.0
    %984 = vmatprep.subr.mxu0 0.0
    %985 = vmatpush1.msra.mxu0 0.0
    %986 = vmatprep.subr.mxu0 0.0
    %987 = vmatpush1.msra.mxu0 0.0
    %988 = vmatprep.subr.mxu0 0.0
    %989 = vmatpush1.msra.mxu0 0.0
    %990 = vmatprep.subr.mxu0 0.0
    %991 = vmatpush1.msra.mxu0 0.0
    %992 = vmatprep.subr.mxu0 0.0
    %993 = vmatpush1.msra.mxu0 0.0
    %994 = vmatprep.mubr.f32.mxu0 0.0
    %995 = vmatmul.mubr.f32.gmra.mrb[0].mxu0 0.0
    %v996 = vpop.f32.mrb[0].mxu0
    %v997 = vadd.f32 0.0, %v996
    %v998 = vpop.f32.mrb[0].mxu0
    %v999 = vadd.f32 0.0, %v998
    %1000 = vdwg.mxu0
    %1001 = vmatprep.subr.mxu0 %v376
    %1002 = vmatpush1.msra.mxu0 %v375
    %1003 = vmatprep.subr.mxu0 %v380
    %1004 = vmatpush1.msra.mxu0 %v379
    %1005 = vmatprep.subr.mxu0 %v384
    %1006 = vmatpush1.msra.mxu0 %v383
    %1007 = vmatprep.subr.mxu0 %v388
    %1008 = vmatpush1.msra.mxu0 %v387
    %1009 = vmatprep.subr.mxu0 %v392
    %1010 = vmatpush1.msra.mxu0 %v391
    %1011 = vmatprep.subr.mxu0 %v396
    %1012 = vmatpush1.msra.mxu0 %v395
    %1013 = vmatprep.subr.mxu0 %v400
    %1014 = vmatpush1.msra.mxu0 %v399
    %1015 = vmatprep.subr.mxu0 %v404
    %1016 = vmatpush1.msra.mxu0 %v403
    %1017 = vmatprep.subr.mxu0 %v408
    %1018 = vmatpush1.msra.mxu0 %v407
    %1019 = vmatprep.subr.mxu0 %v412
    %1020 = vmatpush1.msra.mxu0 %v411
    %1021 = vmatprep.subr.mxu0 %v416
    %1022 = vmatpush1.msra.mxu0 %v415
    %1023 = vmatprep.subr.mxu0 %v420
    %1024 = vmatpush1.msra.mxu0 %v419
    %1025 = vmatprep.subr.mxu0 %v424
    %1026 = vmatpush1.msra.mxu0 %v423
    %1027 = vmatprep.subr.mxu0 %v428
    %1028 = vmatpush1.msra.mxu0 %v427
    %1029 = vmatprep.subr.mxu0 %v432
    %1030 = vmatpush1.msra.mxu0 %v431
    %1031 = vmatprep.subr.mxu0 %v436
    %1032 = vmatpush1.msra.mxu0 %v435
    %1033 = vmatprep.subr.mxu0 0.0
    %1034 = vmatpush1.msra.mxu0 0.0
    %1035 = vmatprep.subr.mxu0 0.0
    %1036 = vmatpush1.msra.mxu0 0.0
    %1037 = vmatprep.subr.mxu0 0.0
    %1038 = vmatpush1.msra.mxu0 0.0
    %1039 = vmatprep.subr.mxu0 0.0
    %1040 = vmatpush1.msra.mxu0 0.0
    %1041 = vmatprep.subr.mxu0 0.0
    %1042 = vmatpush1.msra.mxu0 0.0
    %1043 = vmatprep.subr.mxu0 0.0
    %1044 = vmatpush1.msra.mxu0 0.0
    %1045 = vmatprep.subr.mxu0 0.0
    %1046 = vmatpush1.msra.mxu0 0.0
    %1047 = vmatprep.subr.mxu0 0.0
    %1048 = vmatpush1.msra.mxu0 0.0
    %1049 = vmatprep.subr.mxu0 0.0
    %1050 = vmatpush1.msra.mxu0 0.0
    %1051 = vmatprep.subr.mxu0 0.0
    %1052 = vmatpush1.msra.mxu0 0.0
    %1053 = vmatprep.subr.mxu0 0.0
    %1054 = vmatpush1.msra.mxu0 0.0
    %1055 = vmatprep.subr.mxu0 0.0
    %1056 = vmatpush1.msra.mxu0 0.0
    %1057 = vmatprep.subr.mxu0 0.0
    %1058 = vmatpush1.msra.mxu0 0.0
    %1059 = vmatprep.subr.mxu0 0.0
    %1060 = vmatpush1.msra.mxu0 0.0
    %1061 = vmatprep.subr.mxu0 0.0
    %1062 = vmatpush1.msra.mxu0 0.0
    %1063 = vmatprep.subr.mxu0 0.0
    %1064 = vmatpush1.msra.mxu0 0.0
    %1065 = vmatprep.mubr.f32.mxu0 0.0
    %1066 = vmatmul.mubr.f32.gmra.mrb[0].mxu0 %v673
    %v1067 = vpop.f32.mrb[0].mxu0
    %v1068 = vadd.f32 %v926, %v1067
    %v1069 = vpop.f32.mrb[0].mxu0
    %v1070 = vadd.f32 %v928, %v1069
    %1071 = vdwg.mxu0
    %1072 = vmatprep.subr.mxu0 %v378
    %1073 = vmatpush1.msra.mxu0 %v377
    %1074 = vmatprep.subr.mxu0 %v382
    %1075 = vmatpush1.msra.mxu0 %v381
    %1076 = vmatprep.subr.mxu0 %v386
    %1077 = vmatpush1.msra.mxu0 %v385
    %1078 = vmatprep.subr.mxu0 %v390
    %1079 = vmatpush1.msra.mxu0 %v389
    %1080 = vmatprep.subr.mxu0 %v394
    %1081 = vmatpush1.msra.mxu0 %v393
    %1082 = vmatprep.subr.mxu0 %v398
    %1083 = vmatpush1.msra.mxu0 %v397
    %1084 = vmatprep.subr.mxu0 %v402
    %1085 = vmatpush1.msra.mxu0 %v401
    %1086 = vmatprep.subr.mxu0 %v406
    %1087 = vmatpush1.msra.mxu0 %v405
    %1088 = vmatprep.subr.mxu0 %v410
    %1089 = vmatpush1.msra.mxu0 %v409
    %1090 = vmatprep.subr.mxu0 %v414
    %1091 = vmatpush1.msra.mxu0 %v413
    %1092 = vmatprep.subr.mxu0 %v418
    %1093 = vmatpush1.msra.mxu0 %v417
    %1094 = vmatprep.subr.mxu0 %v422
    %1095 = vmatpush1.msra.mxu0 %v421
    %1096 = vmatprep.subr.mxu0 %v426
    %1097 = vmatpush1.msra.mxu0 %v425
    %1098 = vmatprep.subr.mxu0 %v430
    %1099 = vmatpush1.msra.mxu0 %v429
    %1100 = vmatprep.subr.mxu0 %v434
    %1101 = vmatpush1.msra.mxu0 %v433
    %1102 = vmatprep.subr.mxu0 %v438
    %1103 = vmatpush1.msra.mxu0 %v437
    %1104 = vmatprep.subr.mxu0 0.0
    %1105 = vmatpush1.msra.mxu0 0.0
    %1106 = vmatprep.subr.mxu0 0.0
    %1107 = vmatpush1.msra.mxu0 0.0
    %1108 = vmatprep.subr.mxu0 0.0
    %1109 = vmatpush1.msra.mxu0 0.0
    %1110 = vmatprep.subr.mxu0 0.0
    %1111 = vmatpush1.msra.mxu0 0.0
    %1112 = vmatprep.subr.mxu0 0.0
    %1113 = vmatpush1.msra.mxu0 0.0
    %1114 = vmatprep.subr.mxu0 0.0
    %1115 = vmatpush1.msra.mxu0 0.0
    %1116 = vmatprep.subr.mxu0 0.0
    %1117 = vmatpush1.msra.mxu0 0.0
    %1118 = vmatprep.subr.mxu0 0.0
    %1119 = vmatpush1.msra.mxu0 0.0
    %1120 = vmatprep.subr.mxu0 0.0
    %1121 = vmatpush1.msra.mxu0 0.0
    %1122 = vmatprep.subr.mxu0 0.0
    %1123 = vmatpush1.msra.mxu0 0.0
    %1124 = vmatprep.subr.mxu0 0.0
    %1125 = vmatpush1.msra.mxu0 0.0
    %1126 = vmatprep.subr.mxu0 0.0
    %1127 = vmatpush1.msra.mxu0 0.0
    %1128 = vmatprep.subr.mxu0 0.0
    %1129 = vmatpush1.msra.mxu0 0.0
    %1130 = vmatprep.subr.mxu0 0.0
    %1131 = vmatpush1.msra.mxu0 0.0
    %1132 = vmatprep.subr.mxu0 0.0
    %1133 = vmatpush1.msra.mxu0 0.0
    %1134 = vmatprep.subr.mxu0 0.0
    %1135 = vmatpush1.msra.mxu0 0.0
    %1136 = vmatprep.mubr.f32.mxu0 0.0
    %1137 = vmatmul.mubr.f32.gmra.mrb[0].mxu0 %v673
    %v1138 = vpop.f32.mrb[0].mxu0
    %v1139 = vadd.f32 %v997, %v1138
    %v1140 = vpop.f32.mrb[0].mxu0
    %v1141 = vadd.f32 %v999, %v1140
    %1142 = vdwg.mxu0
    %v1144 = vlaneseq
    %v1145 = vshrl.u32 %v1144, 7
    %v1146 = vsub.s32 0, %v1145
    %v1147 = vrot.slane %v503, %v1146
    %v1148 = vlaneseq
    %v1149 = vshrl.u32 %v1148, 7
    %v1150 = vsub.s32 1, %v1149
    %v1151 = vrot.slane %v503, %v1150
    %v1152 = vlaneseq
    %v1153 = vshrl.u32 %v1152, 7
    %v1154 = vsub.s32 2, %v1153
    %v1155 = vrot.slane %v503, %v1154
    %v1156 = vlaneseq
    %v1157 = vshrl.u32 %v1156, 7
    %v1158 = vsub.s32 3, %v1157
    %v1159 = vrot.slane %v503, %v1158
    %v1164 = vadd.f32 %v1068, %v1147
    %v1165 = vadd.f32 %v1070, %v1151
    %v1166 = vadd.f32 %v1139, %v1155
    %v1167 = vadd.f32 %v1141, %v1159
    %v1168 = vxor.u32 %v1164, 2147483648
    %v1169 = vxor.u32 %v1165, 2147483648
    %v1170 = vxor.u32 %v1166, 2147483648
    %v1171 = vmul.f32 %v1168, 1.442695
    %v1172 = vpow.pop %v1171
    %v1173 = vmul.f32 %v1169, 1.442695
    %v1174 = vpow.pop %v1173
    %v1175 = vmul.f32 %v1170, 1.442695
    %v1176 = vpow.pop %v1175
    %v1177 = vadd.f32 %v1172, 1.0
    %v1178 = vadd.f32 %v1174, 1.0
    %v1179 = vadd.f32 %v1176, 1.0
    %v1180 = vrcp.pop %v1177
    %v1181 = vmul.f32 1.0, %v1180
    %v1182 = vrcp.pop %v1178
    %v1183 = vmul.f32 1.0, %v1182
    %v1184 = vrcp.pop %v1179
    %v1185 = vmul.f32 1.0, %v1184
    %v1186 = vtanh.pop %v1167
    %v1187 = vmul.f32 %v1183, 0.0
    %v1188 = vmul.f32 %v1181, %v1186
    %v1189 = vadd.f32 %v1187, %v1188
    %v1190 = vtanh.pop %v1189
    %v1191 = vmul.f32 %v1185, %v1190
    %v1193 = vrot.slane %v858, 2
    %1195 = vmatprep.subr.mxu0 %v312
    %1196 = vmatpush1.msra.mxu0 %v311
    %1197 = vmatprep.subr.mxu0 %v316
    %1198 = vmatpush1.msra.mxu0 %v315
    %1199 = vmatprep.subr.mxu0 %v320
    %1200 = vmatpush1.msra.mxu0 %v319
    %1201 = vmatprep.subr.mxu0 %v324
    %1202 = vmatpush1.msra.mxu0 %v323
    %1203 = vmatprep.subr.mxu0 %v328
    %1204 = vmatpush1.msra.mxu0 %v327
    %1205 = vmatprep.subr.mxu0 %v332
    %1206 = vmatpush1.msra.mxu0 %v331
    %1207 = vmatprep.subr.mxu0 %v336
    %1208 = vmatpush1.msra.mxu0 %v335
    %1209 = vmatprep.subr.mxu0 %v340
    %1210 = vmatpush1.msra.mxu0 %v339
    %1211 = vmatprep.subr.mxu0 %v344
    %1212 = vmatpush1.msra.mxu0 %v343
    %1213 = vmatprep.subr.mxu0 %v348
    %1214 = vmatpush1.msra.mxu0 %v347
    %1215 = vmatprep.subr.mxu0 %v352
    %1216 = vmatpush1.msra.mxu0 %v351
    %1217 = vmatprep.subr.mxu0 %v356
    %1218 = vmatpush1.msra.mxu0 %v355
    %1219 = vmatprep.subr.mxu0 %v360
    %1220 = vmatpush1.msra.mxu0 %v359
    %1221 = vmatprep.subr.mxu0 %v364
    %1222 = vmatpush1.msra.mxu0 %v363
    %1223 = vmatprep.subr.mxu0 %v368
    %1224 = vmatpush1.msra.mxu0 %v367
    %1225 = vmatprep.subr.mxu0 %v372
    %1226 = vmatpush1.msra.mxu0 %v371
    %1227 = vmatprep.subr.mxu0 0.0
    %1228 = vmatpush1.msra.mxu0 0.0
    %1229 = vmatprep.subr.mxu0 0.0
    %1230 = vmatpush1.msra.mxu0 0.0
    %1231 = vmatprep.subr.mxu0 0.0
    %1232 = vmatpush1.msra.mxu0 0.0
    %1233 = vmatprep.subr.mxu0 0.0
    %1234 = vmatpush1.msra.mxu0 0.0
    %1235 = vmatprep.subr.mxu0 0.0
    %1236 = vmatpush1.msra.mxu0 0.0
    %1237 = vmatprep.subr.mxu0 0.0
    %1238 = vmatpush1.msra.mxu0 0.0
    %1239 = vmatprep.subr.mxu0 0.0
    %1240 = vmatpush1.msra.mxu0 0.0
    %1241 = vmatprep.subr.mxu0 0.0
    %1242 = vmatpush1.msra.mxu0 0.0
    %1243 = vmatprep.subr.mxu0 0.0
    %1244 = vmatpush1.msra.mxu0 0.0
    %1245 = vmatprep.subr.mxu0 0.0
    %1246 = vmatpush1.msra.mxu0 0.0
    %1247 = vmatprep.subr.mxu0 0.0
    %1248 = vmatpush1.msra.mxu0 0.0
    %1249 = vmatprep.subr.mxu0 0.0
    %1250 = vmatpush1.msra.mxu0 0.0
    %1251 = vmatprep.subr.mxu0 0.0
    %1252 = vmatpush1.msra.mxu0 0.0
    %1253 = vmatprep.subr.mxu0 0.0
    %1254 = vmatpush1.msra.mxu0 0.0
    %1255 = vmatprep.subr.mxu0 0.0
    %1256 = vmatpush1.msra.mxu0 0.0
    %1257 = vmatprep.subr.mxu0 0.0
    %1258 = vmatpush1.msra.mxu0 0.0
    %1259 = vmatprep.mubr.f32.mxu0 0.0
    %1260 = vmatmul.mubr.f32.gmra.mrb[0].mxu0 %v1193
    %v1261 = vpop.f32.mrb[0].mxu0
    %v1262 = vadd.f32 0.0, %v1261
    %v1263 = vpop.f32.mrb[0].mxu0
    %v1264 = vadd.f32 0.0, %v1263
    %1265 = vdwg.mxu0
    %1266 = vmatprep.subr.mxu0 %v314
    %1267 = vmatpush1.msra.mxu0 %v313
    %1268 = vmatprep.subr.mxu0 %v318
    %1269 = vmatpush1.msra.mxu0 %v317
    %1270 = vmatprep.subr.mxu0 %v322
    %1271 = vmatpush1.msra.mxu0 %v321
    %1272 = vmatprep.subr.mxu0 %v326
    %1273 = vmatpush1.msra.mxu0 %v325
    %1274 = vmatprep.subr.mxu0 %v330
    %1275 = vmatpush1.msra.mxu0 %v329
    %1276 = vmatprep.subr.mxu0 %v334
    %1277 = vmatpush1.msra.mxu0 %v333
    %1278 = vmatprep.subr.mxu0 %v338
    %1279 = vmatpush1.msra.mxu0 %v337
    %1280 = vmatprep.subr.mxu0 %v342
    %1281 = vmatpush1.msra.mxu0 %v341
    %1282 = vmatprep.subr.mxu0 %v346
    %1283 = vmatpush1.msra.mxu0 %v345
    %1284 = vmatprep.subr.mxu0 %v350
    %1285 = vmatpush1.msra.mxu0 %v349
    %1286 = vmatprep.subr.mxu0 %v354
    %1287 = vmatpush1.msra.mxu0 %v353
    %1288 = vmatprep.subr.mxu0 %v358
    %1289 = vmatpush1.msra.mxu0 %v357
    %1290 = vmatprep.subr.mxu0 %v362
    %1291 = vmatpush1.msra.mxu0 %v361
    %1292 = vmatprep.subr.mxu0 %v366
    %1293 = vmatpush1.msra.mxu0 %v365
    %1294 = vmatprep.subr.mxu0 %v370
    %1295 = vmatpush1.msra.mxu0 %v369
    %1296 = vmatprep.subr.mxu0 %v374
    %1297 = vmatpush1.msra.mxu0 %v373
    %1298 = vmatprep.subr.mxu0 0.0
    %1299 = vmatpush1.msra.mxu0 0.0
    %1300 = vmatprep.subr.mxu0 0.0
    %1301 = vmatpush1.msra.mxu0 0.0
    %1302 = vmatprep.subr.mxu0 0.0
    %1303 = vmatpush1.msra.mxu0 0.0
    %1304 = vmatprep.subr.mxu0 0.0
    %1305 = vmatpush1.msra.mxu0 0.0
    %1306 = vmatprep.subr.mxu0 0.0
    %1307 = vmatpush1.msra.mxu0 0.0
    %1308 = vmatprep.subr.mxu0 0.0
    %1309 = vmatpush1.msra.mxu0 0.0
    %1310 = vmatprep.subr.mxu0 0.0
    %1311 = vmatpush1.msra.mxu0 0.0
    %1312 = vmatprep.subr.mxu0 0.0
    %1313 = vmatpush1.msra.mxu0 0.0
    %1314 = vmatprep.subr.mxu0 0.0
    %1315 = vmatpush1.msra.mxu0 0.0
    %1316 = vmatprep.subr.mxu0 0.0
    %1317 = vmatpush1.msra.mxu0 0.0
    %1318 = vmatprep.subr.mxu0 0.0
    %1319 = vmatpush1.msra.mxu0 0.0
    %1320 = vmatprep.subr.mxu0 0.0
    %1321 = vmatpush1.msra.mxu0 0.0
    %1322 = vmatprep.subr.mxu0 0.0
    %1323 = vmatpush1.msra.mxu0 0.0
    %1324 = vmatprep.subr.mxu0 0.0
    %1325 = vmatpush1.msra.mxu0 0.0
    %1326 = vmatprep.subr.mxu0 0.0
    %1327 = vmatpush1.msra.mxu0 0.0
    %1328 = vmatprep.subr.mxu0 0.0
    %1329 = vmatpush1.msra.mxu0 0.0
    %1330 = vmatprep.mubr.f32.mxu0 0.0
    %1331 = vmatmul.mubr.f32.gmra.mrb[0].mxu0 %v1193
    %v1332 = vpop.f32.mrb[0].mxu0
    %v1333 = vadd.f32 0.0, %v1332
    %v1334 = vpop.f32.mrb[0].mxu0
    %v1335 = vadd.f32 0.0, %v1334
    %1336 = vdwg.mxu0
    %v1341 = vrot.slane %v1262, 4
    %v1342 = vrot.slane %v1264, 4
    %v1343 = vrot.slane %v1333, 4
    %v1344 = vrot.slane %v1335, 4
    %v1349 = vadd.f32 %v224, %v1341
    %v1350 = vadd.f32 %v226, %v1342
    %v1351 = vadd.f32 %v301, %v1343
    %v1352 = vadd.f32 %v303, %v1344
    %v1353 = vxor.u32 %v1349, 2147483648
    %v1354 = vxor.u32 %v1350, 2147483648
    %v1355 = vxor.u32 %v1351, 2147483648
    %v1356 = vmul.f32 %v1353, 1.442695
    %v1357 = vpow.pop %v1356
    %v1358 = vmul.f32 %v1354, 1.442695
    %v1359 = vpow.pop %v1358
    %v1360 = vmul.f32 %v1355, 1.442695
    %v1361 = vpow.pop %v1360
    %v1362 = vadd.f32 %v1357, 1.0
    %v1363 = vadd.f32 %v1359, 1.0
    %v1364 = vadd.f32 %v1361, 1.0
    %v1365 = vrcp.pop %v1362
    %v1366 = vmul.f32 1.0, %v1365
    %v1367 = vrcp.pop %v1363
    %v1368 = vmul.f32 1.0, %v1367
    %v1369 = vrcp.pop %v1364
    %v1370 = vmul.f32 1.0, %v1369
    %v1371 = vtanh.pop %v1352
    %v1373 = vrot.slane %v856, 6
    %v1375 = vmul.f32 %v1368, %v1373
    %v1376 = vmul.f32 %v1366, %v1371
    %v1377 = vadd.f32 %v1375, %v1376
    %v1378 = vtanh.pop %v1377
    %v1379 = vmul.f32 %v1370, %v1378
    %1380 = vmatprep.subr.mxu0 %v440
    %1381 = vmatpush1.msra.mxu0 %v439
    %1382 = vmatprep.subr.mxu0 %v444
    %1383 = vmatpush1.msra.mxu0 %v443
    %1384 = vmatprep.subr.mxu0 %v448
    %1385 = vmatpush1.msra.mxu0 %v447
    %1386 = vmatprep.subr.mxu0 %v452
    %1387 = vmatpush1.msra.mxu0 %v451
    %1388 = vmatprep.subr.mxu0 %v456
    %1389 = vmatpush1.msra.mxu0 %v455
    %1390 = vmatprep.subr.mxu0 %v460
    %1391 = vmatpush1.msra.mxu0 %v459
    %1392 = vmatprep.subr.mxu0 %v464
    %1393 = vmatpush1.msra.mxu0 %v463
    %1394 = vmatprep.subr.mxu0 %v468
    %1395 = vmatpush1.msra.mxu0 %v467
    %1396 = vmatprep.subr.mxu0 %v472
    %1397 = vmatpush1.msra.mxu0 %v471
    %1398 = vmatprep.subr.mxu0 %v476
    %1399 = vmatpush1.msra.mxu0 %v475
    %1400 = vmatprep.subr.mxu0 %v480
    %1401 = vmatpush1.msra.mxu0 %v479
    %1402 = vmatprep.subr.mxu0 %v484
    %1403 = vmatpush1.msra.mxu0 %v483
    %1404 = vmatprep.subr.mxu0 %v488
    %1405 = vmatpush1.msra.mxu0 %v487
    %1406 = vmatprep.subr.mxu0 %v492
    %1407 = vmatpush1.msra.mxu0 %v491
    %1408 = vmatprep.subr.mxu0 %v496
    %1409 = vmatpush1.msra.mxu0 %v495
    %1410 = vmatprep.subr.mxu0 %v500
    %1411 = vmatpush1.msra.mxu0 %v499
    %1412 = vmatprep.subr.mxu0 0.0
    %1413 = vmatpush1.msra.mxu0 0.0
    %1414 = vmatprep.subr.mxu0 0.0
    %1415 = vmatpush1.msra.mxu0 0.0
    %1416 = vmatprep.subr.mxu0 0.0
    %1417 = vmatpush1.msra.mxu0 0.0
    %1418 = vmatprep.subr.mxu0 0.0
    %1419 = vmatpush1.msra.mxu0 0.0
    %1420 = vmatprep.subr.mxu0 0.0
    %1421 = vmatpush1.msra.mxu0 0.0
    %1422 = vmatprep.subr.mxu0 0.0
    %1423 = vmatpush1.msra.mxu0 0.0
    %1424 = vmatprep.subr.mxu0 0.0
    %1425 = vmatpush1.msra.mxu0 0.0
    %1426 = vmatprep.subr.mxu0 0.0
    %1427 = vmatpush1.msra.mxu0 0.0
    %1428 = vmatprep.subr.mxu0 0.0
    %1429 = vmatpush1.msra.mxu0 0.0
    %1430 = vmatprep.subr.mxu0 0.0
    %1431 = vmatpush1.msra.mxu0 0.0
    %1432 = vmatprep.subr.mxu0 0.0
    %1433 = vmatpush1.msra.mxu0 0.0
    %1434 = vmatprep.subr.mxu0 0.0
    %1435 = vmatpush1.msra.mxu0 0.0
    %1436 = vmatprep.subr.mxu0 0.0
    %1437 = vmatpush1.msra.mxu0 0.0
    %1438 = vmatprep.subr.mxu0 0.0
    %1439 = vmatpush1.msra.mxu0 0.0
    %1440 = vmatprep.subr.mxu0 0.0
    %1441 = vmatpush1.msra.mxu0 0.0
    %1442 = vmatprep.subr.mxu0 0.0
    %1443 = vmatpush1.msra.mxu0 0.0
    %1444 = vmatprep.mubr.f32.mxu0 0.0
    %1445 = vmatmul.mubr.f32.gmra.mrb[0].mxu0 %v1191
    %v1446 = vpop.f32.mrb[0].mxu0
    %v1447 = vadd.f32 0.0, %v1446
    %v1448 = vpop.f32.mrb[0].mxu0
    %v1449 = vadd.f32 0.0, %v1448
    %1450 = vdwg.mxu0
    %1451 = vmatprep.subr.mxu0 %v442
    %1452 = vmatpush1.msra.mxu0 %v441
    %1453 = vmatprep.subr.mxu0 %v446
    %1454 = vmatpush1.msra.mxu0 %v445
    %1455 = vmatprep.subr.mxu0 %v450
    %1456 = vmatpush1.msra.mxu0 %v449
    %1457 = vmatprep.subr.mxu0 %v454
    %1458 = vmatpush1.msra.mxu0 %v453
    %1459 = vmatprep.subr.mxu0 %v458
    %1460 = vmatpush1.msra.mxu0 %v457
    %1461 = vmatprep.subr.mxu0 %v462
    %1462 = vmatpush1.msra.mxu0 %v461
    %1463 = vmatprep.subr.mxu0 %v466
    %1464 = vmatpush1.msra.mxu0 %v465
    %1465 = vmatprep.subr.mxu0 %v470
    %1466 = vmatpush1.msra.mxu0 %v469
    %1467 = vmatprep.subr.mxu0 %v474
    %1468 = vmatpush1.msra.mxu0 %v473
    %1469 = vmatprep.subr.mxu0 %v478
    %1470 = vmatpush1.msra.mxu0 %v477
    %1471 = vmatprep.subr.mxu0 %v482
    %1472 = vmatpush1.msra.mxu0 %v481
    %1473 = vmatprep.subr.mxu0 %v486
    %1474 = vmatpush1.msra.mxu0 %v485
    %1475 = vmatprep.subr.mxu0 %v490
    %1476 = vmatpush1.msra.mxu0 %v489
    %1477 = vmatprep.subr.mxu0 %v494
    %1478 = vmatpush1.msra.mxu0 %v493
    %1479 = vmatprep.subr.mxu0 %v498
    %1480 = vmatpush1.msra.mxu0 %v497
    %1481 = vmatprep.subr.mxu0 %v502
    %1482 = vmatpush1.msra.mxu0 %v501
    %1483 = vmatprep.subr.mxu0 0.0
    %1484 = vmatpush1.msra.mxu0 0.0
    %1485 = vmatprep.subr.mxu0 0.0
    %1486 = vmatpush1.msra.mxu0 0.0
    %1487 = vmatprep.subr.mxu0 0.0
    %1488 = vmatpush1.msra.mxu0 0.0
    %1489 = vmatprep.subr.mxu0 0.0
    %1490 = vmatpush1.msra.mxu0 0.0
    %1491 = vmatprep.subr.mxu0 0.0
    %1492 = vmatpush1.msra.mxu0 0.0
    %1493 = vmatprep.subr.mxu0 0.0
    %1494 = vmatpush1.msra.mxu0 0.0
    %1495 = vmatprep.subr.mxu0 0.0
    %1496 = vmatpush1.msra.mxu0 0.0
    %1497 = vmatprep.subr.mxu0 0.0
    %1498 = vmatpush1.msra.mxu0 0.0
    %1499 = vmatprep.subr.mxu0 0.0
    %1500 = vmatpush1.msra.mxu0 0.0
    %1501 = vmatprep.subr.mxu0 0.0
    %1502 = vmatpush1.msra.mxu0 0.0
    %1503 = vmatprep.subr.mxu0 0.0
    %1504 = vmatpush1.msra.mxu0 0.0
    %1505 = vmatprep.subr.mxu0 0.0
    %1506 = vmatpush1.msra.mxu0 0.0
    %1507 = vmatprep.subr.mxu0 0.0
    %1508 = vmatpush1.msra.mxu0 0.0
    %1509 = vmatprep.subr.mxu0 0.0
    %1510 = vmatpush1.msra.mxu0 0.0
    %1511 = vmatprep.subr.mxu0 0.0
    %1512 = vmatpush1.msra.mxu0 0.0
    %1513 = vmatprep.subr.mxu0 0.0
    %1514 = vmatpush1.msra.mxu0 0.0
    %1515 = vmatprep.mubr.f32.mxu0 0.0
    %1516 = vmatmul.mubr.f32.gmra.mrb[0].mxu0 %v1191
    %v1517 = vpop.f32.mrb[0].mxu0
    %v1518 = vadd.f32 0.0, %v1517
    %v1519 = vpop.f32.mrb[0].mxu0
    %v1520 = vadd.f32 0.0, %v1519
    %1521 = vdwg.mxu0
    %1522 = vmatprep.subr.mxu0 %v376
    %1523 = vmatpush1.msra.mxu0 %v375
    %1524 = vmatprep.subr.mxu0 %v380
    %1525 = vmatpush1.msra.mxu0 %v379
    %1526 = vmatprep.subr.mxu0 %v384
    %1527 = vmatpush1.msra.mxu0 %v383
    %1528 = vmatprep.subr.mxu0 %v388
    %1529 = vmatpush1.msra.mxu0 %v387
    %1530 = vmatprep.subr.mxu0 %v392
    %1531 = vmatpush1.msra.mxu0 %v391
    %1532 = vmatprep.subr.mxu0 %v396
    %1533 = vmatpush1.msra.mxu0 %v395
    %1534 = vmatprep.subr.mxu0 %v400
    %1535 = vmatpush1.msra.mxu0 %v399
    %1536 = vmatprep.subr.mxu0 %v404
    %1537 = vmatpush1.msra.mxu0 %v403
    %1538 = vmatprep.subr.mxu0 %v408
    %1539 = vmatpush1.msra.mxu0 %v407
    %1540 = vmatprep.subr.mxu0 %v412
    %1541 = vmatpush1.msra.mxu0 %v411
    %1542 = vmatprep.subr.mxu0 %v416
    %1543 = vmatpush1.msra.mxu0 %v415
    %1544 = vmatprep.subr.mxu0 %v420
    %1545 = vmatpush1.msra.mxu0 %v419
    %1546 = vmatprep.subr.mxu0 %v424
    %1547 = vmatpush1.msra.mxu0 %v423
    %1548 = vmatprep.subr.mxu0 %v428
    %1549 = vmatpush1.msra.mxu0 %v427
    %1550 = vmatprep.subr.mxu0 %v432
    %1551 = vmatpush1.msra.mxu0 %v431
    %1552 = vmatprep.subr.mxu0 %v436
    %1553 = vmatpush1.msra.mxu0 %v435
    %1554 = vmatprep.subr.mxu0 0.0
    %1555 = vmatpush1.msra.mxu0 0.0
    %1556 = vmatprep.subr.mxu0 0.0
    %1557 = vmatpush1.msra.mxu0 0.0
    %1558 = vmatprep.subr.mxu0 0.0
    %1559 = vmatpush1.msra.mxu0 0.0
    %1560 = vmatprep.subr.mxu0 0.0
    %1561 = vmatpush1.msra.mxu0 0.0
    %1562 = vmatprep.subr.mxu0 0.0
    %1563 = vmatpush1.msra.mxu0 0.0
    %1564 = vmatprep.subr.mxu0 0.0
    %1565 = vmatpush1.msra.mxu0 0.0
    %1566 = vmatprep.subr.mxu0 0.0
    %1567 = vmatpush1.msra.mxu0 0.0
    %1568 = vmatprep.subr.mxu0 0.0
    %1569 = vmatpush1.msra.mxu0 0.0
    %1570 = vmatprep.subr.mxu0 0.0
    %1571 = vmatpush1.msra.mxu0 0.0
    %1572 = vmatprep.subr.mxu0 0.0
    %1573 = vmatpush1.msra.mxu0 0.0
    %1574 = vmatprep.subr.mxu0 0.0
    %1575 = vmatpush1.msra.mxu0 0.0
    %1576 = vmatprep.subr.mxu0 0.0
    %1577 = vmatpush1.msra.mxu0 0.0
    %1578 = vmatprep.subr.mxu0 0.0
    %1579 = vmatpush1.msra.mxu0 0.0
    %1580 = vmatprep.subr.mxu0 0.0
    %1581 = vmatpush1.msra.mxu0 0.0
    %1582 = vmatprep.subr.mxu0 0.0
    %1583 = vmatpush1.msra.mxu0 0.0
    %1584 = vmatprep.subr.mxu0 0.0
    %1585 = vmatpush1.msra.mxu0 0.0
    %1586 = vmatprep.mubr.f32.mxu0 0.0
    %1587 = vmatmul.mubr.f32.gmra.mrb[0].mxu0 %v1193
    %v1588 = vpop.f32.mrb[0].mxu0
    %v1589 = vadd.f32 %v1447, %v1588
    %v1590 = vpop.f32.mrb[0].mxu0
    %v1591 = vadd.f32 %v1449, %v1590
    %1592 = vdwg.mxu0
    %1593 = vmatprep.subr.mxu0 %v378
    %1594 = vmatpush1.msra.mxu0 %v377
    %1595 = vmatprep.subr.mxu0 %v382
    %1596 = vmatpush1.msra.mxu0 %v381
    %1597 = vmatprep.subr.mxu0 %v386
    %1598 = vmatpush1.msra.mxu0 %v385
    %1599 = vmatprep.subr.mxu0 %v390
    %1600 = vmatpush1.msra.mxu0 %v389
    %1601 = vmatprep.subr.mxu0 %v394
    %1602 = vmatpush1.msra.mxu0 %v393
    %1603 = vmatprep.subr.mxu0 %v398
    %1604 = vmatpush1.msra.mxu0 %v397
    %1605 = vmatprep.subr.mxu0 %v402
    %1606 = vmatpush1.msra.mxu0 %v401
    %1607 = vmatprep.subr.mxu0 %v406
    %1608 = vmatpush1.msra.mxu0 %v405
    %1609 = vmatprep.subr.mxu0 %v410
    %1610 = vmatpush1.msra.mxu0 %v409
    %1611 = vmatprep.subr.mxu0 %v414
    %1612 = vmatpush1.msra.mxu0 %v413
    %1613 = vmatprep.subr.mxu0 %v418
    %1614 = vmatpush1.msra.mxu0 %v417
    %1615 = vmatprep.subr.mxu0 %v422
    %1616 = vmatpush1.msra.mxu0 %v421
    %1617 = vmatprep.subr.mxu0 %v426
    %1618 = vmatpush1.msra.mxu0 %v425
    %1619 = vmatprep.subr.mxu0 %v430
    %1620 = vmatpush1.msra.mxu0 %v429
    %1621 = vmatprep.subr.mxu0 %v434
    %1622 = vmatpush1.msra.mxu0 %v433
    %1623 = vmatprep.subr.mxu0 %v438
    %1624 = vmatpush1.msra.mxu0 %v437
    %1625 = vmatprep.subr.mxu0 0.0
    %1626 = vmatpush1.msra.mxu0 0.0
    %1627 = vmatprep.subr.mxu0 0.0
    %1628 = vmatpush1.msra.mxu0 0.0
    %1629 = vmatprep.subr.mxu0 0.0
    %1630 = vmatpush1.msra.mxu0 0.0
    %1631 = vmatprep.subr.mxu0 0.0
    %1632 = vmatpush1.msra.mxu0 0.0
    %1633 = vmatprep.subr.mxu0 0.0
    %1634 = vmatpush1.msra.mxu0 0.0
    %1635 = vmatprep.subr.mxu0 0.0
    %1636 = vmatpush1.msra.mxu0 0.0
    %1637 = vmatprep.subr.mxu0 0.0
    %1638 = vmatpush1.msra.mxu0 0.0
    %1639 = vmatprep.subr.mxu0 0.0
    %1640 = vmatpush1.msra.mxu0 0.0
    %1641 = vmatprep.subr.mxu0 0.0
    %1642 = vmatpush1.msra.mxu0 0.0
    %1643 = vmatprep.subr.mxu0 0.0
    %1644 = vmatpush1.msra.mxu0 0.0
    %1645 = vmatprep.subr.mxu0 0.0
    %1646 = vmatpush1.msra.mxu0 0.0
    %1647 = vmatprep.subr.mxu0 0.0
    %1648 = vmatpush1.msra.mxu0 0.0
    %1649 = vmatprep.subr.mxu0 0.0
    %1650 = vmatpush1.msra.mxu0 0.0
    %1651 = vmatprep.subr.mxu0 0.0
    %1652 = vmatpush1.msra.mxu0 0.0
    %1653 = vmatprep.subr.mxu0 0.0
    %1654 = vmatpush1.msra.mxu0 0.0
    %1655 = vmatprep.subr.mxu0 0.0
    %1656 = vmatpush1.msra.mxu0 0.0
    %1657 = vmatprep.mubr.f32.mxu0 0.0
    %1658 = vmatmul.mubr.f32.gmra.mrb[0].mxu0 %v1193
    %v1659 = vpop.f32.mrb[0].mxu0
    %v1660 = vadd.f32 %v1518, %v1659
    %v1661 = vpop.f32.mrb[0].mxu0
    %v1662 = vadd.f32 %v1520, %v1661
    %1663 = vdwg.mxu0
    %v1664 = vadd.f32 %v1589, %v1147
    %v1665 = vadd.f32 %v1591, %v1151
    %v1666 = vadd.f32 %v1660, %v1155
    %v1667 = vadd.f32 %v1662, %v1159
    %v1668 = vxor.u32 %v1664, 2147483648
    %v1669 = vxor.u32 %v1665, 2147483648
    %v1670 = vxor.u32 %v1666, 2147483648
    %v1671 = vmul.f32 %v1668, 1.442695
    %v1672 = vpow.pop %v1671
    %v1673 = vmul.f32 %v1669, 1.442695
    %v1674 = vpow.pop %v1673
    %v1675 = vmul.f32 %v1670, 1.442695
    %v1676 = vpow.pop %v1675
    %v1677 = vadd.f32 %v1672, 1.0
    %v1678 = vadd.f32 %v1674, 1.0
    %v1679 = vadd.f32 %v1676, 1.0
    %v1680 = vrcp.pop %v1677
    %v1681 = vmul.f32 1.0, %v1680
    %v1682 = vrcp.pop %v1678
    %v1683 = vmul.f32 1.0, %v1682
    %v1684 = vrcp.pop %v1679
    %v1685 = vmul.f32 1.0, %v1684
    %v1686 = vtanh.pop %v1667
    %v1687 = vmul.f32 %v1683, %v1189
    %v1688 = vmul.f32 %v1681, %v1686
    %v1689 = vadd.f32 %v1687, %v1688
    %v1690 = vtanh.pop %v1689
    %v1691 = vmul.f32 %v1685, %v1690
    %v1693 = vrot.slane %v1379, 4
    %1695 = vmatprep.subr.mxu0 %v312
    %1696 = vmatpush1.msra.mxu0 %v311
    %1697 = vmatprep.subr.mxu0 %v316
    %1698 = vmatpush1.msra.mxu0 %v315
    %1699 = vmatprep.subr.mxu0 %v320
    %1700 = vmatpush1.msra.mxu0 %v319
    %1701 = vmatprep.subr.mxu0 %v324
    %1702 = vmatpush1.msra.mxu0 %v323
    %1703 = vmatprep.subr.mxu0 %v328
    %1704 = vmatpush1.msra.mxu0 %v327
    %1705 = vmatprep.subr.mxu0 %v332
    %1706 = vmatpush1.msra.mxu0 %v331
    %1707 = vmatprep.subr.mxu0 %v336
    %1708 = vmatpush1.msra.mxu0 %v335
    %1709 = vmatprep.subr.mxu0 %v340
    %1710 = vmatpush1.msra.mxu0 %v339
    %1711 = vmatprep.subr.mxu0 %v344
    %1712 = vmatpush1.msra.mxu0 %v343
    %1713 = vmatprep.subr.mxu0 %v348
    %1714 = vmatpush1.msra.mxu0 %v347
    %1715 = vmatprep.subr.mxu0 %v352
    %1716 = vmatpush1.msra.mxu0 %v351
    %1717 = vmatprep.subr.mxu0 %v356
    %1718 = vmatpush1.msra.mxu0 %v355
    %1719 = vmatprep.subr.mxu0 %v360
    %1720 = vmatpush1.msra.mxu0 %v359
    %1721 = vmatprep.subr.mxu0 %v364
    %1722 = vmatpush1.msra.mxu0 %v363
    %1723 = vmatprep.subr.mxu0 %v368
    %1724 = vmatpush1.msra.mxu0 %v367
    %1725 = vmatprep.subr.mxu0 %v372
    %1726 = vmatpush1.msra.mxu0 %v371
    %1727 = vmatprep.subr.mxu0 0.0
    %1728 = vmatpush1.msra.mxu0 0.0
    %1729 = vmatprep.subr.mxu0 0.0
    %1730 = vmatpush1.msra.mxu0 0.0
    %1731 = vmatprep.subr.mxu0 0.0
    %1732 = vmatpush1.msra.mxu0 0.0
    %1733 = vmatprep.subr.mxu0 0.0
    %1734 = vmatpush1.msra.mxu0 0.0
    %1735 = vmatprep.subr.mxu0 0.0
    %1736 = vmatpush1.msra.mxu0 0.0
    %1737 = vmatprep.subr.mxu0 0.0
    %1738 = vmatpush1.msra.mxu0 0.0
    %1739 = vmatprep.subr.mxu0 0.0
    %1740 = vmatpush1.msra.mxu0 0.0
    %1741 = vmatprep.subr.mxu0 0.0
    %1742 = vmatpush1.msra.mxu0 0.0
    %1743 = vmatprep.subr.mxu0 0.0
    %1744 = vmatpush1.msra.mxu0 0.0
    %1745 = vmatprep.subr.mxu0 0.0
    %1746 = vmatpush1.msra.mxu0 0.0
    %1747 = vmatprep.subr.mxu0 0.0
    %1748 = vmatpush1.msra.mxu0 0.0
    %1749 = vmatprep.subr.mxu0 0.0
    %1750 = vmatpush1.msra.mxu0 0.0
    %1751 = vmatprep.subr.mxu0 0.0
    %1752 = vmatpush1.msra.mxu0 0.0
    %1753 = vmatprep.subr.mxu0 0.0
    %1754 = vmatpush1.msra.mxu0 0.0
    %1755 = vmatprep.subr.mxu0 0.0
    %1756 = vmatpush1.msra.mxu0 0.0
    %1757 = vmatprep.subr.mxu0 0.0
    %1758 = vmatpush1.msra.mxu0 0.0
    %1759 = vmatprep.mubr.f32.mxu0 0.0
    %1760 = vmatmul.mubr.f32.gmra.mrb[0].mxu0 %v1693
    %v1761 = vpop.f32.mrb[0].mxu0
    %v1762 = vadd.f32 0.0, %v1761
    %v1763 = vpop.f32.mrb[0].mxu0
    %v1764 = vadd.f32 0.0, %v1763
    %1765 = vdwg.mxu0
    %1766 = vmatprep.subr.mxu0 %v314
    %1767 = vmatpush1.msra.mxu0 %v313
    %1768 = vmatprep.subr.mxu0 %v318
    %1769 = vmatpush1.msra.mxu0 %v317
    %1770 = vmatprep.subr.mxu0 %v322
    %1771 = vmatpush1.msra.mxu0 %v321
    %1772 = vmatprep.subr.mxu0 %v326
    %1773 = vmatpush1.msra.mxu0 %v325
    %1774 = vmatprep.subr.mxu0 %v330
    %1775 = vmatpush1.msra.mxu0 %v329
    %1776 = vmatprep.subr.mxu0 %v334
    %1777 = vmatpush1.msra.mxu0 %v333
    %1778 = vmatprep.subr.mxu0 %v338
    %1779 = vmatpush1.msra.mxu0 %v337
    %1780 = vmatprep.subr.mxu0 %v342
    %1781 = vmatpush1.msra.mxu0 %v341
    %1782 = vmatprep.subr.mxu0 %v346
    %1783 = vmatpush1.msra.mxu0 %v345
    %1784 = vmatprep.subr.mxu0 %v350
    %1785 = vmatpush1.msra.mxu0 %v349
    %1786 = vmatprep.subr.mxu0 %v354
    %1787 = vmatpush1.msra.mxu0 %v353
    %1788 = vmatprep.subr.mxu0 %v358
    %1789 = vmatpush1.msra.mxu0 %v357
    %1790 = vmatprep.subr.mxu0 %v362
    %1791 = vmatpush1.msra.mxu0 %v361
    %1792 = vmatprep.subr.mxu0 %v366
    %1793 = vmatpush1.msra.mxu0 %v365
    %1794 = vmatprep.subr.mxu0 %v370
    %1795 = vmatpush1.msra.mxu0 %v369
    %1796 = vmatprep.subr.mxu0 %v374
    %1797 = vmatpush1.msra.mxu0 %v373
    %1798 = vmatprep.subr.mxu0 0.0
    %1799 = vmatpush1.msra.mxu0 0.0
    %1800 = vmatprep.subr.mxu0 0.0
    %1801 = vmatpush1.msra.mxu0 0.0
    %1802 = vmatprep.subr.mxu0 0.0
    %1803 = vmatpush1.msra.mxu0 0.0
    %1804 = vmatprep.subr.mxu0 0.0
    %1805 = vmatpush1.msra.mxu0 0.0
    %1806 = vmatprep.subr.mxu0 0.0
    %1807 = vmatpush1.msra.mxu0 0.0
    %1808 = vmatprep.subr.mxu0 0.0
    %1809 = vmatpush1.msra.mxu0 0.0
    %1810 = vmatprep.subr.mxu0 0.0
    %1811 = vmatpush1.msra.mxu0 0.0
    %1812 = vmatprep.subr.mxu0 0.0
    %1813 = vmatpush1.msra.mxu0 0.0
    %1814 = vmatprep.subr.mxu0 0.0
    %1815 = vmatpush1.msra.mxu0 0.0
    %1816 = vmatprep.subr.mxu0 0.0
    %1817 = vmatpush1.msra.mxu0 0.0
    %1818 = vmatprep.subr.mxu0 0.0
    %1819 = vmatpush1.msra.mxu0 0.0
    %1820 = vmatprep.subr.mxu0 0.0
    %1821 = vmatpush1.msra.mxu0 0.0
    %1822 = vmatprep.subr.mxu0 0.0
    %1823 = vmatpush1.msra.mxu0 0.0
    %1824 = vmatprep.subr.mxu0 0.0
    %1825 = vmatpush1.msra.mxu0 0.0
    %1826 = vmatprep.subr.mxu0 0.0
    %1827 = vmatpush1.msra.mxu0 0.0
    %1828 = vmatprep.subr.mxu0 0.0
    %1829 = vmatpush1.msra.mxu0 0.0
    %1830 = vmatprep.mubr.f32.mxu0 0.0
    %1831 = vmatmul.mubr.f32.gmra.mrb[0].mxu0 %v1693
    %v1832 = vpop.f32.mrb[0].mxu0
    %v1833 = vadd.f32 0.0, %v1832
    %v1834 = vpop.f32.mrb[0].mxu0
    %v1835 = vadd.f32 0.0, %v1834
    %1836 = vdwg.mxu0
    %v1841 = vrot.slane %v1762, 2
    %v1842 = vrot.slane %v1764, 2
    %v1843 = vrot.slane %v1833, 2
    %v1844 = vrot.slane %v1835, 2
    %v1849 = vadd.f32 %v224, %v1841
    %v1850 = vadd.f32 %v226, %v1842
    %v1851 = vadd.f32 %v301, %v1843
    %v1852 = vadd.f32 %v303, %v1844
    %v1853 = vxor.u32 %v1849, 2147483648
    %v1854 = vxor.u32 %v1850, 2147483648
    %v1855 = vxor.u32 %v1851, 2147483648
    %v1856 = vmul.f32 %v1853, 1.442695
    %v1857 = vpow.pop %v1856
    %v1858 = vmul.f32 %v1854, 1.442695
    %v1859 = vpow.pop %v1858
    %v1860 = vmul.f32 %v1855, 1.442695
    %v1861 = vpow.pop %v1860
    %v1862 = vadd.f32 %v1857, 1.0
    %v1863 = vadd.f32 %v1859, 1.0
    %v1864 = vadd.f32 %v1861, 1.0
    %v1865 = vrcp.pop %v1862
    %v1866 = vmul.f32 1.0, %v1865
    %v1867 = vrcp.pop %v1863
    %v1868 = vmul.f32 1.0, %v1867
    %v1869 = vrcp.pop %v1864
    %v1870 = vmul.f32 1.0, %v1869
    %v1871 = vtanh.pop %v1852
    %v1873 = vrot.slane %v1377, 6
    %v1875 = vmul.f32 %v1868, %v1873
    %v1876 = vmul.f32 %v1866, %v1871
    %v1877 = vadd.f32 %v1875, %v1876
    %v1878 = vtanh.pop %v1877
    %v1879 = vmul.f32 %v1870, %v1878
    %1880 = vmatprep.subr.mxu0 %v440
    %1881 = vmatpush1.msra.mxu0 %v439
    %1882 = vmatprep.subr.mxu0 %v444
    %1883 = vmatpush1.msra.mxu0 %v443
    %1884 = vmatprep.subr.mxu0 %v448
    %1885 = vmatpush1.msra.mxu0 %v447
    %1886 = vmatprep.subr.mxu0 %v452
    %1887 = vmatpush1.msra.mxu0 %v451
    %1888 = vmatprep.subr.mxu0 %v456
    %1889 = vmatpush1.msra.mxu0 %v455
    %1890 = vmatprep.subr.mxu0 %v460
    %1891 = vmatpush1.msra.mxu0 %v459
    %1892 = vmatprep.subr.mxu0 %v464
    %1893 = vmatpush1.msra.mxu0 %v463
    %1894 = vmatprep.subr.mxu0 %v468
    %1895 = vmatpush1.msra.mxu0 %v467
    %1896 = vmatprep.subr.mxu0 %v472
    %1897 = vmatpush1.msra.mxu0 %v471
    %1898 = vmatprep.subr.mxu0 %v476
    %1899 = vmatpush1.msra.mxu0 %v475
    %1900 = vmatprep.subr.mxu0 %v480
    %1901 = vmatpush1.msra.mxu0 %v479
    %1902 = vmatprep.subr.mxu0 %v484
    %1903 = vmatpush1.msra.mxu0 %v483
    %1904 = vmatprep.subr.mxu0 %v488
    %1905 = vmatpush1.msra.mxu0 %v487
    %1906 = vmatprep.subr.mxu0 %v492
    %1907 = vmatpush1.msra.mxu0 %v491
    %1908 = vmatprep.subr.mxu0 %v496
    %1909 = vmatpush1.msra.mxu0 %v495
    %1910 = vmatprep.subr.mxu0 %v500
    %1911 = vmatpush1.msra.mxu0 %v499
    %1912 = vmatprep.subr.mxu0 0.0
    %1913 = vmatpush1.msra.mxu0 0.0
    %1914 = vmatprep.subr.mxu0 0.0
    %1915 = vmatpush1.msra.mxu0 0.0
    %1916 = vmatprep.subr.mxu0 0.0
    %1917 = vmatpush1.msra.mxu0 0.0
    %1918 = vmatprep.subr.mxu0 0.0
    %1919 = vmatpush1.msra.mxu0 0.0
    %1920 = vmatprep.subr.mxu0 0.0
    %1921 = vmatpush1.msra.mxu0 0.0
    %1922 = vmatprep.subr.mxu0 0.0
    %1923 = vmatpush1.msra.mxu0 0.0
    %1924 = vmatprep.subr.mxu0 0.0
    %1925 = vmatpush1.msra.mxu0 0.0
    %1926 = vmatprep.subr.mxu0 0.0
    %1927 = vmatpush1.msra.mxu0 0.0
    %1928 = vmatprep.subr.mxu0 0.0
    %1929 = vmatpush1.msra.mxu0 0.0
    %1930 = vmatprep.subr.mxu0 0.0
    %1931 = vmatpush1.msra.mxu0 0.0
    %1932 = vmatprep.subr.mxu0 0.0
    %1933 = vmatpush1.msra.mxu0 0.0
    %1934 = vmatprep.subr.mxu0 0.0
    %1935 = vmatpush1.msra.mxu0 0.0
    %1936 = vmatprep.subr.mxu0 0.0
    %1937 = vmatpush1.msra.mxu0 0.0
    %1938 = vmatprep.subr.mxu0 0.0
    %1939 = vmatpush1.msra.mxu0 0.0
    %1940 = vmatprep.subr.mxu0 0.0
    %1941 = vmatpush1.msra.mxu0 0.0
    %1942 = vmatprep.subr.mxu0 0.0
    %1943 = vmatpush1.msra.mxu0 0.0
    %1944 = vmatprep.mubr.f32.mxu0 0.0
    %1945 = vmatmul.mubr.f32.gmra.mrb[0].mxu0 %v1691
    %v1946 = vpop.f32.mrb[0].mxu0
    %v1947 = vadd.f32 0.0, %v1946
    %v1948 = vpop.f32.mrb[0].mxu0
    %v1949 = vadd.f32 0.0, %v1948
    %1950 = vdwg.mxu0
    %1951 = vmatprep.subr.mxu0 %v442
    %1952 = vmatpush1.msra.mxu0 %v441
    %1953 = vmatprep.subr.mxu0 %v446
    %1954 = vmatpush1.msra.mxu0 %v445
    %1955 = vmatprep.subr.mxu0 %v450
    %1956 = vmatpush1.msra.mxu0 %v449
    %1957 = vmatprep.subr.mxu0 %v454
    %1958 = vmatpush1.msra.mxu0 %v453
    %1959 = vmatprep.subr.mxu0 %v458
    %1960 = vmatpush1.msra.mxu0 %v457
    %1961 = vmatprep.subr.mxu0 %v462
    %1962 = vmatpush1.msra.mxu0 %v461
    %1963 = vmatprep.subr.mxu0 %v466
    %1964 = vmatpush1.msra.mxu0 %v465
    %1965 = vmatprep.subr.mxu0 %v470
    %1966 = vmatpush1.msra.mxu0 %v469
    %1967 = vmatprep.subr.mxu0 %v474
    %1968 = vmatpush1.msra.mxu0 %v473
    %1969 = vmatprep.subr.mxu0 %v478
    %1970 = vmatpush1.msra.mxu0 %v477
    %1971 = vmatprep.subr.mxu0 %v482
    %1972 = vmatpush1.msra.mxu0 %v481
    %1973 = vmatprep.subr.mxu0 %v486
    %1974 = vmatpush1.msra.mxu0 %v485
    %1975 = vmatprep.subr.mxu0 %v490
    %1976 = vmatpush1.msra.mxu0 %v489
    %1977 = vmatprep.subr.mxu0 %v494
    %1978 = vmatpush1.msra.mxu0 %v493
    %1979 = vmatprep.subr.mxu0 %v498
    %1980 = vmatpush1.msra.mxu0 %v497
    %1981 = vmatprep.subr.mxu0 %v502
    %1982 = vmatpush1.msra.mxu0 %v501
    %1983 = vmatprep.subr.mxu0 0.0
    %1984 = vmatpush1.msra.mxu0 0.0
    %1985 = vmatprep.subr.mxu0 0.0
    %1986 = vmatpush1.msra.mxu0 0.0
    %1987 = vmatprep.subr.mxu0 0.0
    %1988 = vmatpush1.msra.mxu0 0.0
    %1989 = vmatprep.subr.mxu0 0.0
    %1990 = vmatpush1.msra.mxu0 0.0
    %1991 = vmatprep.subr.mxu0 0.0
    %1992 = vmatpush1.msra.mxu0 0.0
    %1993 = vmatprep.subr.mxu0 0.0
    %1994 = vmatpush1.msra.mxu0 0.0
    %1995 = vmatprep.subr.mxu0 0.0
    %1996 = vmatpush1.msra.mxu0 0.0
    %1997 = vmatprep.subr.mxu0 0.0
    %1998 = vmatpush1.msra.mxu0 0.0
    %1999 = vmatprep.subr.mxu0 0.0
    %2000 = vmatpush1.msra.mxu0 0.0
    %2001 = vmatprep.subr.mxu0 0.0
    %2002 = vmatpush1.msra.mxu0 0.0
    %2003 = vmatprep.subr.mxu0 0.0
    %2004 = vmatpush1.msra.mxu0 0.0
    %2005 = vmatprep.subr.mxu0 0.0
    %2006 = vmatpush1.msra.mxu0 0.0
    %2007 = vmatprep.subr.mxu0 0.0
    %2008 = vmatpush1.msra.mxu0 0.0
    %2009 = vmatprep.subr.mxu0 0.0
    %2010 = vmatpush1.msra.mxu0 0.0
    %2011 = vmatprep.subr.mxu0 0.0
    %2012 = vmatpush1.msra.mxu0 0.0
    %2013 = vmatprep.subr.mxu0 0.0
    %2014 = vmatpush1.msra.mxu0 0.0
    %2015 = vmatprep.mubr.f32.mxu0 0.0
    %2016 = vmatmul.mubr.f32.gmra.mrb[0].mxu0 %v1691
    %v2017 = vpop.f32.mrb[0].mxu0
    %v2018 = vadd.f32 0.0, %v2017
    %v2019 = vpop.f32.mrb[0].mxu0
    %v2020 = vadd.f32 0.0, %v2019
    %2021 = vdwg.mxu0
    %2022 = vmatprep.subr.mxu0 %v376
    %2023 = vmatpush1.msra.mxu0 %v375
    %2024 = vmatprep.subr.mxu0 %v380
    %2025 = vmatpush1.msra.mxu0 %v379
    %2026 = vmatprep.subr.mxu0 %v384
    %2027 = vmatpush1.msra.mxu0 %v383
    %2028 = vmatprep.subr.mxu0 %v388
    %2029 = vmatpush1.msra.mxu0 %v387
    %2030 = vmatprep.subr.mxu0 %v392
    %2031 = vmatpush1.msra.mxu0 %v391
    %2032 = vmatprep.subr.mxu0 %v396
    %2033 = vmatpush1.msra.mxu0 %v395
    %2034 = vmatprep.subr.mxu0 %v400
    %2035 = vmatpush1.msra.mxu0 %v399
    %2036 = vmatprep.subr.mxu0 %v404
    %2037 = vmatpush1.msra.mxu0 %v403
    %2038 = vmatprep.subr.mxu0 %v408
    %2039 = vmatpush1.msra.mxu0 %v407
    %2040 = vmatprep.subr.mxu0 %v412
    %2041 = vmatpush1.msra.mxu0 %v411
    %2042 = vmatprep.subr.mxu0 %v416
    %2043 = vmatpush1.msra.mxu0 %v415
    %2044 = vmatprep.subr.mxu0 %v420
    %2045 = vmatpush1.msra.mxu0 %v419
    %2046 = vmatprep.subr.mxu0 %v424
    %2047 = vmatpush1.msra.mxu0 %v423
    %2048 = vmatprep.subr.mxu0 %v428
    %2049 = vmatpush1.msra.mxu0 %v427
    %2050 = vmatprep.subr.mxu0 %v432
    %2051 = vmatpush1.msra.mxu0 %v431
    %2052 = vmatprep.subr.mxu0 %v436
    %2053 = vmatpush1.msra.mxu0 %v435
    %2054 = vmatprep.subr.mxu0 0.0
    %2055 = vmatpush1.msra.mxu0 0.0
    %2056 = vmatprep.subr.mxu0 0.0
    %2057 = vmatpush1.msra.mxu0 0.0
    %2058 = vmatprep.subr.mxu0 0.0
    %2059 = vmatpush1.msra.mxu0 0.0
    %2060 = vmatprep.subr.mxu0 0.0
    %2061 = vmatpush1.msra.mxu0 0.0
    %2062 = vmatprep.subr.mxu0 0.0
    %2063 = vmatpush1.msra.mxu0 0.0
    %2064 = vmatprep.subr.mxu0 0.0
    %2065 = vmatpush1.msra.mxu0 0.0
    %2066 = vmatprep.subr.mxu0 0.0
    %2067 = vmatpush1.msra.mxu0 0.0
    %2068 = vmatprep.subr.mxu0 0.0
    %2069 = vmatpush1.msra.mxu0 0.0
    %2070 = vmatprep.subr.mxu0 0.0
    %2071 = vmatpush1.msra.mxu0 0.0
    %2072 = vmatprep.subr.mxu0 0.0
    %2073 = vmatpush1.msra.mxu0 0.0
    %2074 = vmatprep.subr.mxu0 0.0
    %2075 = vmatpush1.msra.mxu0 0.0
    %2076 = vmatprep.subr.mxu0 0.0
    %2077 = vmatpush1.msra.mxu0 0.0
    %2078 = vmatprep.subr.mxu0 0.0
    %2079 = vmatpush1.msra.mxu0 0.0
    %2080 = vmatprep.subr.mxu0 0.0
    %2081 = vmatpush1.msra.mxu0 0.0
    %2082 = vmatprep.subr.mxu0 0.0
    %2083 = vmatpush1.msra.mxu0 0.0
    %2084 = vmatprep.subr.mxu0 0.0
    %2085 = vmatpush1.msra.mxu0 0.0
    %2086 = vmatprep.mubr.f32.mxu0 0.0
    %2087 = vmatmul.mubr.f32.gmra.mrb[0].mxu0 %v1693
    %v2088 = vpop.f32.mrb[0].mxu0
    %v2089 = vadd.f32 %v1947, %v2088
    %v2090 = vpop.f32.mrb[0].mxu0
    %v2091 = vadd.f32 %v1949, %v2090
    %2092 = vdwg.mxu0
    %2093 = vmatprep.subr.mxu0 %v378
    %2094 = vmatpush1.msra.mxu0 %v377
    %2095 = vmatprep.subr.mxu0 %v382
    %2096 = vmatpush1.msra.mxu0 %v381
    %2097 = vmatprep.subr.mxu0 %v386
    %2098 = vmatpush1.msra.mxu0 %v385
    %2099 = vmatprep.subr.mxu0 %v390
    %2100 = vmatpush1.msra.mxu0 %v389
    %2101 = vmatprep.subr.mxu0 %v394
    %2102 = vmatpush1.msra.mxu0 %v393
    %2103 = vmatprep.subr.mxu0 %v398
    %2104 = vmatpush1.msra.mxu0 %v397
    %2105 = vmatprep.subr.mxu0 %v402
    %2106 = vmatpush1.msra.mxu0 %v401
    %2107 = vmatprep.subr.mxu0 %v406
    %2108 = vmatpush1.msra.mxu0 %v405
    %2109 = vmatprep.subr.mxu0 %v410
    %2110 = vmatpush1.msra.mxu0 %v409
    %2111 = vmatprep.subr.mxu0 %v414
    %2112 = vmatpush1.msra.mxu0 %v413
    %2113 = vmatprep.subr.mxu0 %v418
    %2114 = vmatpush1.msra.mxu0 %v417
    %2115 = vmatprep.subr.mxu0 %v422
    %2116 = vmatpush1.msra.mxu0 %v421
    %2117 = vmatprep.subr.mxu0 %v426
    %2118 = vmatpush1.msra.mxu0 %v425
    %2119 = vmatprep.subr.mxu0 %v430
    %2120 = vmatpush1.msra.mxu0 %v429
    %2121 = vmatprep.subr.mxu0 %v434
    %2122 = vmatpush1.msra.mxu0 %v433
    %2123 = vmatprep.subr.mxu0 %v438
    %2124 = vmatpush1.msra.mxu0 %v437
    %2125 = vmatprep.subr.mxu0 0.0
    %2126 = vmatpush1.msra.mxu0 0.0
    %2127 = vmatprep.subr.mxu0 0.0
    %2128 = vmatpush1.msra.mxu0 0.0
    %2129 = vmatprep.subr.mxu0 0.0
    %2130 = vmatpush1.msra.mxu0 0.0
    %2131 = vmatprep.subr.mxu0 0.0
    %2132 = vmatpush1.msra.mxu0 0.0
    %2133 = vmatprep.subr.mxu0 0.0
    %2134 = vmatpush1.msra.mxu0 0.0
    %2135 = vmatprep.subr.mxu0 0.0
    %2136 = vmatpush1.msra.mxu0 0.0
    %2137 = vmatprep.subr.mxu0 0.0
    %2138 = vmatpush1.msra.mxu0 0.0
    %2139 = vmatprep.subr.mxu0 0.0
    %2140 = vmatpush1.msra.mxu0 0.0
    %2141 = vmatprep.subr.mxu0 0.0
    %2142 = vmatpush1.msra.mxu0 0.0
    %2143 = vmatprep.subr.mxu0 0.0
    %2144 = vmatpush1.msra.mxu0 0.0
    %2145 = vmatprep.subr.mxu0 0.0
    %2146 = vmatpush1.msra.mxu0 0.0
    %2147 = vmatprep.subr.mxu0 0.0
    %2148 = vmatpush1.msra.mxu0 0.0
    %2149 = vmatprep.subr.mxu0 0.0
    %2150 = vmatpush1.msra.mxu0 0.0
    %2151 = vmatprep.subr.mxu0 0.0
    %2152 = vmatpush1.msra.mxu0 0.0
    %2153 = vmatprep.subr.mxu0 0.0
    %2154 = vmatpush1.msra.mxu0 0.0
    %2155 = vmatprep.subr.mxu0 0.0
    %2156 = vmatpush1.msra.mxu0 0.0
    %2157 = vmatprep.mubr.f32.mxu0 0.0
    %2158 = vmatmul.mubr.f32.gmra.mrb[0].mxu0 %v1693
    %v2159 = vpop.f32.mrb[0].mxu0
    %v2160 = vadd.f32 %v2018, %v2159
    %v2161 = vpop.f32.mrb[0].mxu0
    %v2162 = vadd.f32 %v2020, %v2161
    %2163 = vdwg.mxu0
    %v2164 = vadd.f32 %v2089, %v1147
    %v2165 = vadd.f32 %v2091, %v1151
    %v2166 = vadd.f32 %v2160, %v1155
    %v2167 = vadd.f32 %v2162, %v1159
    %v2168 = vxor.u32 %v2164, 2147483648
    %v2169 = vxor.u32 %v2165, 2147483648
    %v2170 = vxor.u32 %v2166, 2147483648
    %v2171 = vmul.f32 %v2168, 1.442695
    %v2172 = vpow.pop %v2171
    %v2173 = vmul.f32 %v2169, 1.442695
    %v2174 = vpow.pop %v2173
    %v2175 = vmul.f32 %v2170, 1.442695
    %v2176 = vpow.pop %v2175
    %v2177 = vadd.f32 %v2172, 1.0
    %v2178 = vadd.f32 %v2174, 1.0
    %v2179 = vadd.f32 %v2176, 1.0
    %v2180 = vrcp.pop %v2177
    %v2181 = vmul.f32 1.0, %v2180
    %v2182 = vrcp.pop %v2178
    %v2183 = vmul.f32 1.0, %v2182
    %v2184 = vrcp.pop %v2179
    %v2185 = vmul.f32 1.0, %v2184
    %v2186 = vtanh.pop %v2167
    %v2187 = vmul.f32 %v2183, %v1689
    %v2188 = vmul.f32 %v2181, %v2186
    %v2189 = vadd.f32 %v2187, %v2188
    %v2190 = vtanh.pop %v2189
    %v2191 = vmul.f32 %v2185, %v2190
    %v2193 = vrot.slane %v1879, 6
    %2195 = vmatprep.subr.mxu0 %v312
    %2196 = vmatpush1.msra.mxu0 %v311
    %2197 = vmatprep.subr.mxu0 %v316
    %2198 = vmatpush1.msra.mxu0 %v315
    %2199 = vmatprep.subr.mxu0 %v320
    %2200 = vmatpush1.msra.mxu0 %v319
    %2201 = vmatprep.subr.mxu0 %v324
    %2202 = vmatpush1.msra.mxu0 %v323
    %2203 = vmatprep.subr.mxu0 %v328
    %2204 = vmatpush1.msra.mxu0 %v327
    %2205 = vmatprep.subr.mxu0 %v332
    %2206 = vmatpush1.msra.mxu0 %v331
    %2207 = vmatprep.subr.mxu0 %v336
    %2208 = vmatpush1.msra.mxu0 %v335
    %2209 = vmatprep.subr.mxu0 %v340
    %2210 = vmatpush1.msra.mxu0 %v339
    %2211 = vmatprep.subr.mxu0 %v344
    %2212 = vmatpush1.msra.mxu0 %v343
    %2213 = vmatprep.subr.mxu0 %v348
    %2214 = vmatpush1.msra.mxu0 %v347
    %2215 = vmatprep.subr.mxu0 %v352
    %2216 = vmatpush1.msra.mxu0 %v351
    %2217 = vmatprep.subr.mxu0 %v356
    %2218 = vmatpush1.msra.mxu0 %v355
    %2219 = vmatprep.subr.mxu0 %v360
    %2220 = vmatpush1.msra.mxu0 %v359
    %2221 = vmatprep.subr.mxu0 %v364
    %2222 = vmatpush1.msra.mxu0 %v363
    %2223 = vmatprep.subr.mxu0 %v368
    %2224 = vmatpush1.msra.mxu0 %v367
    %2225 = vmatprep.subr.mxu0 %v372
    %2226 = vmatpush1.msra.mxu0 %v371
    %2227 = vmatprep.subr.mxu0 0.0
    %2228 = vmatpush1.msra.mxu0 0.0
    %2229 = vmatprep.subr.mxu0 0.0
    %2230 = vmatpush1.msra.mxu0 0.0
    %2231 = vmatprep.subr.mxu0 0.0
    %2232 = vmatpush1.msra.mxu0 0.0
    %2233 = vmatprep.subr.mxu0 0.0
    %2234 = vmatpush1.msra.mxu0 0.0
    %2235 = vmatprep.subr.mxu0 0.0
    %2236 = vmatpush1.msra.mxu0 0.0
    %2237 = vmatprep.subr.mxu0 0.0
    %2238 = vmatpush1.msra.mxu0 0.0
    %2239 = vmatprep.subr.mxu0 0.0
    %2240 = vmatpush1.msra.mxu0 0.0
    %2241 = vmatprep.subr.mxu0 0.0
    %2242 = vmatpush1.msra.mxu0 0.0
    %2243 = vmatprep.subr.mxu0 0.0
    %2244 = vmatpush1.msra.mxu0 0.0
    %2245 = vmatprep.subr.mxu0 0.0
    %2246 = vmatpush1.msra.mxu0 0.0
    %2247 = vmatprep.subr.mxu0 0.0
    %2248 = vmatpush1.msra.mxu0 0.0
    %2249 = vmatprep.subr.mxu0 0.0
    %2250 = vmatpush1.msra.mxu0 0.0
    %2251 = vmatprep.subr.mxu0 0.0
    %2252 = vmatpush1.msra.mxu0 0.0
    %2253 = vmatprep.subr.mxu0 0.0
    %2254 = vmatpush1.msra.mxu0 0.0
    %2255 = vmatprep.subr.mxu0 0.0
    %2256 = vmatpush1.msra.mxu0 0.0
    %2257 = vmatprep.subr.mxu0 0.0
    %2258 = vmatpush1.msra.mxu0 0.0
    %2259 = vmatprep.mubr.f32.mxu0 0.0
    %2260 = vmatmul.mubr.f32.gmra.mrb[0].mxu0 %v2193
    %v2261 = vpop.f32.mrb[0].mxu0
    %v2262 = vadd.f32 0.0, %v2261
    %v2263 = vpop.f32.mrb[0].mxu0
    %v2264 = vadd.f32 0.0, %v2263
    %2265 = vdwg.mxu0
    %2266 = vmatprep.subr.mxu0 %v314
    %2267 = vmatpush1.msra.mxu0 %v313
    %2268 = vmatprep.subr.mxu0 %v318
    %2269 = vmatpush1.msra.mxu0 %v317
    %2270 = vmatprep.subr.mxu0 %v322
    %2271 = vmatpush1.msra.mxu0 %v321
    %2272 = vmatprep.subr.mxu0 %v326
    %2273 = vmatpush1.msra.mxu0 %v325
    %2274 = vmatprep.subr.mxu0 %v330
    %2275 = vmatpush1.msra.mxu0 %v329
    %2276 = vmatprep.subr.mxu0 %v334
    %2277 = vmatpush1.msra.mxu0 %v333
    %2278 = vmatprep.subr.mxu0 %v338
    %2279 = vmatpush1.msra.mxu0 %v337
    %2280 = vmatprep.subr.mxu0 %v342
    %2281 = vmatpush1.msra.mxu0 %v341
    %2282 = vmatprep.subr.mxu0 %v346
    %2283 = vmatpush1.msra.mxu0 %v345
    %2284 = vmatprep.subr.mxu0 %v350
    %2285 = vmatpush1.msra.mxu0 %v349
    %2286 = vmatprep.subr.mxu0 %v354
    %2287 = vmatpush1.msra.mxu0 %v353
    %2288 = vmatprep.subr.mxu0 %v358
    %2289 = vmatpush1.msra.mxu0 %v357
    %2290 = vmatprep.subr.mxu0 %v362
    %2291 = vmatpush1.msra.mxu0 %v361
    %2292 = vmatprep.subr.mxu0 %v366
    %2293 = vmatpush1.msra.mxu0 %v365
    %2294 = vmatprep.subr.mxu0 %v370
    %2295 = vmatpush1.msra.mxu0 %v369
    %2296 = vmatprep.subr.mxu0 %v374
    %2297 = vmatpush1.msra.mxu0 %v373
    %2298 = vmatprep.subr.mxu0 0.0
    %2299 = vmatpush1.msra.mxu0 0.0
    %2300 = vmatprep.subr.mxu0 0.0
    %2301 = vmatpush1.msra.mxu0 0.0
    %2302 = vmatprep.subr.mxu0 0.0
    %2303 = vmatpush1.msra.mxu0 0.0
    %2304 = vmatprep.subr.mxu0 0.0
    %2305 = vmatpush1.msra.mxu0 0.0
    %2306 = vmatprep.subr.mxu0 0.0
    %2307 = vmatpush1.msra.mxu0 0.0
    %2308 = vmatprep.subr.mxu0 0.0
    %2309 = vmatpush1.msra.mxu0 0.0
    %2310 = vmatprep.subr.mxu0 0.0
    %2311 = vmatpush1.msra.mxu0 0.0
    %2312 = vmatprep.subr.mxu0 0.0
    %2313 = vmatpush1.msra.mxu0 0.0
    %2314 = vmatprep.subr.mxu0 0.0
    %2315 = vmatpush1.msra.mxu0 0.0
    %2316 = vmatprep.subr.mxu0 0.0
    %2317 = vmatpush1.msra.mxu0 0.0
    %2318 = vmatprep.subr.mxu0 0.0
    %2319 = vmatpush1.msra.mxu0 0.0
    %2320 = vmatprep.subr.mxu0 0.0
    %2321 = vmatpush1.msra.mxu0 0.0
    %2322 = vmatprep.subr.mxu0 0.0
    %2323 = vmatpush1.msra.mxu0 0.0
    %2324 = vmatprep.subr.mxu0 0.0
    %2325 = vmatpush1.msra.mxu0 0.0
    %2326 = vmatprep.subr.mxu0 0.0
    %2327 = vmatpush1.msra.mxu0 0.0
    %2328 = vmatprep.subr.mxu0 0.0
    %2329 = vmatpush1.msra.mxu0 0.0
    %2330 = vmatprep.mubr.f32.mxu0 0.0
    %2331 = vmatmul.mubr.f32.gmra.mrb[0].mxu0 %v2193
    %v2332 = vpop.f32.mrb[0].mxu0
    %v2333 = vadd.f32 0.0, %v2332
    %v2334 = vpop.f32.mrb[0].mxu0
    %v2335 = vadd.f32 0.0, %v2334
    %2336 = vdwg.mxu0
    %v2337 = vadd.f32 %v230, %v2262
    %v2338 = vadd.f32 %v232, %v2264
    %v2339 = vadd.f32 %v307, %v2333
    %v2340 = vadd.f32 %v309, %v2335
    %v2341 = vxor.u32 %v2337, 2147483648
    %v2342 = vxor.u32 %v2338, 2147483648
    %v2343 = vxor.u32 %v2339, 2147483648
    %v2344 = vmul.f32 %v2341, 1.442695
    %v2345 = vpow.pop %v2344
    %v2346 = vmul.f32 %v2342, 1.442695
    %v2347 = vpow.pop %v2346
    %v2348 = vmul.f32 %v2343, 1.442695
    %v2349 = vpow.pop %v2348
    %v2350 = vadd.f32 %v2345, 1.0
    %v2351 = vadd.f32 %v2347, 1.0
    %v2352 = vadd.f32 %v2349, 1.0
    %v2353 = vrcp.pop %v2350
    %v2354 = vmul.f32 1.0, %v2353
    %v2355 = vrcp.pop %v2351
    %v2356 = vmul.f32 1.0, %v2355
    %v2357 = vrcp.pop %v2352
    %v2358 = vmul.f32 1.0, %v2357
    %v2359 = vtanh.pop %v2340
    %v2361 = vrot.slane %v1877, 6
    %v2363 = vmul.f32 %v2356, %v2361
    %v2364 = vmul.f32 %v2354, %v2359
    %v2365 = vadd.f32 %v2363, %v2364
    %v2366 = vtanh.pop %v2365
    %v2367 = vmul.f32 %v2358, %v2366
    %2368 = vmatprep.subr.mxu0 %v440
    %2369 = vmatpush1.msra.mxu0 %v439
    %2370 = vmatprep.subr.mxu0 %v444
    %2371 = vmatpush1.msra.mxu0 %v443
    %2372 = vmatprep.subr.mxu0 %v448
    %2373 = vmatpush1.msra.mxu0 %v447
    %2374 = vmatprep.subr.mxu0 %v452
    %2375 = vmatpush1.msra.mxu0 %v451
    %2376 = vmatprep.subr.mxu0 %v456
    %2377 = vmatpush1.msra.mxu0 %v455
    %2378 = vmatprep.subr.mxu0 %v460
    %2379 = vmatpush1.msra.mxu0 %v459
    %2380 = vmatprep.subr.mxu0 %v464
    %2381 = vmatpush1.msra.mxu0 %v463
    %2382 = vmatprep.subr.mxu0 %v468
    %2383 = vmatpush1.msra.mxu0 %v467
    %2384 = vmatprep.subr.mxu0 %v472
    %2385 = vmatpush1.msra.mxu0 %v471
    %2386 = vmatprep.subr.mxu0 %v476
    %2387 = vmatpush1.msra.mxu0 %v475
    %2388 = vmatprep.subr.mxu0 %v480
    %2389 = vmatpush1.msra.mxu0 %v479
    %2390 = vmatprep.subr.mxu0 %v484
    %2391 = vmatpush1.msra.mxu0 %v483
    %2392 = vmatprep.subr.mxu0 %v488
    %2393 = vmatpush1.msra.mxu0 %v487
    %2394 = vmatprep.subr.mxu0 %v492
    %2395 = vmatpush1.msra.mxu0 %v491
    %2396 = vmatprep.subr.mxu0 %v496
    %2397 = vmatpush1.msra.mxu0 %v495
    %2398 = vmatprep.subr.mxu0 %v500
    %2399 = vmatpush1.msra.mxu0 %v499
    %2400 = vmatprep.subr.mxu0 0.0
    %2401 = vmatpush1.msra.mxu0 0.0
    %2402 = vmatprep.subr.mxu0 0.0
    %2403 = vmatpush1.msra.mxu0 0.0
    %2404 = vmatprep.subr.mxu0 0.0
    %2405 = vmatpush1.msra.mxu0 0.0
    %2406 = vmatprep.subr.mxu0 0.0
    %2407 = vmatpush1.msra.mxu0 0.0
    %2408 = vmatprep.subr.mxu0 0.0
    %2409 = vmatpush1.msra.mxu0 0.0
    %2410 = vmatprep.subr.mxu0 0.0
    %2411 = vmatpush1.msra.mxu0 0.0
    %2412 = vmatprep.subr.mxu0 0.0
    %2413 = vmatpush1.msra.mxu0 0.0
    %2414 = vmatprep.subr.mxu0 0.0
    %2415 = vmatpush1.msra.mxu0 0.0
    %2416 = vmatprep.subr.mxu0 0.0
    %2417 = vmatpush1.msra.mxu0 0.0
    %2418 = vmatprep.subr.mxu0 0.0
    %2419 = vmatpush1.msra.mxu0 0.0
    %2420 = vmatprep.subr.mxu0 0.0
    %2421 = vmatpush1.msra.mxu0 0.0
    %2422 = vmatprep.subr.mxu0 0.0
    %2423 = vmatpush1.msra.mxu0 0.0
    %2424 = vmatprep.subr.mxu0 0.0
    %2425 = vmatpush1.msra.mxu0 0.0
    %2426 = vmatprep.subr.mxu0 0.0
    %2427 = vmatpush1.msra.mxu0 0.0
    %2428 = vmatprep.subr.mxu0 0.0
    %2429 = vmatpush1.msra.mxu0 0.0
    %2430 = vmatprep.subr.mxu0 0.0
    %2431 = vmatpush1.msra.mxu0 0.0
    %2432 = vmatprep.mubr.f32.mxu0 0.0
    %2433 = vmatmul.mubr.f32.gmra.mrb[0].mxu0 %v2191
    %v2434 = vpop.f32.mrb[0].mxu0
    %v2435 = vadd.f32 0.0, %v2434
    %v2436 = vpop.f32.mrb[0].mxu0
    %v2437 = vadd.f32 0.0, %v2436
    %2438 = vdwg.mxu0
    %2439 = vmatprep.subr.mxu0 %v442
    %2440 = vmatpush1.msra.mxu0 %v441
    %2441 = vmatprep.subr.mxu0 %v446
    %2442 = vmatpush1.msra.mxu0 %v445
    %2443 = vmatprep.subr.mxu0 %v450
    %2444 = vmatpush1.msra.mxu0 %v449
    %2445 = vmatprep.subr.mxu0 %v454
    %2446 = vmatpush1.msra.mxu0 %v453
    %2447 = vmatprep.subr.mxu0 %v458
    %2448 = vmatpush1.msra.mxu0 %v457
    %2449 = vmatprep.subr.mxu0 %v462
    %2450 = vmatpush1.msra.mxu0 %v461
    %2451 = vmatprep.subr.mxu0 %v466
    %2452 = vmatpush1.msra.mxu0 %v465
    %2453 = vmatprep.subr.mxu0 %v470
    %2454 = vmatpush1.msra.mxu0 %v469
    %2455 = vmatprep.subr.mxu0 %v474
    %2456 = vmatpush1.msra.mxu0 %v473
    %2457 = vmatprep.subr.mxu0 %v478
    %2458 = vmatpush1.msra.mxu0 %v477
    %2459 = vmatprep.subr.mxu0 %v482
    %2460 = vmatpush1.msra.mxu0 %v481
    %2461 = vmatprep.subr.mxu0 %v486
    %2462 = vmatpush1.msra.mxu0 %v485
    %2463 = vmatprep.subr.mxu0 %v490
    %2464 = vmatpush1.msra.mxu0 %v489
    %2465 = vmatprep.subr.mxu0 %v494
    %2466 = vmatpush1.msra.mxu0 %v493
    %2467 = vmatprep.subr.mxu0 %v498
    %2468 = vmatpush1.msra.mxu0 %v497
    %2469 = vmatprep.subr.mxu0 %v502
    %2470 = vmatpush1.msra.mxu0 %v501
    %2471 = vmatprep.subr.mxu0 0.0
    %2472 = vmatpush1.msra.mxu0 0.0
    %2473 = vmatprep.subr.mxu0 0.0
    %2474 = vmatpush1.msra.mxu0 0.0
    %2475 = vmatprep.subr.mxu0 0.0
    %2476 = vmatpush1.msra.mxu0 0.0
    %2477 = vmatprep.subr.mxu0 0.0
    %2478 = vmatpush1.msra.mxu0 0.0
    %2479 = vmatprep.subr.mxu0 0.0
    %2480 = vmatpush1.msra.mxu0 0.0
    %2481 = vmatprep.subr.mxu0 0.0
    %2482 = vmatpush1.msra.mxu0 0.0
    %2483 = vmatprep.subr.mxu0 0.0
    %2484 = vmatpush1.msra.mxu0 0.0
    %2485 = vmatprep.subr.mxu0 0.0
    %2486 = vmatpush1.msra.mxu0 0.0
    %2487 = vmatprep.subr.mxu0 0.0
    %2488 = vmatpush1.msra.mxu0 0.0
    %2489 = vmatprep.subr.mxu0 0.0
    %2490 = vmatpush1.msra.mxu0 0.0
    %2491 = vmatprep.subr.mxu0 0.0
    %2492 = vmatpush1.msra.mxu0 0.0
    %2493 = vmatprep.subr.mxu0 0.0
    %2494 = vmatpush1.msra.mxu0 0.0
    %2495 = vmatprep.subr.mxu0 0.0
    %2496 = vmatpush1.msra.mxu0 0.0
    %2497 = vmatprep.subr.mxu0 0.0
    %2498 = vmatpush1.msra.mxu0 0.0
    %2499 = vmatprep.subr.mxu0 0.0
    %2500 = vmatpush1.msra.mxu0 0.0
    %2501 = vmatprep.subr.mxu0 0.0
    %2502 = vmatpush1.msra.mxu0 0.0
    %2503 = vmatprep.mubr.f32.mxu0 0.0
    %2504 = vmatmul.mubr.f32.gmra.mrb[0].mxu0 %v2191
    %v2505 = vpop.f32.mrb[0].mxu0
    %v2506 = vadd.f32 0.0, %v2505
    %v2507 = vpop.f32.mrb[0].mxu0
    %v2508 = vadd.f32 0.0, %v2507
    %2509 = vdwg.mxu0
    %2510 = vmatprep.subr.mxu0 %v376
    %2511 = vmatpush1.msra.mxu0 %v375
    %2512 = vmatprep.subr.mxu0 %v380
    %2513 = vmatpush1.msra.mxu0 %v379
    %2514 = vmatprep.subr.mxu0 %v384
    %2515 = vmatpush1.msra.mxu0 %v383
    %2516 = vmatprep.subr.mxu0 %v388
    %2517 = vmatpush1.msra.mxu0 %v387
    %2518 = vmatprep.subr.mxu0 %v392
    %2519 = vmatpush1.msra.mxu0 %v391
    %2520 = vmatprep.subr.mxu0 %v396
    %2521 = vmatpush1.msra.mxu0 %v395
    %2522 = vmatprep.subr.mxu0 %v400
    %2523 = vmatpush1.msra.mxu0 %v399
    %2524 = vmatprep.subr.mxu0 %v404
    %2525 = vmatpush1.msra.mxu0 %v403
    %2526 = vmatprep.subr.mxu0 %v408
    %2527 = vmatpush1.msra.mxu0 %v407
    %2528 = vmatprep.subr.mxu0 %v412
    %2529 = vmatpush1.msra.mxu0 %v411
    %2530 = vmatprep.subr.mxu0 %v416
    %2531 = vmatpush1.msra.mxu0 %v415
    %2532 = vmatprep.subr.mxu0 %v420
    %2533 = vmatpush1.msra.mxu0 %v419
    %2534 = vmatprep.subr.mxu0 %v424
    %2535 = vmatpush1.msra.mxu0 %v423
    %2536 = vmatprep.subr.mxu0 %v428
    %2537 = vmatpush1.msra.mxu0 %v427
    %2538 = vmatprep.subr.mxu0 %v432
    %2539 = vmatpush1.msra.mxu0 %v431
    %2540 = vmatprep.subr.mxu0 %v436
    %2541 = vmatpush1.msra.mxu0 %v435
    %2542 = vmatprep.subr.mxu0 0.0
    %2543 = vmatpush1.msra.mxu0 0.0
    %2544 = vmatprep.subr.mxu0 0.0
    %2545 = vmatpush1.msra.mxu0 0.0
    %2546 = vmatprep.subr.mxu0 0.0
    %2547 = vmatpush1.msra.mxu0 0.0
    %2548 = vmatprep.subr.mxu0 0.0
    %2549 = vmatpush1.msra.mxu0 0.0
    %2550 = vmatprep.subr.mxu0 0.0
    %2551 = vmatpush1.msra.mxu0 0.0
    %2552 = vmatprep.subr.mxu0 0.0
    %2553 = vmatpush1.msra.mxu0 0.0
    %2554 = vmatprep.subr.mxu0 0.0
    %2555 = vmatpush1.msra.mxu0 0.0
    %2556 = vmatprep.subr.mxu0 0.0
    %2557 = vmatpush1.msra.mxu0 0.0
    %2558 = vmatprep.subr.mxu0 0.0
    %2559 = vmatpush1.msra.mxu0 0.0
    %2560 = vmatprep.subr.mxu0 0.0
    %2561 = vmatpush1.msra.mxu0 0.0
    %2562 = vmatprep.subr.mxu0 0.0
    %2563 = vmatpush1.msra.mxu0 0.0
    %2564 = vmatprep.subr.mxu0 0.0
    %2565 = vmatpush1.msra.mxu0 0.0
    %2566 = vmatprep.subr.mxu0 0.0
    %2567 = vmatpush1.msra.mxu0 0.0
    %2568 = vmatprep.subr.mxu0 0.0
    %2569 = vmatpush1.msra.mxu0 0.0
    %2570 = vmatprep.subr.mxu0 0.0
    %2571 = vmatpush1.msra.mxu0 0.0
    %2572 = vmatprep.subr.mxu0 0.0
    %2573 = vmatpush1.msra.mxu0 0.0
    %2574 = vmatprep.mubr.f32.mxu0 0.0
    %2575 = vmatmul.mubr.f32.gmra.mrb[0].mxu0 %v2193
    %v2576 = vpop.f32.mrb[0].mxu0
    %v2577 = vadd.f32 %v2435, %v2576
    %v2578 = vpop.f32.mrb[0].mxu0
    %v2579 = vadd.f32 %v2437, %v2578
    %2580 = vdwg.mxu0
    %2581 = vmatprep.subr.mxu0 %v378
    %2582 = vmatpush1.msra.mxu0 %v377
    %2583 = vmatprep.subr.mxu0 %v382
    %2584 = vmatpush1.msra.mxu0 %v381
    %2585 = vmatprep.subr.mxu0 %v386
    %2586 = vmatpush1.msra.mxu0 %v385
    %2587 = vmatprep.subr.mxu0 %v390
    %2588 = vmatpush1.msra.mxu0 %v389
    %2589 = vmatprep.subr.mxu0 %v394
    %2590 = vmatpush1.msra.mxu0 %v393
    %2591 = vmatprep.subr.mxu0 %v398
    %2592 = vmatpush1.msra.mxu0 %v397
    %2593 = vmatprep.subr.mxu0 %v402
    %2594 = vmatpush1.msra.mxu0 %v401
    %2595 = vmatprep.subr.mxu0 %v406
    %2596 = vmatpush1.msra.mxu0 %v405
    %2597 = vmatprep.subr.mxu0 %v410
    %2598 = vmatpush1.msra.mxu0 %v409
    %2599 = vmatprep.subr.mxu0 %v414
    %2600 = vmatpush1.msra.mxu0 %v413
    %2601 = vmatprep.subr.mxu0 %v418
    %2602 = vmatpush1.msra.mxu0 %v417
    %2603 = vmatprep.subr.mxu0 %v422
    %2604 = vmatpush1.msra.mxu0 %v421
    %2605 = vmatprep.subr.mxu0 %v426
    %2606 = vmatpush1.msra.mxu0 %v425
    %2607 = vmatprep.subr.mxu0 %v430
    %2608 = vmatpush1.msra.mxu0 %v429
    %2609 = vmatprep.subr.mxu0 %v434
    %2610 = vmatpush1.msra.mxu0 %v433
    %2611 = vmatprep.subr.mxu0 %v438
    %2612 = vmatpush1.msra.mxu0 %v437
    %2613 = vmatprep.subr.mxu0 0.0
    %2614 = vmatpush1.msra.mxu0 0.0
    %2615 = vmatprep.subr.mxu0 0.0
    %2616 = vmatpush1.msra.mxu0 0.0
    %2617 = vmatprep.subr.mxu0 0.0
    %2618 = vmatpush1.msra.mxu0 0.0
    %2619 = vmatprep.subr.mxu0 0.0
    %2620 = vmatpush1.msra.mxu0 0.0
    %2621 = vmatprep.subr.mxu0 0.0
    %2622 = vmatpush1.msra.mxu0 0.0
    %2623 = vmatprep.subr.mxu0 0.0
    %2624 = vmatpush1.msra.mxu0 0.0
    %2625 = vmatprep.subr.mxu0 0.0
    %2626 = vmatpush1.msra.mxu0 0.0
    %2627 = vmatprep.subr.mxu0 0.0
    %2628 = vmatpush1.msra.mxu0 0.0
    %2629 = vmatprep.subr.mxu0 0.0
    %2630 = vmatpush1.msra.mxu0 0.0
    %2631 = vmatprep.subr.mxu0 0.0
    %2632 = vmatpush1.msra.mxu0 0.0
    %2633 = vmatprep.subr.mxu0 0.0
    %2634 = vmatpush1.msra.mxu0 0.0
    %2635 = vmatprep.subr.mxu0 0.0
    %2636 = vmatpush1.msra.mxu0 0.0
    %2637 = vmatprep.subr.mxu0 0.0
    %2638 = vmatpush1.msra.mxu0 0.0
    %2639 = vmatprep.subr.mxu0 0.0
    %2640 = vmatpush1.msra.mxu0 0.0
    %2641 = vmatprep.subr.mxu0 0.0
    %2642 = vmatpush1.msra.mxu0 0.0
    %2643 = vmatprep.subr.mxu0 0.0
    %2644 = vmatpush1.msra.mxu0 0.0
    %2645 = vmatprep.mubr.f32.mxu0 0.0
    %2646 = vmatmul.mubr.f32.gmra.mrb[0].mxu0 %v2193
    %v2647 = vpop.f32.mrb[0].mxu0
    %v2648 = vadd.f32 %v2506, %v2647
    %v2649 = vpop.f32.mrb[0].mxu0
    %v2650 = vadd.f32 %v2508, %v2649
    %2651 = vdwg.mxu0
    %v2652 = vadd.f32 %v2577, %v1147
    %v2653 = vadd.f32 %v2579, %v1151
    %v2654 = vadd.f32 %v2648, %v1155
    %v2655 = vadd.f32 %v2650, %v1159
    %v2656 = vxor.u32 %v2652, 2147483648
    %v2657 = vxor.u32 %v2653, 2147483648
    %v2658 = vxor.u32 %v2654, 2147483648
    %v2659 = vmul.f32 %v2656, 1.442695
    %v2660 = vpow.pop %v2659
    %v2661 = vmul.f32 %v2657, 1.442695
    %v2662 = vpow.pop %v2661
    %v2663 = vmul.f32 %v2658, 1.442695
    %v2664 = vpow.pop %v2663
    %v2665 = vadd.f32 %v2660, 1.0
    %v2666 = vadd.f32 %v2662, 1.0
    %v2667 = vadd.f32 %v2664, 1.0
    %v2668 = vrcp.pop %v2665
    %v2669 = vmul.f32 1.0, %v2668
    %v2670 = vrcp.pop %v2666
    %v2671 = vmul.f32 1.0, %v2670
    %v2672 = vrcp.pop %v2667
    %v2673 = vmul.f32 1.0, %v2672
    %v2674 = vtanh.pop %v2655
    %v2675 = vmul.f32 %v2671, %v2189
    %v2676 = vmul.f32 %v2669, %v2674
    %v2677 = vadd.f32 %v2675, %v2676
    %v2678 = vtanh.pop %v2677
    %v2679 = vmul.f32 %v2673, %v2678
    %2680 = vmatprep.subr.mxu0 %v312
    %2681 = vmatpush1.msra.mxu0 %v311
    %2682 = vmatprep.subr.mxu0 %v316
    %2683 = vmatpush1.msra.mxu0 %v315
    %2684 = vmatprep.subr.mxu0 %v320
    %2685 = vmatpush1.msra.mxu0 %v319
    %2686 = vmatprep.subr.mxu0 %v324
    %2687 = vmatpush1.msra.mxu0 %v323
    %2688 = vmatprep.subr.mxu0 %v328
    %2689 = vmatpush1.msra.mxu0 %v327
    %2690 = vmatprep.subr.mxu0 %v332
    %2691 = vmatpush1.msra.mxu0 %v331
    %2692 = vmatprep.subr.mxu0 %v336
    %2693 = vmatpush1.msra.mxu0 %v335
    %2694 = vmatprep.subr.mxu0 %v340
    %2695 = vmatpush1.msra.mxu0 %v339
    %2696 = vmatprep.subr.mxu0 %v344
    %2697 = vmatpush1.msra.mxu0 %v343
    %2698 = vmatprep.subr.mxu0 %v348
    %2699 = vmatpush1.msra.mxu0 %v347
    %2700 = vmatprep.subr.mxu0 %v352
    %2701 = vmatpush1.msra.mxu0 %v351
    %2702 = vmatprep.subr.mxu0 %v356
    %2703 = vmatpush1.msra.mxu0 %v355
    %2704 = vmatprep.subr.mxu0 %v360
    %2705 = vmatpush1.msra.mxu0 %v359
    %2706 = vmatprep.subr.mxu0 %v364
    %2707 = vmatpush1.msra.mxu0 %v363
    %2708 = vmatprep.subr.mxu0 %v368
    %2709 = vmatpush1.msra.mxu0 %v367
    %2710 = vmatprep.subr.mxu0 %v372
    %2711 = vmatpush1.msra.mxu0 %v371
    %2712 = vmatprep.subr.mxu0 0.0
    %2713 = vmatpush1.msra.mxu0 0.0
    %2714 = vmatprep.subr.mxu0 0.0
    %2715 = vmatpush1.msra.mxu0 0.0
    %2716 = vmatprep.subr.mxu0 0.0
    %2717 = vmatpush1.msra.mxu0 0.0
    %2718 = vmatprep.subr.mxu0 0.0
    %2719 = vmatpush1.msra.mxu0 0.0
    %2720 = vmatprep.subr.mxu0 0.0
    %2721 = vmatpush1.msra.mxu0 0.0
    %2722 = vmatprep.subr.mxu0 0.0
    %2723 = vmatpush1.msra.mxu0 0.0
    %2724 = vmatprep.subr.mxu0 0.0
    %2725 = vmatpush1.msra.mxu0 0.0
    %2726 = vmatprep.subr.mxu0 0.0
    %2727 = vmatpush1.msra.mxu0 0.0
    %2728 = vmatprep.subr.mxu0 0.0
    %2729 = vmatpush1.msra.mxu0 0.0
    %2730 = vmatprep.subr.mxu0 0.0
    %2731 = vmatpush1.msra.mxu0 0.0
    %2732 = vmatprep.subr.mxu0 0.0
    %2733 = vmatpush1.msra.mxu0 0.0
    %2734 = vmatprep.subr.mxu0 0.0
    %2735 = vmatpush1.msra.mxu0 0.0
    %2736 = vmatprep.subr.mxu0 0.0
    %2737 = vmatpush1.msra.mxu0 0.0
    %2738 = vmatprep.subr.mxu0 0.0
    %2739 = vmatpush1.msra.mxu0 0.0
    %2740 = vmatprep.subr.mxu0 0.0
    %2741 = vmatpush1.msra.mxu0 0.0
    %2742 = vmatprep.subr.mxu0 0.0
    %2743 = vmatpush1.msra.mxu0 0.0
    %2744 = vmatprep.mubr.f32.mxu0 0.0
    %2745 = vmatmul.mubr.f32.gmra.mrb[0].mxu0 %v2367
    %v2746 = vpop.f32.mrb[0].mxu0
    %v2747 = vadd.f32 0.0, %v2746
    %v2748 = vpop.f32.mrb[0].mxu0
    %v2749 = vadd.f32 0.0, %v2748
    %2750 = vdwg.mxu0
    %2751 = vmatprep.subr.mxu0 %v314
    %2752 = vmatpush1.msra.mxu0 %v313
    %2753 = vmatprep.subr.mxu0 %v318
    %2754 = vmatpush1.msra.mxu0 %v317
    %2755 = vmatprep.subr.mxu0 %v322
    %2756 = vmatpush1.msra.mxu0 %v321
    %2757 = vmatprep.subr.mxu0 %v326
    %2758 = vmatpush1.msra.mxu0 %v325
    %2759 = vmatprep.subr.mxu0 %v330
    %2760 = vmatpush1.msra.mxu0 %v329
    %2761 = vmatprep.subr.mxu0 %v334
    %2762 = vmatpush1.msra.mxu0 %v333
    %2763 = vmatprep.subr.mxu0 %v338
    %2764 = vmatpush1.msra.mxu0 %v337
    %2765 = vmatprep.subr.mxu0 %v342
    %2766 = vmatpush1.msra.mxu0 %v341
    %2767 = vmatprep.subr.mxu0 %v346
    %2768 = vmatpush1.msra.mxu0 %v345
    %2769 = vmatprep.subr.mxu0 %v350
    %2770 = vmatpush1.msra.mxu0 %v349
    %2771 = vmatprep.subr.mxu0 %v354
    %2772 = vmatpush1.msra.mxu0 %v353
    %2773 = vmatprep.subr.mxu0 %v358
    %2774 = vmatpush1.msra.mxu0 %v357
    %2775 = vmatprep.subr.mxu0 %v362
    %2776 = vmatpush1.msra.mxu0 %v361
    %2777 = vmatprep.subr.mxu0 %v366
    %2778 = vmatpush1.msra.mxu0 %v365
    %2779 = vmatprep.subr.mxu0 %v370
    %2780 = vmatpush1.msra.mxu0 %v369
    %2781 = vmatprep.subr.mxu0 %v374
    %2782 = vmatpush1.msra.mxu0 %v373
    %2783 = vmatprep.subr.mxu0 0.0
    %2784 = vmatpush1.msra.mxu0 0.0
    %2785 = vmatprep.subr.mxu0 0.0
    %2786 = vmatpush1.msra.mxu0 0.0
    %2787 = vmatprep.subr.mxu0 0.0
    %2788 = vmatpush1.msra.mxu0 0.0
    %2789 = vmatprep.subr.mxu0 0.0
    %2790 = vmatpush1.msra.mxu0 0.0
    %2791 = vmatprep.subr.mxu0 0.0
    %2792 = vmatpush1.msra.mxu0 0.0
    %2793 = vmatprep.subr.mxu0 0.0
    %2794 = vmatpush1.msra.mxu0 0.0
    %2795 = vmatprep.subr.mxu0 0.0
    %2796 = vmatpush1.msra.mxu0 0.0
    %2797 = vmatprep.subr.mxu0 0.0
    %2798 = vmatpush1.msra.mxu0 0.0
    %2799 = vmatprep.subr.mxu0 0.0
    %2800 = vmatpush1.msra.mxu0 0.0
    %2801 = vmatprep.subr.mxu0 0.0
    %2802 = vmatpush1.msra.mxu0 0.0
    %2803 = vmatprep.subr.mxu0 0.0
    %2804 = vmatpush1.msra.mxu0 0.0
    %2805 = vmatprep.subr.mxu0 0.0
    %2806 = vmatpush1.msra.mxu0 0.0
    %2807 = vmatprep.subr.mxu0 0.0
    %2808 = vmatpush1.msra.mxu0 0.0
    %2809 = vmatprep.subr.mxu0 0.0
    %2810 = vmatpush1.msra.mxu0 0.0
    %2811 = vmatprep.subr.mxu0 0.0
    %2812 = vmatpush1.msra.mxu0 0.0
    %2813 = vmatprep.subr.mxu0 0.0
    %2814 = vmatpush1.msra.mxu0 0.0
    %2815 = vmatprep.mubr.f32.mxu0 0.0
    %2816 = vmatmul.mubr.f32.gmra.mrb[0].mxu0 %v2367
    %v2817 = vpop.f32.mrb[0].mxu0
    %v2818 = vadd.f32 0.0, %v2817
    %v2819 = vpop.f32.mrb[0].mxu0
    %v2820 = vadd.f32 0.0, %v2819
    %2821 = vdwg.mxu0
    %v2826 = vrot.slane %v2747, 6
    %v2827 = vrot.slane %v2749, 6
    %v2828 = vrot.slane %v2818, 6
    %v2829 = vrot.slane %v2820, 6
    %v2834 = vadd.f32 %v230, %v2826
    %v2835 = vadd.f32 %v232, %v2827
    %v2836 = vadd.f32 %v307, %v2828
    %v2837 = vadd.f32 %v309, %v2829
    %v2838 = vxor.u32 %v2834, 2147483648
    %v2839 = vxor.u32 %v2835, 2147483648
    %v2840 = vxor.u32 %v2836, 2147483648
    %v2841 = vmul.f32 %v2838, 1.442695
    %v2842 = vpow.pop %v2841
    %v2843 = vmul.f32 %v2839, 1.442695
    %v2844 = vpow.pop %v2843
    %v2845 = vmul.f32 %v2840, 1.442695
    %v2846 = vpow.pop %v2845
    %v2847 = vadd.f32 %v2842, 1.0
    %v2848 = vadd.f32 %v2844, 1.0
    %v2849 = vadd.f32 %v2846, 1.0
    %v2850 = vrcp.pop %v2847
    %v2851 = vmul.f32 1.0, %v2850
    %v2852 = vrcp.pop %v2848
    %v2853 = vmul.f32 1.0, %v2852
    %v2854 = vrcp.pop %v2849
    %v2855 = vmul.f32 1.0, %v2854
    %v2856 = vtanh.pop %v2837
    %v2858 = vrot.slane %v2365, 6
    %v2860 = vmul.f32 %v2853, %v2858
    %v2861 = vmul.f32 %v2851, %v2856
    %v2862 = vadd.f32 %v2860, %v2861
    %v2863 = vtanh.pop %v2862
    %v2864 = vmul.f32 %v2855, %v2863
    %2865 = vmatprep.subr.mxu0 %v440
    %2866 = vmatpush1.msra.mxu0 %v439
    %2867 = vmatprep.subr.mxu0 %v444
    %2868 = vmatpush1.msra.mxu0 %v443
    %2869 = vmatprep.subr.mxu0 %v448
    %2870 = vmatpush1.msra.mxu0 %v447
    %2871 = vmatprep.subr.mxu0 %v452
    %2872 = vmatpush1.msra.mxu0 %v451
    %2873 = vmatprep.subr.mxu0 %v456
    %2874 = vmatpush1.msra.mxu0 %v455
    %2875 = vmatprep.subr.mxu0 %v460
    %2876 = vmatpush1.msra.mxu0 %v459
    %2877 = vmatprep.subr.mxu0 %v464
    %2878 = vmatpush1.msra.mxu0 %v463
    %2879 = vmatprep.subr.mxu0 %v468
    %2880 = vmatpush1.msra.mxu0 %v467
    %2881 = vmatprep.subr.mxu0 %v472
    %2882 = vmatpush1.msra.mxu0 %v471
    %2883 = vmatprep.subr.mxu0 %v476
    %2884 = vmatpush1.msra.mxu0 %v475
    %2885 = vmatprep.subr.mxu0 %v480
    %2886 = vmatpush1.msra.mxu0 %v479
    %2887 = vmatprep.subr.mxu0 %v484
    %2888 = vmatpush1.msra.mxu0 %v483
    %2889 = vmatprep.subr.mxu0 %v488
    %2890 = vmatpush1.msra.mxu0 %v487
    %2891 = vmatprep.subr.mxu0 %v492
    %2892 = vmatpush1.msra.mxu0 %v491
    %2893 = vmatprep.subr.mxu0 %v496
    %2894 = vmatpush1.msra.mxu0 %v495
    %2895 = vmatprep.subr.mxu0 %v500
    %2896 = vmatpush1.msra.mxu0 %v499
    %2897 = vmatprep.subr.mxu0 0.0
    %2898 = vmatpush1.msra.mxu0 0.0
    %2899 = vmatprep.subr.mxu0 0.0
    %2900 = vmatpush1.msra.mxu0 0.0
    %2901 = vmatprep.subr.mxu0 0.0
    %2902 = vmatpush1.msra.mxu0 0.0
    %2903 = vmatprep.subr.mxu0 0.0
    %2904 = vmatpush1.msra.mxu0 0.0
    %2905 = vmatprep.subr.mxu0 0.0
    %2906 = vmatpush1.msra.mxu0 0.0
    %2907 = vmatprep.subr.mxu0 0.0
    %2908 = vmatpush1.msra.mxu0 0.0
    %2909 = vmatprep.subr.mxu0 0.0
    %2910 = vmatpush1.msra.mxu0 0.0
    %2911 = vmatprep.subr.mxu0 0.0
    %2912 = vmatpush1.msra.mxu0 0.0
    %2913 = vmatprep.subr.mxu0 0.0
    %2914 = vmatpush1.msra.mxu0 0.0
    %2915 = vmatprep.subr.mxu0 0.0
    %2916 = vmatpush1.msra.mxu0 0.0
    %2917 = vmatprep.subr.mxu0 0.0
    %2918 = vmatpush1.msra.mxu0 0.0
    %2919 = vmatprep.subr.mxu0 0.0
    %2920 = vmatpush1.msra.mxu0 0.0
    %2921 = vmatprep.subr.mxu0 0.0
    %2922 = vmatpush1.msra.mxu0 0.0
    %2923 = vmatprep.subr.mxu0 0.0
    %2924 = vmatpush1.msra.mxu0 0.0
    %2925 = vmatprep.subr.mxu0 0.0
    %2926 = vmatpush1.msra.mxu0 0.0
    %2927 = vmatprep.subr.mxu0 0.0
    %2928 = vmatpush1.msra.mxu0 0.0
    %2929 = vmatprep.mubr.f32.mxu0 0.0
    %2930 = vmatmul.mubr.f32.gmra.mrb[0].mxu0 %v2679
    %v2931 = vpop.f32.mrb[0].mxu0
    %v2932 = vadd.f32 0.0, %v2931
    %v2933 = vpop.f32.mrb[0].mxu0
    %v2934 = vadd.f32 0.0, %v2933
    %2935 = vdwg.mxu0
    %2936 = vmatprep.subr.mxu0 %v442
    %2937 = vmatpush1.msra.mxu0 %v441
    %2938 = vmatprep.subr.mxu0 %v446
    %2939 = vmatpush1.msra.mxu0 %v445
    %2940 = vmatprep.subr.mxu0 %v450
    %2941 = vmatpush1.msra.mxu0 %v449
    %2942 = vmatprep.subr.mxu0 %v454
    %2943 = vmatpush1.msra.mxu0 %v453
    %2944 = vmatprep.subr.mxu0 %v458
    %2945 = vmatpush1.msra.mxu0 %v457
    %2946 = vmatprep.subr.mxu0 %v462
    %2947 = vmatpush1.msra.mxu0 %v461
    %2948 = vmatprep.subr.mxu0 %v466
    %2949 = vmatpush1.msra.mxu0 %v465
    %2950 = vmatprep.subr.mxu0 %v470
    %2951 = vmatpush1.msra.mxu0 %v469
    %2952 = vmatprep.subr.mxu0 %v474
    %2953 = vmatpush1.msra.mxu0 %v473
    %2954 = vmatprep.subr.mxu0 %v478
    %2955 = vmatpush1.msra.mxu0 %v477
    %2956 = vmatprep.subr.mxu0 %v482
    %2957 = vmatpush1.msra.mxu0 %v481
    %2958 = vmatprep.subr.mxu0 %v486
    %2959 = vmatpush1.msra.mxu0 %v485
    %2960 = vmatprep.subr.mxu0 %v490
    %2961 = vmatpush1.msra.mxu0 %v489
    %2962 = vmatprep.subr.mxu0 %v494
    %2963 = vmatpush1.msra.mxu0 %v493
    %2964 = vmatprep.subr.mxu0 %v498
    %2965 = vmatpush1.msra.mxu0 %v497
    %2966 = vmatprep.subr.mxu0 %v502
    %2967 = vmatpush1.msra.mxu0 %v501
    %2968 = vmatprep.subr.mxu0 0.0
    %2969 = vmatpush1.msra.mxu0 0.0
    %2970 = vmatprep.subr.mxu0 0.0
    %2971 = vmatpush1.msra.mxu0 0.0
    %2972 = vmatprep.subr.mxu0 0.0
    %2973 = vmatpush1.msra.mxu0 0.0
    %2974 = vmatprep.subr.mxu0 0.0
    %2975 = vmatpush1.msra.mxu0 0.0
    %2976 = vmatprep.subr.mxu0 0.0
    %2977 = vmatpush1.msra.mxu0 0.0
    %2978 = vmatprep.subr.mxu0 0.0
    %2979 = vmatpush1.msra.mxu0 0.0
    %2980 = vmatprep.subr.mxu0 0.0
    %2981 = vmatpush1.msra.mxu0 0.0
    %2982 = vmatprep.subr.mxu0 0.0
    %2983 = vmatpush1.msra.mxu0 0.0
    %2984 = vmatprep.subr.mxu0 0.0
    %2985 = vmatpush1.msra.mxu0 0.0
    %2986 = vmatprep.subr.mxu0 0.0
    %2987 = vmatpush1.msra.mxu0 0.0
    %2988 = vmatprep.subr.mxu0 0.0
    %2989 = vmatpush1.msra.mxu0 0.0
    %2990 = vmatprep.subr.mxu0 0.0
    %2991 = vmatpush1.msra.mxu0 0.0
    %2992 = vmatprep.subr.mxu0 0.0
    %2993 = vmatpush1.msra.mxu0 0.0
    %2994 = vmatprep.subr.mxu0 0.0
    %2995 = vmatpush1.msra.mxu0 0.0
    %2996 = vmatprep.subr.mxu0 0.0
    %2997 = vmatpush1.msra.mxu0 0.0
    %2998 = vmatprep.subr.mxu0 0.0
    %2999 = vmatpush1.msra.mxu0 0.0
    %3000 = vmatprep.mubr.f32.mxu0 0.0
    %3001 = vmatmul.mubr.f32.gmra.mrb[0].mxu0 %v2679
    %v3002 = vpop.f32.mrb[0].mxu0
    %v3003 = vadd.f32 0.0, %v3002
    %v3004 = vpop.f32.mrb[0].mxu0
    %v3005 = vadd.f32 0.0, %v3004
    %3006 = vdwg.mxu0
    %3007 = vmatprep.subr.mxu0 %v376
    %3008 = vmatpush1.msra.mxu0 %v375
    %3009 = vmatprep.subr.mxu0 %v380
    %3010 = vmatpush1.msra.mxu0 %v379
    %3011 = vmatprep.subr.mxu0 %v384
    %3012 = vmatpush1.msra.mxu0 %v383
    %3013 = vmatprep.subr.mxu0 %v388
    %3014 = vmatpush1.msra.mxu0 %v387
    %3015 = vmatprep.subr.mxu0 %v392
    %3016 = vmatpush1.msra.mxu0 %v391
    %3017 = vmatprep.subr.mxu0 %v396
    %3018 = vmatpush1.msra.mxu0 %v395
    %3019 = vmatprep.subr.mxu0 %v400
    %3020 = vmatpush1.msra.mxu0 %v399
    %3021 = vmatprep.subr.mxu0 %v404
    %3022 = vmatpush1.msra.mxu0 %v403
    %3023 = vmatprep.subr.mxu0 %v408
    %3024 = vmatpush1.msra.mxu0 %v407
    %3025 = vmatprep.subr.mxu0 %v412
    %3026 = vmatpush1.msra.mxu0 %v411
    %3027 = vmatprep.subr.mxu0 %v416
    %3028 = vmatpush1.msra.mxu0 %v415
    %3029 = vmatprep.subr.mxu0 %v420
    %3030 = vmatpush1.msra.mxu0 %v419
    %3031 = vmatprep.subr.mxu0 %v424
    %3032 = vmatpush1.msra.mxu0 %v423
    %3033 = vmatprep.subr.mxu0 %v428
    %3034 = vmatpush1.msra.mxu0 %v427
    %3035 = vmatprep.subr.mxu0 %v432
    %3036 = vmatpush1.msra.mxu0 %v431
    %3037 = vmatprep.subr.mxu0 %v436
    %3038 = vmatpush1.msra.mxu0 %v435
    %3039 = vmatprep.subr.mxu0 0.0
    %3040 = vmatpush1.msra.mxu0 0.0
    %3041 = vmatprep.subr.mxu0 0.0
    %3042 = vmatpush1.msra.mxu0 0.0
    %3043 = vmatprep.subr.mxu0 0.0
    %3044 = vmatpush1.msra.mxu0 0.0
    %3045 = vmatprep.subr.mxu0 0.0
    %3046 = vmatpush1.msra.mxu0 0.0
    %3047 = vmatprep.subr.mxu0 0.0
    %3048 = vmatpush1.msra.mxu0 0.0
    %3049 = vmatprep.subr.mxu0 0.0
    %3050 = vmatpush1.msra.mxu0 0.0
    %3051 = vmatprep.subr.mxu0 0.0
    %3052 = vmatpush1.msra.mxu0 0.0
    %3053 = vmatprep.subr.mxu0 0.0
    %3054 = vmatpush1.msra.mxu0 0.0
    %3055 = vmatprep.subr.mxu0 0.0
    %3056 = vmatpush1.msra.mxu0 0.0
    %3057 = vmatprep.subr.mxu0 0.0
    %3058 = vmatpush1.msra.mxu0 0.0
    %3059 = vmatprep.subr.mxu0 0.0
    %3060 = vmatpush1.msra.mxu0 0.0
    %3061 = vmatprep.subr.mxu0 0.0
    %3062 = vmatpush1.msra.mxu0 0.0
    %3063 = vmatprep.subr.mxu0 0.0
    %3064 = vmatpush1.msra.mxu0 0.0
    %3065 = vmatprep.subr.mxu0 0.0
    %3066 = vmatpush1.msra.mxu0 0.0
    %3067 = vmatprep.subr.mxu0 0.0
    %3068 = vmatpush1.msra.mxu0 0.0
    %3069 = vmatprep.subr.mxu0 0.0
    %3070 = vmatpush1.msra.mxu0 0.0
    %3071 = vmatprep.mubr.f32.mxu0 0.0
    %3072 = vmatmul.mubr.f32.gmra.mrb[0].mxu0 %v2367
    %v3073 = vpop.f32.mrb[0].mxu0
    %v3074 = vadd.f32 %v2932, %v3073
    %v3075 = vpop.f32.mrb[0].mxu0
    %v3076 = vadd.f32 %v2934, %v3075
    %3077 = vdwg.mxu0
    %3078 = vmatprep.subr.mxu0 %v378
    %3079 = vmatpush1.msra.mxu0 %v377
    %3080 = vmatprep.subr.mxu0 %v382
    %3081 = vmatpush1.msra.mxu0 %v381
    %3082 = vmatprep.subr.mxu0 %v386
    %3083 = vmatpush1.msra.mxu0 %v385
    %3084 = vmatprep.subr.mxu0 %v390
    %3085 = vmatpush1.msra.mxu0 %v389
    %3086 = vmatprep.subr.mxu0 %v394
    %3087 = vmatpush1.msra.mxu0 %v393
    %3088 = vmatprep.subr.mxu0 %v398
    %3089 = vmatpush1.msra.mxu0 %v397
    %3090 = vmatprep.subr.mxu0 %v402
    %3091 = vmatpush1.msra.mxu0 %v401
    %3092 = vmatprep.subr.mxu0 %v406
    %3093 = vmatpush1.msra.mxu0 %v405
    %3094 = vmatprep.subr.mxu0 %v410
    %3095 = vmatpush1.msra.mxu0 %v409
    %3096 = vmatprep.subr.mxu0 %v414
    %3097 = vmatpush1.msra.mxu0 %v413
    %3098 = vmatprep.subr.mxu0 %v418
    %3099 = vmatpush1.msra.mxu0 %v417
    %3100 = vmatprep.subr.mxu0 %v422
    %3101 = vmatpush1.msra.mxu0 %v421
    %3102 = vmatprep.subr.mxu0 %v426
    %3103 = vmatpush1.msra.mxu0 %v425
    %3104 = vmatprep.subr.mxu0 %v430
    %3105 = vmatpush1.msra.mxu0 %v429
    %3106 = vmatprep.subr.mxu0 %v434
    %3107 = vmatpush1.msra.mxu0 %v433
    %3108 = vmatprep.subr.mxu0 %v438
    %3109 = vmatpush1.msra.mxu0 %v437
    %3110 = vmatprep.subr.mxu0 0.0
    %3111 = vmatpush1.msra.mxu0 0.0
    %3112 = vmatprep.subr.mxu0 0.0
    %3113 = vmatpush1.msra.mxu0 0.0
    %3114 = vmatprep.subr.mxu0 0.0
    %3115 = vmatpush1.msra.mxu0 0.0
    %3116 = vmatprep.subr.mxu0 0.0
    %3117 = vmatpush1.msra.mxu0 0.0
    %3118 = vmatprep.subr.mxu0 0.0
    %3119 = vmatpush1.msra.mxu0 0.0
    %3120 = vmatprep.subr.mxu0 0.0
    %3121 = vmatpush1.msra.mxu0 0.0
    %3122 = vmatprep.subr.mxu0 0.0
    %3123 = vmatpush1.msra.mxu0 0.0
    %3124 = vmatprep.subr.mxu0 0.0
    %3125 = vmatpush1.msra.mxu0 0.0
    %3126 = vmatprep.subr.mxu0 0.0
    %3127 = vmatpush1.msra.mxu0 0.0
    %3128 = vmatprep.subr.mxu0 0.0
    %3129 = vmatpush1.msra.mxu0 0.0
    %3130 = vmatprep.subr.mxu0 0.0
    %3131 = vmatpush1.msra.mxu0 0.0
    %3132 = vmatprep.subr.mxu0 0.0
    %3133 = vmatpush1.msra.mxu0 0.0
    %3134 = vmatprep.subr.mxu0 0.0
    %3135 = vmatpush1.msra.mxu0 0.0
    %3136 = vmatprep.subr.mxu0 0.0
    %3137 = vmatpush1.msra.mxu0 0.0
    %3138 = vmatprep.subr.mxu0 0.0
    %3139 = vmatpush1.msra.mxu0 0.0
    %3140 = vmatprep.subr.mxu0 0.0
    %3141 = vmatpush1.msra.mxu0 0.0
    %3142 = vmatprep.mubr.f32.mxu0 0.0
    %3143 = vmatmul.mubr.f32.gmra.mrb[0].mxu0 %v2367
    %v3144 = vpop.f32.mrb[0].mxu0
    %v3145 = vadd.f32 %v3003, %v3144
    %v3146 = vpop.f32.mrb[0].mxu0
    %v3147 = vadd.f32 %v3005, %v3146
    %3148 = vdwg.mxu0
    %v3149 = vadd.f32 %v3074, %v1147
    %v3150 = vadd.f32 %v3076, %v1151
    %v3151 = vadd.f32 %v3145, %v1155
    %v3152 = vadd.f32 %v3147, %v1159
    %v3153 = vxor.u32 %v3149, 2147483648
    %v3154 = vxor.u32 %v3150, 2147483648
    %v3155 = vxor.u32 %v3151, 2147483648
    %v3156 = vmul.f32 %v3153, 1.442695
    %v3157 = vpow.pop %v3156
    %v3158 = vmul.f32 %v3154, 1.442695
    %v3159 = vpow.pop %v3158
    %v3160 = vmul.f32 %v3155, 1.442695
    %v3161 = vpow.pop %v3160
    %v3162 = vadd.f32 %v3157, 1.0
    %v3163 = vadd.f32 %v3159, 1.0
    %v3164 = vadd.f32 %v3161, 1.0
    %v3165 = vrcp.pop %v3162
    %v3166 = vmul.f32 1.0, %v3165
    %v3167 = vrcp.pop %v3163
    %v3168 = vmul.f32 1.0, %v3167
    %v3169 = vrcp.pop %v3164
    %v3170 = vmul.f32 1.0, %v3169
    %v3171 = vtanh.pop %v3152
    %v3172 = vmul.f32 %v3168, %v2677
    %v3173 = vmul.f32 %v3166, %v3171
    %v3174 = vadd.f32 %v3172, %v3173
    %v3175 = vtanh.pop %v3174
    %v3176 = vmul.f32 %v3170, %v3175
    %v3178 = vrot.slane %v2864, 2
    %3180 = vmatprep.subr.mxu0 %v312
    %3181 = vmatpush1.msra.mxu0 %v311
    %3182 = vmatprep.subr.mxu0 %v316
    %3183 = vmatpush1.msra.mxu0 %v315
    %3184 = vmatprep.subr.mxu0 %v320
    %3185 = vmatpush1.msra.mxu0 %v319
    %3186 = vmatprep.subr.mxu0 %v324
    %3187 = vmatpush1.msra.mxu0 %v323
    %3188 = vmatprep.subr.mxu0 %v328
    %3189 = vmatpush1.msra.mxu0 %v327
    %3190 = vmatprep.subr.mxu0 %v332
    %3191 = vmatpush1.msra.mxu0 %v331
    %3192 = vmatprep.subr.mxu0 %v336
    %3193 = vmatpush1.msra.mxu0 %v335
    %3194 = vmatprep.subr.mxu0 %v340
    %3195 = vmatpush1.msra.mxu0 %v339
    %3196 = vmatprep.subr.mxu0 %v344
    %3197 = vmatpush1.msra.mxu0 %v343
    %3198 = vmatprep.subr.mxu0 %v348
    %3199 = vmatpush1.msra.mxu0 %v347
    %3200 = vmatprep.subr.mxu0 %v352
    %3201 = vmatpush1.msra.mxu0 %v351
    %3202 = vmatprep.subr.mxu0 %v356
    %3203 = vmatpush1.msra.mxu0 %v355
    %3204 = vmatprep.subr.mxu0 %v360
    %3205 = vmatpush1.msra.mxu0 %v359
    %3206 = vmatprep.subr.mxu0 %v364
    %3207 = vmatpush1.msra.mxu0 %v363
    %3208 = vmatprep.subr.mxu0 %v368
    %3209 = vmatpush1.msra.mxu0 %v367
    %3210 = vmatprep.subr.mxu0 %v372
    %3211 = vmatpush1.msra.mxu0 %v371
    %3212 = vmatprep.subr.mxu0 0.0
    %3213 = vmatpush1.msra.mxu0 0.0
    %3214 = vmatprep.subr.mxu0 0.0
    %3215 = vmatpush1.msra.mxu0 0.0
    %3216 = vmatprep.subr.mxu0 0.0
    %3217 = vmatpush1.msra.mxu0 0.0
    %3218 = vmatprep.subr.mxu0 0.0
    %3219 = vmatpush1.msra.mxu0 0.0
    %3220 = vmatprep.subr.mxu0 0.0
    %3221 = vmatpush1.msra.mxu0 0.0
    %3222 = vmatprep.subr.mxu0 0.0
    %3223 = vmatpush1.msra.mxu0 0.0
    %3224 = vmatprep.subr.mxu0 0.0
    %3225 = vmatpush1.msra.mxu0 0.0
    %3226 = vmatprep.subr.mxu0 0.0
    %3227 = vmatpush1.msra.mxu0 0.0
    %3228 = vmatprep.subr.mxu0 0.0
    %3229 = vmatpush1.msra.mxu0 0.0
    %3230 = vmatprep.subr.mxu0 0.0
    %3231 = vmatpush1.msra.mxu0 0.0
    %3232 = vmatprep.subr.mxu0 0.0
    %3233 = vmatpush1.msra.mxu0 0.0
    %3234 = vmatprep.subr.mxu0 0.0
    %3235 = vmatpush1.msra.mxu0 0.0
    %3236 = vmatprep.subr.mxu0 0.0
    %3237 = vmatpush1.msra.mxu0 0.0
    %3238 = vmatprep.subr.mxu0 0.0
    %3239 = vmatpush1.msra.mxu0 0.0
    %3240 = vmatprep.subr.mxu0 0.0
    %3241 = vmatpush1.msra.mxu0 0.0
    %3242 = vmatprep.subr.mxu0 0.0
    %3243 = vmatpush1.msra.mxu0 0.0
    %3244 = vmatprep.mubr.f32.mxu0 0.0
    %3245 = vmatmul.mubr.f32.gmra.mrb[0].mxu0 %v3178
    %v3246 = vpop.f32.mrb[0].mxu0
    %v3247 = vadd.f32 0.0, %v3246
    %v3248 = vpop.f32.mrb[0].mxu0
    %v3249 = vadd.f32 0.0, %v3248
    %3250 = vdwg.mxu0
    %3251 = vmatprep.subr.mxu0 %v314
    %3252 = vmatpush1.msra.mxu0 %v313
    %3253 = vmatprep.subr.mxu0 %v318
    %3254 = vmatpush1.msra.mxu0 %v317
    %3255 = vmatprep.subr.mxu0 %v322
    %3256 = vmatpush1.msra.mxu0 %v321
    %3257 = vmatprep.subr.mxu0 %v326
    %3258 = vmatpush1.msra.mxu0 %v325
    %3259 = vmatprep.subr.mxu0 %v330
    %3260 = vmatpush1.msra.mxu0 %v329
    %3261 = vmatprep.subr.mxu0 %v334
    %3262 = vmatpush1.msra.mxu0 %v333
    %3263 = vmatprep.subr.mxu0 %v338
    %3264 = vmatpush1.msra.mxu0 %v337
    %3265 = vmatprep.subr.mxu0 %v342
    %3266 = vmatpush1.msra.mxu0 %v341
    %3267 = vmatprep.subr.mxu0 %v346
    %3268 = vmatpush1.msra.mxu0 %v345
    %3269 = vmatprep.subr.mxu0 %v350
    %3270 = vmatpush1.msra.mxu0 %v349
    %3271 = vmatprep.subr.mxu0 %v354
    %3272 = vmatpush1.msra.mxu0 %v353
    %3273 = vmatprep.subr.mxu0 %v358
    %3274 = vmatpush1.msra.mxu0 %v357
    %3275 = vmatprep.subr.mxu0 %v362
    %3276 = vmatpush1.msra.mxu0 %v361
    %3277 = vmatprep.subr.mxu0 %v366
    %3278 = vmatpush1.msra.mxu0 %v365
    %3279 = vmatprep.subr.mxu0 %v370
    %3280 = vmatpush1.msra.mxu0 %v369
    %3281 = vmatprep.subr.mxu0 %v374
    %3282 = vmatpush1.msra.mxu0 %v373
    %3283 = vmatprep.subr.mxu0 0.0
    %3284 = vmatpush1.msra.mxu0 0.0
    %3285 = vmatprep.subr.mxu0 0.0
    %3286 = vmatpush1.msra.mxu0 0.0
    %3287 = vmatprep.subr.mxu0 0.0
    %3288 = vmatpush1.msra.mxu0 0.0
    %3289 = vmatprep.subr.mxu0 0.0
    %3290 = vmatpush1.msra.mxu0 0.0
    %3291 = vmatprep.subr.mxu0 0.0
    %3292 = vmatpush1.msra.mxu0 0.0
    %3293 = vmatprep.subr.mxu0 0.0
    %3294 = vmatpush1.msra.mxu0 0.0
    %3295 = vmatprep.subr.mxu0 0.0
    %3296 = vmatpush1.msra.mxu0 0.0
    %3297 = vmatprep.subr.mxu0 0.0
    %3298 = vmatpush1.msra.mxu0 0.0
    %3299 = vmatprep.subr.mxu0 0.0
    %3300 = vmatpush1.msra.mxu0 0.0
    %3301 = vmatprep.subr.mxu0 0.0
    %3302 = vmatpush1.msra.mxu0 0.0
    %3303 = vmatprep.subr.mxu0 0.0
    %3304 = vmatpush1.msra.mxu0 0.0
    %3305 = vmatprep.subr.mxu0 0.0
    %3306 = vmatpush1.msra.mxu0 0.0
    %3307 = vmatprep.subr.mxu0 0.0
    %3308 = vmatpush1.msra.mxu0 0.0
    %3309 = vmatprep.subr.mxu0 0.0
    %3310 = vmatpush1.msra.mxu0 0.0
    %3311 = vmatprep.subr.mxu0 0.0
    %3312 = vmatpush1.msra.mxu0 0.0
    %3313 = vmatprep.subr.mxu0 0.0
    %3314 = vmatpush1.msra.mxu0 0.0
    %3315 = vmatprep.mubr.f32.mxu0 0.0
    %3316 = vmatmul.mubr.f32.gmra.mrb[0].mxu0 %v3178
    %v3317 = vpop.f32.mrb[0].mxu0
    %v3318 = vadd.f32 0.0, %v3317
    %v3319 = vpop.f32.mrb[0].mxu0
    %v3320 = vadd.f32 0.0, %v3319
    %3321 = vdwg.mxu0
    %v3326 = vrot.slane %v3247, 4
    %v3327 = vrot.slane %v3249, 4
    %v3328 = vrot.slane %v3318, 4
    %v3329 = vrot.slane %v3320, 4
    %v3334 = vadd.f32 %v230, %v3326
    %v3335 = vadd.f32 %v232, %v3327
    %v3336 = vadd.f32 %v307, %v3328
    %v3337 = vadd.f32 %v309, %v3329
    %v3338 = vxor.u32 %v3334, 2147483648
    %v3339 = vxor.u32 %v3335, 2147483648
    %v3340 = vxor.u32 %v3336, 2147483648
    %v3341 = vmul.f32 %v3338, 1.442695
    %v3342 = vpow.pop %v3341
    %v3343 = vmul.f32 %v3339, 1.442695
    %v3344 = vpow.pop %v3343
    %v3345 = vmul.f32 %v3340, 1.442695
    %v3346 = vpow.pop %v3345
    %v3347 = vadd.f32 %v3342, 1.0
    %v3348 = vadd.f32 %v3344, 1.0
    %v3349 = vadd.f32 %v3346, 1.0
    %v3350 = vrcp.pop %v3347
    %v3351 = vmul.f32 1.0, %v3350
    %v3352 = vrcp.pop %v3348
    %v3353 = vmul.f32 1.0, %v3352
    %v3354 = vrcp.pop %v3349
    %v3355 = vmul.f32 1.0, %v3354
    %v3356 = vtanh.pop %v3337
    %v3358 = vrot.slane %v2862, 6
    %v3360 = vmul.f32 %v3353, %v3358
    %v3361 = vmul.f32 %v3351, %v3356
    %v3362 = vadd.f32 %v3360, %v3361
    %v3363 = vtanh.pop %v3362
    %v3364 = vmul.f32 %v3355, %v3363
    %3365 = vmatprep.subr.mxu0 %v440
    %3366 = vmatpush1.msra.mxu0 %v439
    %3367 = vmatprep.subr.mxu0 %v444
    %3368 = vmatpush1.msra.mxu0 %v443
    %3369 = vmatprep.subr.mxu0 %v448
    %3370 = vmatpush1.msra.mxu0 %v447
    %3371 = vmatprep.subr.mxu0 %v452
    %3372 = vmatpush1.msra.mxu0 %v451
    %3373 = vmatprep.subr.mxu0 %v456
    %3374 = vmatpush1.msra.mxu0 %v455
    %3375 = vmatprep.subr.mxu0 %v460
    %3376 = vmatpush1.msra.mxu0 %v459
    %3377 = vmatprep.subr.mxu0 %v464
    %3378 = vmatpush1.msra.mxu0 %v463
    %3379 = vmatprep.subr.mxu0 %v468
    %3380 = vmatpush1.msra.mxu0 %v467
    %3381 = vmatprep.subr.mxu0 %v472
    %3382 = vmatpush1.msra.mxu0 %v471
    %3383 = vmatprep.subr.mxu0 %v476
    %3384 = vmatpush1.msra.mxu0 %v475
    %3385 = vmatprep.subr.mxu0 %v480
    %3386 = vmatpush1.msra.mxu0 %v479
    %3387 = vmatprep.subr.mxu0 %v484
    %3388 = vmatpush1.msra.mxu0 %v483
    %3389 = vmatprep.subr.mxu0 %v488
    %3390 = vmatpush1.msra.mxu0 %v487
    %3391 = vmatprep.subr.mxu0 %v492
    %3392 = vmatpush1.msra.mxu0 %v491
    %3393 = vmatprep.subr.mxu0 %v496
    %3394 = vmatpush1.msra.mxu0 %v495
    %3395 = vmatprep.subr.mxu0 %v500
    %3396 = vmatpush1.msra.mxu0 %v499
    %3397 = vmatprep.subr.mxu0 0.0
    %3398 = vmatpush1.msra.mxu0 0.0
    %3399 = vmatprep.subr.mxu0 0.0
    %3400 = vmatpush1.msra.mxu0 0.0
    %3401 = vmatprep.subr.mxu0 0.0
    %3402 = vmatpush1.msra.mxu0 0.0
    %3403 = vmatprep.subr.mxu0 0.0
    %3404 = vmatpush1.msra.mxu0 0.0
    %3405 = vmatprep.subr.mxu0 0.0
    %3406 = vmatpush1.msra.mxu0 0.0
    %3407 = vmatprep.subr.mxu0 0.0
    %3408 = vmatpush1.msra.mxu0 0.0
    %3409 = vmatprep.subr.mxu0 0.0
    %3410 = vmatpush1.msra.mxu0 0.0
    %3411 = vmatprep.subr.mxu0 0.0
    %3412 = vmatpush1.msra.mxu0 0.0
    %3413 = vmatprep.subr.mxu0 0.0
    %3414 = vmatpush1.msra.mxu0 0.0
    %3415 = vmatprep.subr.mxu0 0.0
    %3416 = vmatpush1.msra.mxu0 0.0
    %3417 = vmatprep.subr.mxu0 0.0
    %3418 = vmatpush1.msra.mxu0 0.0
    %3419 = vmatprep.subr.mxu0 0.0
    %3420 = vmatpush1.msra.mxu0 0.0
    %3421 = vmatprep.subr.mxu0 0.0
    %3422 = vmatpush1.msra.mxu0 0.0
    %3423 = vmatprep.subr.mxu0 0.0
    %3424 = vmatpush1.msra.mxu0 0.0
    %3425 = vmatprep.subr.mxu0 0.0
    %3426 = vmatpush1.msra.mxu0 0.0
    %3427 = vmatprep.subr.mxu0 0.0
    %3428 = vmatpush1.msra.mxu0 0.0
    %3429 = vmatprep.mubr.f32.mxu0 0.0
    %3430 = vmatmul.mubr.f32.gmra.mrb[0].mxu0 %v3176
    %v3431 = vpop.f32.mrb[0].mxu0
    %v3432 = vadd.f32 0.0, %v3431
    %v3433 = vpop.f32.mrb[0].mxu0
    %v3434 = vadd.f32 0.0, %v3433
    %3435 = vdwg.mxu0
    %3436 = vmatprep.subr.mxu0 %v442
    %3437 = vmatpush1.msra.mxu0 %v441
    %3438 = vmatprep.subr.mxu0 %v446
    %3439 = vmatpush1.msra.mxu0 %v445
    %3440 = vmatprep.subr.mxu0 %v450
    %3441 = vmatpush1.msra.mxu0 %v449
    %3442 = vmatprep.subr.mxu0 %v454
    %3443 = vmatpush1.msra.mxu0 %v453
    %3444 = vmatprep.subr.mxu0 %v458
    %3445 = vmatpush1.msra.mxu0 %v457
    %3446 = vmatprep.subr.mxu0 %v462
    %3447 = vmatpush1.msra.mxu0 %v461
    %3448 = vmatprep.subr.mxu0 %v466
    %3449 = vmatpush1.msra.mxu0 %v465
    %3450 = vmatprep.subr.mxu0 %v470
    %3451 = vmatpush1.msra.mxu0 %v469
    %3452 = vmatprep.subr.mxu0 %v474
    %3453 = vmatpush1.msra.mxu0 %v473
    %3454 = vmatprep.subr.mxu0 %v478
    %3455 = vmatpush1.msra.mxu0 %v477
    %3456 = vmatprep.subr.mxu0 %v482
    %3457 = vmatpush1.msra.mxu0 %v481
    %3458 = vmatprep.subr.mxu0 %v486
    %3459 = vmatpush1.msra.mxu0 %v485
    %3460 = vmatprep.subr.mxu0 %v490
    %3461 = vmatpush1.msra.mxu0 %v489
    %3462 = vmatprep.subr.mxu0 %v494
    %3463 = vmatpush1.msra.mxu0 %v493
    %3464 = vmatprep.subr.mxu0 %v498
    %3465 = vmatpush1.msra.mxu0 %v497
    %3466 = vmatprep.subr.mxu0 %v502
    %3467 = vmatpush1.msra.mxu0 %v501
    %3468 = vmatprep.subr.mxu0 0.0
    %3469 = vmatpush1.msra.mxu0 0.0
    %3470 = vmatprep.subr.mxu0 0.0
    %3471 = vmatpush1.msra.mxu0 0.0
    %3472 = vmatprep.subr.mxu0 0.0
    %3473 = vmatpush1.msra.mxu0 0.0
    %3474 = vmatprep.subr.mxu0 0.0
    %3475 = vmatpush1.msra.mxu0 0.0
    %3476 = vmatprep.subr.mxu0 0.0
    %3477 = vmatpush1.msra.mxu0 0.0
    %3478 = vmatprep.subr.mxu0 0.0
    %3479 = vmatpush1.msra.mxu0 0.0
    %3480 = vmatprep.subr.mxu0 0.0
    %3481 = vmatpush1.msra.mxu0 0.0
    %3482 = vmatprep.subr.mxu0 0.0
    %3483 = vmatpush1.msra.mxu0 0.0
    %3484 = vmatprep.subr.mxu0 0.0
    %3485 = vmatpush1.msra.mxu0 0.0
    %3486 = vmatprep.subr.mxu0 0.0
    %3487 = vmatpush1.msra.mxu0 0.0
    %3488 = vmatprep.subr.mxu0 0.0
    %3489 = vmatpush1.msra.mxu0 0.0
    %3490 = vmatprep.subr.mxu0 0.0
    %3491 = vmatpush1.msra.mxu0 0.0
    %3492 = vmatprep.subr.mxu0 0.0
    %3493 = vmatpush1.msra.mxu0 0.0
    %3494 = vmatprep.subr.mxu0 0.0
    %3495 = vmatpush1.msra.mxu0 0.0
    %3496 = vmatprep.subr.mxu0 0.0
    %3497 = vmatpush1.msra.mxu0 0.0
    %3498 = vmatprep.subr.mxu0 0.0
    %3499 = vmatpush1.msra.mxu0 0.0
    %3500 = vmatprep.mubr.f32.mxu0 0.0
    %3501 = vmatmul.mubr.f32.gmra.mrb[0].mxu0 %v3176
    %v3502 = vpop.f32.mrb[0].mxu0
    %v3503 = vadd.f32 0.0, %v3502
    %v3504 = vpop.f32.mrb[0].mxu0
    %v3505 = vadd.f32 0.0, %v3504
    %3506 = vdwg.mxu0
    %3507 = vmatprep.subr.mxu0 %v376
    %3508 = vmatpush1.msra.mxu0 %v375
    %3509 = vmatprep.subr.mxu0 %v380
    %3510 = vmatpush1.msra.mxu0 %v379
    %3511 = vmatprep.subr.mxu0 %v384
    %3512 = vmatpush1.msra.mxu0 %v383
    %3513 = vmatprep.subr.mxu0 %v388
    %3514 = vmatpush1.msra.mxu0 %v387
    %3515 = vmatprep.subr.mxu0 %v392
    %3516 = vmatpush1.msra.mxu0 %v391
    %3517 = vmatprep.subr.mxu0 %v396
    %3518 = vmatpush1.msra.mxu0 %v395
    %3519 = vmatprep.subr.mxu0 %v400
    %3520 = vmatpush1.msra.mxu0 %v399
    %3521 = vmatprep.subr.mxu0 %v404
    %3522 = vmatpush1.msra.mxu0 %v403
    %3523 = vmatprep.subr.mxu0 %v408
    %3524 = vmatpush1.msra.mxu0 %v407
    %3525 = vmatprep.subr.mxu0 %v412
    %3526 = vmatpush1.msra.mxu0 %v411
    %3527 = vmatprep.subr.mxu0 %v416
    %3528 = vmatpush1.msra.mxu0 %v415
    %3529 = vmatprep.subr.mxu0 %v420
    %3530 = vmatpush1.msra.mxu0 %v419
    %3531 = vmatprep.subr.mxu0 %v424
    %3532 = vmatpush1.msra.mxu0 %v423
    %3533 = vmatprep.subr.mxu0 %v428
    %3534 = vmatpush1.msra.mxu0 %v427
    %3535 = vmatprep.subr.mxu0 %v432
    %3536 = vmatpush1.msra.mxu0 %v431
    %3537 = vmatprep.subr.mxu0 %v436
    %3538 = vmatpush1.msra.mxu0 %v435
    %3539 = vmatprep.subr.mxu0 0.0
    %3540 = vmatpush1.msra.mxu0 0.0
    %3541 = vmatprep.subr.mxu0 0.0
    %3542 = vmatpush1.msra.mxu0 0.0
    %3543 = vmatprep.subr.mxu0 0.0
    %3544 = vmatpush1.msra.mxu0 0.0
    %3545 = vmatprep.subr.mxu0 0.0
    %3546 = vmatpush1.msra.mxu0 0.0
    %3547 = vmatprep.subr.mxu0 0.0
    %3548 = vmatpush1.msra.mxu0 0.0
    %3549 = vmatprep.subr.mxu0 0.0
    %3550 = vmatpush1.msra.mxu0 0.0
    %3551 = vmatprep.subr.mxu0 0.0
    %3552 = vmatpush1.msra.mxu0 0.0
    %3553 = vmatprep.subr.mxu0 0.0
    %3554 = vmatpush1.msra.mxu0 0.0
    %3555 = vmatprep.subr.mxu0 0.0
    %3556 = vmatpush1.msra.mxu0 0.0
    %3557 = vmatprep.subr.mxu0 0.0
    %3558 = vmatpush1.msra.mxu0 0.0
    %3559 = vmatprep.subr.mxu0 0.0
    %3560 = vmatpush1.msra.mxu0 0.0
    %3561 = vmatprep.subr.mxu0 0.0
    %3562 = vmatpush1.msra.mxu0 0.0
    %3563 = vmatprep.subr.mxu0 0.0
    %3564 = vmatpush1.msra.mxu0 0.0
    %3565 = vmatprep.subr.mxu0 0.0
    %3566 = vmatpush1.msra.mxu0 0.0
    %3567 = vmatprep.subr.mxu0 0.0
    %3568 = vmatpush1.msra.mxu0 0.0
    %3569 = vmatprep.subr.mxu0 0.0
    %3570 = vmatpush1.msra.mxu0 0.0
    %3571 = vmatprep.mubr.f32.mxu0 0.0
    %3572 = vmatmul.mubr.f32.gmra.mrb[0].mxu0 %v3178
    %v3573 = vpop.f32.mrb[0].mxu0
    %v3574 = vadd.f32 %v3432, %v3573
    %v3575 = vpop.f32.mrb[0].mxu0
    %v3576 = vadd.f32 %v3434, %v3575
    %3577 = vdwg.mxu0
    %3578 = vmatprep.subr.mxu0 %v378
    %3579 = vmatpush1.msra.mxu0 %v377
    %3580 = vmatprep.subr.mxu0 %v382
    %3581 = vmatpush1.msra.mxu0 %v381
    %3582 = vmatprep.subr.mxu0 %v386
    %3583 = vmatpush1.msra.mxu0 %v385
    %3584 = vmatprep.subr.mxu0 %v390
    %3585 = vmatpush1.msra.mxu0 %v389
    %3586 = vmatprep.subr.mxu0 %v394
    %3587 = vmatpush1.msra.mxu0 %v393
    %3588 = vmatprep.subr.mxu0 %v398
    %3589 = vmatpush1.msra.mxu0 %v397
    %3590 = vmatprep.subr.mxu0 %v402
    %3591 = vmatpush1.msra.mxu0 %v401
    %3592 = vmatprep.subr.mxu0 %v406
    %3593 = vmatpush1.msra.mxu0 %v405
    %3594 = vmatprep.subr.mxu0 %v410
    %3595 = vmatpush1.msra.mxu0 %v409
    %3596 = vmatprep.subr.mxu0 %v414
    %3597 = vmatpush1.msra.mxu0 %v413
    %3598 = vmatprep.subr.mxu0 %v418
    %3599 = vmatpush1.msra.mxu0 %v417
    %3600 = vmatprep.subr.mxu0 %v422
    %3601 = vmatpush1.msra.mxu0 %v421
    %3602 = vmatprep.subr.mxu0 %v426
    %3603 = vmatpush1.msra.mxu0 %v425
    %3604 = vmatprep.subr.mxu0 %v430
    %3605 = vmatpush1.msra.mxu0 %v429
    %3606 = vmatprep.subr.mxu0 %v434
    %3607 = vmatpush1.msra.mxu0 %v433
    %3608 = vmatprep.subr.mxu0 %v438
    %3609 = vmatpush1.msra.mxu0 %v437
    %3610 = vmatprep.subr.mxu0 0.0
    %3611 = vmatpush1.msra.mxu0 0.0
    %3612 = vmatprep.subr.mxu0 0.0
    %3613 = vmatpush1.msra.mxu0 0.0
    %3614 = vmatprep.subr.mxu0 0.0
    %3615 = vmatpush1.msra.mxu0 0.0
    %3616 = vmatprep.subr.mxu0 0.0
    %3617 = vmatpush1.msra.mxu0 0.0
    %3618 = vmatprep.subr.mxu0 0.0
    %3619 = vmatpush1.msra.mxu0 0.0
    %3620 = vmatprep.subr.mxu0 0.0
    %3621 = vmatpush1.msra.mxu0 0.0
    %3622 = vmatprep.subr.mxu0 0.0
    %3623 = vmatpush1.msra.mxu0 0.0
    %3624 = vmatprep.subr.mxu0 0.0
    %3625 = vmatpush1.msra.mxu0 0.0
    %3626 = vmatprep.subr.mxu0 0.0
    %3627 = vmatpush1.msra.mxu0 0.0
    %3628 = vmatprep.subr.mxu0 0.0
    %3629 = vmatpush1.msra.mxu0 0.0
    %3630 = vmatprep.subr.mxu0 0.0
    %3631 = vmatpush1.msra.mxu0 0.0
    %3632 = vmatprep.subr.mxu0 0.0
    %3633 = vmatpush1.msra.mxu0 0.0
    %3634 = vmatprep.subr.mxu0 0.0
    %3635 = vmatpush1.msra.mxu0 0.0
    %3636 = vmatprep.subr.mxu0 0.0
    %3637 = vmatpush1.msra.mxu0 0.0
    %3638 = vmatprep.subr.mxu0 0.0
    %3639 = vmatpush1.msra.mxu0 0.0
    %3640 = vmatprep.subr.mxu0 0.0
    %3641 = vmatpush1.msra.mxu0 0.0
    %3642 = vmatprep.mubr.f32.mxu0 0.0
    %3643 = vmatmul.mubr.f32.gmra.mrb[0].mxu0 %v3178
    %v3644 = vpop.f32.mrb[0].mxu0
    %v3645 = vadd.f32 %v3503, %v3644
    %v3646 = vpop.f32.mrb[0].mxu0
    %v3647 = vadd.f32 %v3505, %v3646
    %3648 = vdwg.mxu0
    %v3649 = vadd.f32 %v3574, %v1147
    %v3650 = vadd.f32 %v3576, %v1151
    %v3651 = vadd.f32 %v3645, %v1155
    %v3652 = vadd.f32 %v3647, %v1159
    %v3653 = vxor.u32 %v3649, 2147483648
    %v3654 = vxor.u32 %v3650, 2147483648
    %v3655 = vxor.u32 %v3651, 2147483648
    %v3656 = vmul.f32 %v3653, 1.442695
    %v3657 = vpow.pop %v3656
    %v3658 = vmul.f32 %v3654, 1.442695
    %v3659 = vpow.pop %v3658
    %v3660 = vmul.f32 %v3655, 1.442695
    %v3661 = vpow.pop %v3660
    %v3662 = vadd.f32 %v3657, 1.0
    %v3663 = vadd.f32 %v3659, 1.0
    %v3664 = vadd.f32 %v3661, 1.0
    %v3665 = vrcp.pop %v3662
    %v3666 = vmul.f32 1.0, %v3665
    %v3667 = vrcp.pop %v3663
    %v3668 = vmul.f32 1.0, %v3667
    %v3669 = vrcp.pop %v3664
    %v3670 = vmul.f32 1.0, %v3669
    %v3671 = vtanh.pop %v3652
    %v3672 = vmul.f32 %v3668, %v3174
    %v3673 = vmul.f32 %v3666, %v3671
    %v3674 = vadd.f32 %v3672, %v3673
    %v3675 = vtanh.pop %v3674
    %v3676 = vmul.f32 %v3670, %v3675
    %v3678 = vrot.slane %v3364, 4
    %3680 = vmatprep.subr.mxu0 %v312
    %3681 = vmatpush1.msra.mxu0 %v311
    %3682 = vmatprep.subr.mxu0 %v316
    %3683 = vmatpush1.msra.mxu0 %v315
    %3684 = vmatprep.subr.mxu0 %v320
    %3685 = vmatpush1.msra.mxu0 %v319
    %3686 = vmatprep.subr.mxu0 %v324
    %3687 = vmatpush1.msra.mxu0 %v323
    %3688 = vmatprep.subr.mxu0 %v328
    %3689 = vmatpush1.msra.mxu0 %v327
    %3690 = vmatprep.subr.mxu0 %v332
    %3691 = vmatpush1.msra.mxu0 %v331
    %3692 = vmatprep.subr.mxu0 %v336
    %3693 = vmatpush1.msra.mxu0 %v335
    %3694 = vmatprep.subr.mxu0 %v340
    %3695 = vmatpush1.msra.mxu0 %v339
    %3696 = vmatprep.subr.mxu0 %v344
    %3697 = vmatpush1.msra.mxu0 %v343
    %3698 = vmatprep.subr.mxu0 %v348
    %3699 = vmatpush1.msra.mxu0 %v347
    %3700 = vmatprep.subr.mxu0 %v352
    %3701 = vmatpush1.msra.mxu0 %v351
    %3702 = vmatprep.subr.mxu0 %v356
    %3703 = vmatpush1.msra.mxu0 %v355
    %3704 = vmatprep.subr.mxu0 %v360
    %3705 = vmatpush1.msra.mxu0 %v359
    %3706 = vmatprep.subr.mxu0 %v364
    %3707 = vmatpush1.msra.mxu0 %v363
    %3708 = vmatprep.subr.mxu0 %v368
    %3709 = vmatpush1.msra.mxu0 %v367
    %3710 = vmatprep.subr.mxu0 %v372
    %3711 = vmatpush1.msra.mxu0 %v371
    %3712 = vmatprep.subr.mxu0 0.0
    %3713 = vmatpush1.msra.mxu0 0.0
    %3714 = vmatprep.subr.mxu0 0.0
    %3715 = vmatpush1.msra.mxu0 0.0
    %3716 = vmatprep.subr.mxu0 0.0
    %3717 = vmatpush1.msra.mxu0 0.0
    %3718 = vmatprep.subr.mxu0 0.0
    %3719 = vmatpush1.msra.mxu0 0.0
    %3720 = vmatprep.subr.mxu0 0.0
    %3721 = vmatpush1.msra.mxu0 0.0
    %3722 = vmatprep.subr.mxu0 0.0
    %3723 = vmatpush1.msra.mxu0 0.0
    %3724 = vmatprep.subr.mxu0 0.0
    %3725 = vmatpush1.msra.mxu0 0.0
    %3726 = vmatprep.subr.mxu0 0.0
    %3727 = vmatpush1.msra.mxu0 0.0
    %3728 = vmatprep.subr.mxu0 0.0
    %3729 = vmatpush1.msra.mxu0 0.0
    %3730 = vmatprep.subr.mxu0 0.0
    %3731 = vmatpush1.msra.mxu0 0.0
    %3732 = vmatprep.subr.mxu0 0.0
    %3733 = vmatpush1.msra.mxu0 0.0
    %3734 = vmatprep.subr.mxu0 0.0
    %3735 = vmatpush1.msra.mxu0 0.0
    %3736 = vmatprep.subr.mxu0 0.0
    %3737 = vmatpush1.msra.mxu0 0.0
    %3738 = vmatprep.subr.mxu0 0.0
    %3739 = vmatpush1.msra.mxu0 0.0
    %3740 = vmatprep.subr.mxu0 0.0
    %3741 = vmatpush1.msra.mxu0 0.0
    %3742 = vmatprep.subr.mxu0 0.0
    %3743 = vmatpush1.msra.mxu0 0.0
    %3744 = vmatprep.mubr.f32.mxu0 0.0
    %3745 = vmatmul.mubr.f32.gmra.mrb[0].mxu0 %v3678
    %v3746 = vpop.f32.mrb[0].mxu0
    %v3747 = vadd.f32 0.0, %v3746
    %v3748 = vpop.f32.mrb[0].mxu0
    %v3749 = vadd.f32 0.0, %v3748
    %3750 = vdwg.mxu0
    %3751 = vmatprep.subr.mxu0 %v314
    %3752 = vmatpush1.msra.mxu0 %v313
    %3753 = vmatprep.subr.mxu0 %v318
    %3754 = vmatpush1.msra.mxu0 %v317
    %3755 = vmatprep.subr.mxu0 %v322
    %3756 = vmatpush1.msra.mxu0 %v321
    %3757 = vmatprep.subr.mxu0 %v326
    %3758 = vmatpush1.msra.mxu0 %v325
    %3759 = vmatprep.subr.mxu0 %v330
    %3760 = vmatpush1.msra.mxu0 %v329
    %3761 = vmatprep.subr.mxu0 %v334
    %3762 = vmatpush1.msra.mxu0 %v333
    %3763 = vmatprep.subr.mxu0 %v338
    %3764 = vmatpush1.msra.mxu0 %v337
    %3765 = vmatprep.subr.mxu0 %v342
    %3766 = vmatpush1.msra.mxu0 %v341
    %3767 = vmatprep.subr.mxu0 %v346
    %3768 = vmatpush1.msra.mxu0 %v345
    %3769 = vmatprep.subr.mxu0 %v350
    %3770 = vmatpush1.msra.mxu0 %v349
    %3771 = vmatprep.subr.mxu0 %v354
    %3772 = vmatpush1.msra.mxu0 %v353
    %3773 = vmatprep.subr.mxu0 %v358
    %3774 = vmatpush1.msra.mxu0 %v357
    %3775 = vmatprep.subr.mxu0 %v362
    %3776 = vmatpush1.msra.mxu0 %v361
    %3777 = vmatprep.subr.mxu0 %v366
    %3778 = vmatpush1.msra.mxu0 %v365
    %3779 = vmatprep.subr.mxu0 %v370
    %3780 = vmatpush1.msra.mxu0 %v369
    %3781 = vmatprep.subr.mxu0 %v374
    %3782 = vmatpush1.msra.mxu0 %v373
    %3783 = vmatprep.subr.mxu0 0.0
    %3784 = vmatpush1.msra.mxu0 0.0
    %3785 = vmatprep.subr.mxu0 0.0
    %3786 = vmatpush1.msra.mxu0 0.0
    %3787 = vmatprep.subr.mxu0 0.0
    %3788 = vmatpush1.msra.mxu0 0.0
    %3789 = vmatprep.subr.mxu0 0.0
    %3790 = vmatpush1.msra.mxu0 0.0
    %3791 = vmatprep.subr.mxu0 0.0
    %3792 = vmatpush1.msra.mxu0 0.0
    %3793 = vmatprep.subr.mxu0 0.0
    %3794 = vmatpush1.msra.mxu0 0.0
    %3795 = vmatprep.subr.mxu0 0.0
    %3796 = vmatpush1.msra.mxu0 0.0
    %3797 = vmatprep.subr.mxu0 0.0
    %3798 = vmatpush1.msra.mxu0 0.0
    %3799 = vmatprep.subr.mxu0 0.0
    %3800 = vmatpush1.msra.mxu0 0.0
    %3801 = vmatprep.subr.mxu0 0.0
    %3802 = vmatpush1.msra.mxu0 0.0
    %3803 = vmatprep.subr.mxu0 0.0
    %3804 = vmatpush1.msra.mxu0 0.0
    %3805 = vmatprep.subr.mxu0 0.0
    %3806 = vmatpush1.msra.mxu0 0.0
    %3807 = vmatprep.subr.mxu0 0.0
    %3808 = vmatpush1.msra.mxu0 0.0
    %3809 = vmatprep.subr.mxu0 0.0
    %3810 = vmatpush1.msra.mxu0 0.0
    %3811 = vmatprep.subr.mxu0 0.0
    %3812 = vmatpush1.msra.mxu0 0.0
    %3813 = vmatprep.subr.mxu0 0.0
    %3814 = vmatpush1.msra.mxu0 0.0
    %3815 = vmatprep.mubr.f32.mxu0 0.0
    %3816 = vmatmul.mubr.f32.gmra.mrb[0].mxu0 %v3678
    %v3817 = vpop.f32.mrb[0].mxu0
    %v3818 = vadd.f32 0.0, %v3817
    %v3819 = vpop.f32.mrb[0].mxu0
    %v3820 = vadd.f32 0.0, %v3819
    %3821 = vdwg.mxu0
    %v3826 = vrot.slane %v3747, 2
    %v3827 = vrot.slane %v3749, 2
    %v3828 = vrot.slane %v3818, 2
    %v3829 = vrot.slane %v3820, 2
    %v3834 = vadd.f32 %v230, %v3826
    %v3835 = vadd.f32 %v232, %v3827
    %v3836 = vadd.f32 %v307, %v3828
    %v3837 = vadd.f32 %v309, %v3829
    %v3838 = vxor.u32 %v3834, 2147483648
    %v3839 = vxor.u32 %v3835, 2147483648
    %v3840 = vxor.u32 %v3836, 2147483648
    %v3841 = vmul.f32 %v3838, 1.442695
    %v3842 = vpow.pop %v3841
    %v3843 = vmul.f32 %v3839, 1.442695
    %v3844 = vpow.pop %v3843
    %v3845 = vmul.f32 %v3840, 1.442695
    %v3846 = vpow.pop %v3845
    %v3847 = vadd.f32 %v3842, 1.0
    %v3848 = vadd.f32 %v3844, 1.0
    %v3849 = vadd.f32 %v3846, 1.0
    %v3850 = vrcp.pop %v3847
    %v3851 = vmul.f32 1.0, %v3850
    %v3852 = vrcp.pop %v3848
    %v3853 = vmul.f32 1.0, %v3852
    %v3854 = vrcp.pop %v3849
    %v3855 = vmul.f32 1.0, %v3854
    %v3856 = vtanh.pop %v3837
    %v3858 = vrot.slane %v3362, 6
    %v3860 = vmul.f32 %v3853, %v3858
    %v3861 = vmul.f32 %v3851, %v3856
    %v3862 = vadd.f32 %v3860, %v3861
    %v3863 = vtanh.pop %v3862
    %v3864 = vmul.f32 %v3855, %v3863
    %3865 = vmatprep.subr.mxu0 %v440
    %3866 = vmatpush1.msra.mxu0 %v439
    %3867 = vmatprep.subr.mxu0 %v444
    %3868 = vmatpush1.msra.mxu0 %v443
    %3869 = vmatprep.subr.mxu0 %v448
    %3870 = vmatpush1.msra.mxu0 %v447
    %3871 = vmatprep.subr.mxu0 %v452
    %3872 = vmatpush1.msra.mxu0 %v451
    %3873 = vmatprep.subr.mxu0 %v456
    %3874 = vmatpush1.msra.mxu0 %v455
    %3875 = vmatprep.subr.mxu0 %v460
    %3876 = vmatpush1.msra.mxu0 %v459
    %3877 = vmatprep.subr.mxu0 %v464
    %3878 = vmatpush1.msra.mxu0 %v463
    %3879 = vmatprep.subr.mxu0 %v468
    %3880 = vmatpush1.msra.mxu0 %v467
    %3881 = vmatprep.subr.mxu0 %v472
    %3882 = vmatpush1.msra.mxu0 %v471
    %3883 = vmatprep.subr.mxu0 %v476
    %3884 = vmatpush1.msra.mxu0 %v475
    %3885 = vmatprep.subr.mxu0 %v480
    %3886 = vmatpush1.msra.mxu0 %v479
    %3887 = vmatprep.subr.mxu0 %v484
    %3888 = vmatpush1.msra.mxu0 %v483
    %3889 = vmatprep.subr.mxu0 %v488
    %3890 = vmatpush1.msra.mxu0 %v487
    %3891 = vmatprep.subr.mxu0 %v492
    %3892 = vmatpush1.msra.mxu0 %v491
    %3893 = vmatprep.subr.mxu0 %v496
    %3894 = vmatpush1.msra.mxu0 %v495
    %3895 = vmatprep.subr.mxu0 %v500
    %3896 = vmatpush1.msra.mxu0 %v499
    %3897 = vmatprep.subr.mxu0 0.0
    %3898 = vmatpush1.msra.mxu0 0.0
    %3899 = vmatprep.subr.mxu0 0.0
    %3900 = vmatpush1.msra.mxu0 0.0
    %3901 = vmatprep.subr.mxu0 0.0
    %3902 = vmatpush1.msra.mxu0 0.0
    %3903 = vmatprep.subr.mxu0 0.0
    %3904 = vmatpush1.msra.mxu0 0.0
    %3905 = vmatprep.subr.mxu0 0.0
    %3906 = vmatpush1.msra.mxu0 0.0
    %3907 = vmatprep.subr.mxu0 0.0
    %3908 = vmatpush1.msra.mxu0 0.0
    %3909 = vmatprep.subr.mxu0 0.0
    %3910 = vmatpush1.msra.mxu0 0.0
    %3911 = vmatprep.subr.mxu0 0.0
    %3912 = vmatpush1.msra.mxu0 0.0
    %3913 = vmatprep.subr.mxu0 0.0
    %3914 = vmatpush1.msra.mxu0 0.0
    %3915 = vmatprep.subr.mxu0 0.0
    %3916 = vmatpush1.msra.mxu0 0.0
    %3917 = vmatprep.subr.mxu0 0.0
    %3918 = vmatpush1.msra.mxu0 0.0
    %3919 = vmatprep.subr.mxu0 0.0
    %3920 = vmatpush1.msra.mxu0 0.0
    %3921 = vmatprep.subr.mxu0 0.0
    %3922 = vmatpush1.msra.mxu0 0.0
    %3923 = vmatprep.subr.mxu0 0.0
    %3924 = vmatpush1.msra.mxu0 0.0
    %3925 = vmatprep.subr.mxu0 0.0
    %3926 = vmatpush1.msra.mxu0 0.0
    %3927 = vmatprep.subr.mxu0 0.0
    %3928 = vmatpush1.msra.mxu0 0.0
    %3929 = vmatprep.mubr.f32.mxu0 0.0
    %3930 = vmatmul.mubr.f32.gmra.mrb[0].mxu0 %v3676
    %v3931 = vpop.f32.mrb[0].mxu0
    %v3932 = vadd.f32 0.0, %v3931
    %v3933 = vpop.f32.mrb[0].mxu0
    %v3934 = vadd.f32 0.0, %v3933
    %3935 = vdwg.mxu0
    %3936 = vmatprep.subr.mxu0 %v442
    %3937 = vmatpush1.msra.mxu0 %v441
    %3938 = vmatprep.subr.mxu0 %v446
    %3939 = vmatpush1.msra.mxu0 %v445
    %3940 = vmatprep.subr.mxu0 %v450
    %3941 = vmatpush1.msra.mxu0 %v449
    %3942 = vmatprep.subr.mxu0 %v454
    %3943 = vmatpush1.msra.mxu0 %v453
    %3944 = vmatprep.subr.mxu0 %v458
    %3945 = vmatpush1.msra.mxu0 %v457
    %3946 = vmatprep.subr.mxu0 %v462
    %3947 = vmatpush1.msra.mxu0 %v461
    %3948 = vmatprep.subr.mxu0 %v466
    %3949 = vmatpush1.msra.mxu0 %v465
    %3950 = vmatprep.subr.mxu0 %v470
    %3951 = vmatpush1.msra.mxu0 %v469
    %3952 = vmatprep.subr.mxu0 %v474
    %3953 = vmatpush1.msra.mxu0 %v473
    %3954 = vmatprep.subr.mxu0 %v478
    %3955 = vmatpush1.msra.mxu0 %v477
    %3956 = vmatprep.subr.mxu0 %v482
    %3957 = vmatpush1.msra.mxu0 %v481
    %3958 = vmatprep.subr.mxu0 %v486
    %3959 = vmatpush1.msra.mxu0 %v485
    %3960 = vmatprep.subr.mxu0 %v490
    %3961 = vmatpush1.msra.mxu0 %v489
    %3962 = vmatprep.subr.mxu0 %v494
    %3963 = vmatpush1.msra.mxu0 %v493
    %3964 = vmatprep.subr.mxu0 %v498
    %3965 = vmatpush1.msra.mxu0 %v497
    %3966 = vmatprep.subr.mxu0 %v502
    %3967 = vmatpush1.msra.mxu0 %v501
    %3968 = vmatprep.subr.mxu0 0.0
    %3969 = vmatpush1.msra.mxu0 0.0
    %3970 = vmatprep.subr.mxu0 0.0
    %3971 = vmatpush1.msra.mxu0 0.0
    %3972 = vmatprep.subr.mxu0 0.0
    %3973 = vmatpush1.msra.mxu0 0.0
    %3974 = vmatprep.subr.mxu0 0.0
    %3975 = vmatpush1.msra.mxu0 0.0
    %3976 = vmatprep.subr.mxu0 0.0
    %3977 = vmatpush1.msra.mxu0 0.0
    %3978 = vmatprep.subr.mxu0 0.0
    %3979 = vmatpush1.msra.mxu0 0.0
    %3980 = vmatprep.subr.mxu0 0.0
    %3981 = vmatpush1.msra.mxu0 0.0
    %3982 = vmatprep.subr.mxu0 0.0
    %3983 = vmatpush1.msra.mxu0 0.0
    %3984 = vmatprep.subr.mxu0 0.0
    %3985 = vmatpush1.msra.mxu0 0.0
    %3986 = vmatprep.subr.mxu0 0.0
    %3987 = vmatpush1.msra.mxu0 0.0
    %3988 = vmatprep.subr.mxu0 0.0
    %3989 = vmatpush1.msra.mxu0 0.0
    %3990 = vmatprep.subr.mxu0 0.0
    %3991 = vmatpush1.msra.mxu0 0.0
    %3992 = vmatprep.subr.mxu0 0.0
    %3993 = vmatpush1.msra.mxu0 0.0
    %3994 = vmatprep.subr.mxu0 0.0
    %3995 = vmatpush1.msra.mxu0 0.0
    %3996 = vmatprep.subr.mxu0 0.0
    %3997 = vmatpush1.msra.mxu0 0.0
    %3998 = vmatprep.subr.mxu0 0.0
    %3999 = vmatpush1.msra.mxu0 0.0
    %4000 = vmatprep.mubr.f32.mxu0 0.0
    %4001 = vmatmul.mubr.f32.gmra.mrb[0].mxu0 %v3676
    %v4002 = vpop.f32.mrb[0].mxu0
    %v4003 = vadd.f32 0.0, %v4002
    %v4004 = vpop.f32.mrb[0].mxu0
    %v4005 = vadd.f32 0.0, %v4004
    %4006 = vdwg.mxu0
    %4007 = vmatprep.subr.mxu0 %v376
    %4008 = vmatpush1.msra.mxu0 %v375
    %4009 = vmatprep.subr.mxu0 %v380
    %4010 = vmatpush1.msra.mxu0 %v379
    %4011 = vmatprep.subr.mxu0 %v384
    %4012 = vmatpush1.msra.mxu0 %v383
    %4013 = vmatprep.subr.mxu0 %v388
    %4014 = vmatpush1.msra.mxu0 %v387
    %4015 = vmatprep.subr.mxu0 %v392
    %4016 = vmatpush1.msra.mxu0 %v391
    %4017 = vmatprep.subr.mxu0 %v396
    %4018 = vmatpush1.msra.mxu0 %v395
    %4019 = vmatprep.subr.mxu0 %v400
    %4020 = vmatpush1.msra.mxu0 %v399
    %4021 = vmatprep.subr.mxu0 %v404
    %4022 = vmatpush1.msra.mxu0 %v403
    %4023 = vmatprep.subr.mxu0 %v408
    %4024 = vmatpush1.msra.mxu0 %v407
    %4025 = vmatprep.subr.mxu0 %v412
    %4026 = vmatpush1.msra.mxu0 %v411
    %4027 = vmatprep.subr.mxu0 %v416
    %4028 = vmatpush1.msra.mxu0 %v415
    %4029 = vmatprep.subr.mxu0 %v420
    %4030 = vmatpush1.msra.mxu0 %v419
    %4031 = vmatprep.subr.mxu0 %v424
    %4032 = vmatpush1.msra.mxu0 %v423
    %4033 = vmatprep.subr.mxu0 %v428
    %4034 = vmatpush1.msra.mxu0 %v427
    %4035 = vmatprep.subr.mxu0 %v432
    %4036 = vmatpush1.msra.mxu0 %v431
    %4037 = vmatprep.subr.mxu0 %v436
    %4038 = vmatpush1.msra.mxu0 %v435
    %4039 = vmatprep.subr.mxu0 0.0
    %4040 = vmatpush1.msra.mxu0 0.0
    %4041 = vmatprep.subr.mxu0 0.0
    %4042 = vmatpush1.msra.mxu0 0.0
    %4043 = vmatprep.subr.mxu0 0.0
    %4044 = vmatpush1.msra.mxu0 0.0
    %4045 = vmatprep.subr.mxu0 0.0
    %4046 = vmatpush1.msra.mxu0 0.0
    %4047 = vmatprep.subr.mxu0 0.0
    %4048 = vmatpush1.msra.mxu0 0.0
    %4049 = vmatprep.subr.mxu0 0.0
    %4050 = vmatpush1.msra.mxu0 0.0
    %4051 = vmatprep.subr.mxu0 0.0
    %4052 = vmatpush1.msra.mxu0 0.0
    %4053 = vmatprep.subr.mxu0 0.0
    %4054 = vmatpush1.msra.mxu0 0.0
    %4055 = vmatprep.subr.mxu0 0.0
    %4056 = vmatpush1.msra.mxu0 0.0
    %4057 = vmatprep.subr.mxu0 0.0
    %4058 = vmatpush1.msra.mxu0 0.0
    %4059 = vmatprep.subr.mxu0 0.0
    %4060 = vmatpush1.msra.mxu0 0.0
    %4061 = vmatprep.subr.mxu0 0.0
    %4062 = vmatpush1.msra.mxu0 0.0
    %4063 = vmatprep.subr.mxu0 0.0
    %4064 = vmatpush1.msra.mxu0 0.0
    %4065 = vmatprep.subr.mxu0 0.0
    %4066 = vmatpush1.msra.mxu0 0.0
    %4067 = vmatprep.subr.mxu0 0.0
    %4068 = vmatpush1.msra.mxu0 0.0
    %4069 = vmatprep.subr.mxu0 0.0
    %4070 = vmatpush1.msra.mxu0 0.0
    %4071 = vmatprep.mubr.f32.mxu0 0.0
    %4072 = vmatmul.mubr.f32.gmra.mrb[0].mxu0 %v3678
    %v4073 = vpop.f32.mrb[0].mxu0
    %v4074 = vadd.f32 %v3932, %v4073
    %v4075 = vpop.f32.mrb[0].mxu0
    %v4076 = vadd.f32 %v3934, %v4075
    %4077 = vdwg.mxu0
    %4078 = vmatprep.subr.mxu0 %v378
    %4079 = vmatpush1.msra.mxu0 %v377
    %4080 = vmatprep.subr.mxu0 %v382
    %4081 = vmatpush1.msra.mxu0 %v381
    %4082 = vmatprep.subr.mxu0 %v386
    %4083 = vmatpush1.msra.mxu0 %v385
    %4084 = vmatprep.subr.mxu0 %v390
    %4085 = vmatpush1.msra.mxu0 %v389
    %4086 = vmatprep.subr.mxu0 %v394
    %4087 = vmatpush1.msra.mxu0 %v393
    %4088 = vmatprep.subr.mxu0 %v398
    %4089 = vmatpush1.msra.mxu0 %v397
    %4090 = vmatprep.subr.mxu0 %v402
    %4091 = vmatpush1.msra.mxu0 %v401
    %4092 = vmatprep.subr.mxu0 %v406
    %4093 = vmatpush1.msra.mxu0 %v405
    %4094 = vmatprep.subr.mxu0 %v410
    %4095 = vmatpush1.msra.mxu0 %v409
    %4096 = vmatprep.subr.mxu0 %v414
    %4097 = vmatpush1.msra.mxu0 %v413
    %4098 = vmatprep.subr.mxu0 %v418
    %4099 = vmatpush1.msra.mxu0 %v417
    %4100 = vmatprep.subr.mxu0 %v422
    %4101 = vmatpush1.msra.mxu0 %v421
    %4102 = vmatprep.subr.mxu0 %v426
    %4103 = vmatpush1.msra.mxu0 %v425
    %4104 = vmatprep.subr.mxu0 %v430
    %4105 = vmatpush1.msra.mxu0 %v429
    %4106 = vmatprep.subr.mxu0 %v434
    %4107 = vmatpush1.msra.mxu0 %v433
    %4108 = vmatprep.subr.mxu0 %v438
    %4109 = vmatpush1.msra.mxu0 %v437
    %4110 = vmatprep.subr.mxu0 0.0
    %4111 = vmatpush1.msra.mxu0 0.0
    %4112 = vmatprep.subr.mxu0 0.0
    %4113 = vmatpush1.msra.mxu0 0.0
    %4114 = vmatprep.subr.mxu0 0.0
    %4115 = vmatpush1.msra.mxu0 0.0
    %4116 = vmatprep.subr.mxu0 0.0
    %4117 = vmatpush1.msra.mxu0 0.0
    %4118 = vmatprep.subr.mxu0 0.0
    %4119 = vmatpush1.msra.mxu0 0.0
    %4120 = vmatprep.subr.mxu0 0.0
    %4121 = vmatpush1.msra.mxu0 0.0
    %4122 = vmatprep.subr.mxu0 0.0
    %4123 = vmatpush1.msra.mxu0 0.0
    %4124 = vmatprep.subr.mxu0 0.0
    %4125 = vmatpush1.msra.mxu0 0.0
    %4126 = vmatprep.subr.mxu0 0.0
    %4127 = vmatpush1.msra.mxu0 0.0
    %4128 = vmatprep.subr.mxu0 0.0
    %4129 = vmatpush1.msra.mxu0 0.0
    %4130 = vmatprep.subr.mxu0 0.0
    %4131 = vmatpush1.msra.mxu0 0.0
    %4132 = vmatprep.subr.mxu0 0.0
    %4133 = vmatpush1.msra.mxu0 0.0
    %4134 = vmatprep.subr.mxu0 0.0
    %4135 = vmatpush1.msra.mxu0 0.0
    %4136 = vmatprep.subr.mxu0 0.0
    %4137 = vmatpush1.msra.mxu0 0.0
    %4138 = vmatprep.subr.mxu0 0.0
    %4139 = vmatpush1.msra.mxu0 0.0
    %4140 = vmatprep.subr.mxu0 0.0
    %4141 = vmatpush1.msra.mxu0 0.0
    %4142 = vmatprep.mubr.f32.mxu0 0.0
    %4143 = vmatmul.mubr.f32.gmra.mrb[0].mxu0 %v3678
    %v4144 = vpop.f32.mrb[0].mxu0
    %v4145 = vadd.f32 %v4003, %v4144
    %v4146 = vpop.f32.mrb[0].mxu0
    %v4147 = vadd.f32 %v4005, %v4146
    %4148 = vdwg.mxu0
    %v4149 = vadd.f32 %v4074, %v1147
    %v4150 = vadd.f32 %v4076, %v1151
    %v4151 = vadd.f32 %v4145, %v1155
    %v4152 = vadd.f32 %v4147, %v1159
    %v4153 = vxor.u32 %v4149, 2147483648
    %v4154 = vxor.u32 %v4150, 2147483648
    %v4155 = vxor.u32 %v4151, 2147483648
    %v4156 = vmul.f32 %v4153, 1.442695
    %v4157 = vpow.pop %v4156
    %v4158 = vmul.f32 %v4154, 1.442695
    %v4159 = vpow.pop %v4158
    %v4160 = vmul.f32 %v4155, 1.442695
    %v4161 = vpow.pop %v4160
    %v4162 = vadd.f32 %v4157, 1.0
    %v4163 = vadd.f32 %v4159, 1.0
    %v4164 = vadd.f32 %v4161, 1.0
    %v4165 = vrcp.pop %v4162
    %v4166 = vmul.f32 1.0, %v4165
    %v4167 = vrcp.pop %v4163
    %v4168 = vmul.f32 1.0, %v4167
    %v4169 = vrcp.pop %v4164
    %v4170 = vmul.f32 1.0, %v4169
    %v4171 = vtanh.pop %v4152
    %v4172 = vmul.f32 %v4168, %v3674
    %v4173 = vmul.f32 %v4166, %v4171
    %v4174 = vadd.f32 %v4172, %v4173
    %v4175 = vtanh.pop %v4174
    %v4176 = vmul.f32 %v4170, %v4175
    %4177 = vmatprep.subr.mxu0 %v440
    %4178 = vmatpush1.msra.mxu0 %v439
    %4179 = vmatprep.subr.mxu0 %v444
    %4180 = vmatpush1.msra.mxu0 %v443
    %4181 = vmatprep.subr.mxu0 %v448
    %4182 = vmatpush1.msra.mxu0 %v447
    %4183 = vmatprep.subr.mxu0 %v452
    %4184 = vmatpush1.msra.mxu0 %v451
    %4185 = vmatprep.subr.mxu0 %v456
    %4186 = vmatpush1.msra.mxu0 %v455
    %4187 = vmatprep.subr.mxu0 %v460
    %4188 = vmatpush1.msra.mxu0 %v459
    %4189 = vmatprep.subr.mxu0 %v464
    %4190 = vmatpush1.msra.mxu0 %v463
    %4191 = vmatprep.subr.mxu0 %v468
    %4192 = vmatpush1.msra.mxu0 %v467
    %4193 = vmatprep.subr.mxu0 %v472
    %4194 = vmatpush1.msra.mxu0 %v471
    %4195 = vmatprep.subr.mxu0 %v476
    %4196 = vmatpush1.msra.mxu0 %v475
    %4197 = vmatprep.subr.mxu0 %v480
    %4198 = vmatpush1.msra.mxu0 %v479
    %4199 = vmatprep.subr.mxu0 %v484
    %4200 = vmatpush1.msra.mxu0 %v483
    %4201 = vmatprep.subr.mxu0 %v488
    %4202 = vmatpush1.msra.mxu0 %v487
    %4203 = vmatprep.subr.mxu0 %v492
    %4204 = vmatpush1.msra.mxu0 %v491
    %4205 = vmatprep.subr.mxu0 %v496
    %4206 = vmatpush1.msra.mxu0 %v495
    %4207 = vmatprep.subr.mxu0 %v500
    %4208 = vmatpush1.msra.mxu0 %v499
    %4209 = vmatprep.subr.mxu0 0.0
    %4210 = vmatpush1.msra.mxu0 0.0
    %4211 = vmatprep.subr.mxu0 0.0
    %4212 = vmatpush1.msra.mxu0 0.0
    %4213 = vmatprep.subr.mxu0 0.0
    %4214 = vmatpush1.msra.mxu0 0.0
    %4215 = vmatprep.subr.mxu0 0.0
    %4216 = vmatpush1.msra.mxu0 0.0
    %4217 = vmatprep.subr.mxu0 0.0
    %4218 = vmatpush1.msra.mxu0 0.0
    %4219 = vmatprep.subr.mxu0 0.0
    %4220 = vmatpush1.msra.mxu0 0.0
    %4221 = vmatprep.subr.mxu0 0.0
    %4222 = vmatpush1.msra.mxu0 0.0
    %4223 = vmatprep.subr.mxu0 0.0
    %4224 = vmatpush1.msra.mxu0 0.0
    %4225 = vmatprep.subr.mxu0 0.0
    %4226 = vmatpush1.msra.mxu0 0.0
    %4227 = vmatprep.subr.mxu0 0.0
    %4228 = vmatpush1.msra.mxu0 0.0
    %4229 = vmatprep.subr.mxu0 0.0
    %4230 = vmatpush1.msra.mxu0 0.0
    %4231 = vmatprep.subr.mxu0 0.0
    %4232 = vmatpush1.msra.mxu0 0.0
    %4233 = vmatprep.subr.mxu0 0.0
    %4234 = vmatpush1.msra.mxu0 0.0
    %4235 = vmatprep.subr.mxu0 0.0
    %4236 = vmatpush1.msra.mxu0 0.0
    %4237 = vmatprep.subr.mxu0 0.0
    %4238 = vmatpush1.msra.mxu0 0.0
    %4239 = vmatprep.subr.mxu0 0.0
    %4240 = vmatpush1.msra.mxu0 0.0
    %4241 = vmatprep.mubr.f32.mxu0 0.0
    %4242 = vmatmul.mubr.f32.gmra.mrb[0].mxu0 %v4176
    %v4243 = vpop.f32.mrb[0].mxu0
    %v4244 = vadd.f32 0.0, %v4243
    %v4245 = vpop.f32.mrb[0].mxu0
    %v4246 = vadd.f32 0.0, %v4245
    %4247 = vdwg.mxu0
    %4248 = vmatprep.subr.mxu0 %v442
    %4249 = vmatpush1.msra.mxu0 %v441
    %4250 = vmatprep.subr.mxu0 %v446
    %4251 = vmatpush1.msra.mxu0 %v445
    %4252 = vmatprep.subr.mxu0 %v450
    %4253 = vmatpush1.msra.mxu0 %v449
    %4254 = vmatprep.subr.mxu0 %v454
    %4255 = vmatpush1.msra.mxu0 %v453
    %4256 = vmatprep.subr.mxu0 %v458
    %4257 = vmatpush1.msra.mxu0 %v457
    %4258 = vmatprep.subr.mxu0 %v462
    %4259 = vmatpush1.msra.mxu0 %v461
    %4260 = vmatprep.subr.mxu0 %v466
    %4261 = vmatpush1.msra.mxu0 %v465
    %4262 = vmatprep.subr.mxu0 %v470
    %4263 = vmatpush1.msra.mxu0 %v469
    %4264 = vmatprep.subr.mxu0 %v474
    %4265 = vmatpush1.msra.mxu0 %v473
    %4266 = vmatprep.subr.mxu0 %v478
    %4267 = vmatpush1.msra.mxu0 %v477
    %4268 = vmatprep.subr.mxu0 %v482
    %4269 = vmatpush1.msra.mxu0 %v481
    %4270 = vmatprep.subr.mxu0 %v486
    %4271 = vmatpush1.msra.mxu0 %v485
    %4272 = vmatprep.subr.mxu0 %v490
    %4273 = vmatpush1.msra.mxu0 %v489
    %4274 = vmatprep.subr.mxu0 %v494
    %4275 = vmatpush1.msra.mxu0 %v493
    %4276 = vmatprep.subr.mxu0 %v498
    %4277 = vmatpush1.msra.mxu0 %v497
    %4278 = vmatprep.subr.mxu0 %v502
    %4279 = vmatpush1.msra.mxu0 %v501
    %4280 = vmatprep.subr.mxu0 0.0
    %4281 = vmatpush1.msra.mxu0 0.0
    %4282 = vmatprep.subr.mxu0 0.0
    %4283 = vmatpush1.msra.mxu0 0.0
    %4284 = vmatprep.subr.mxu0 0.0
    %4285 = vmatpush1.msra.mxu0 0.0
    %4286 = vmatprep.subr.mxu0 0.0
    %4287 = vmatpush1.msra.mxu0 0.0
    %4288 = vmatprep.subr.mxu0 0.0
    %4289 = vmatpush1.msra.mxu0 0.0
    %4290 = vmatprep.subr.mxu0 0.0
    %4291 = vmatpush1.msra.mxu0 0.0
    %4292 = vmatprep.subr.mxu0 0.0
    %4293 = vmatpush1.msra.mxu0 0.0
    %4294 = vmatprep.subr.mxu0 0.0
    %4295 = vmatpush1.msra.mxu0 0.0
    %4296 = vmatprep.subr.mxu0 0.0
    %4297 = vmatpush1.msra.mxu0 0.0
    %4298 = vmatprep.subr.mxu0 0.0
    %4299 = vmatpush1.msra.mxu0 0.0
    %4300 = vmatprep.subr.mxu0 0.0
    %4301 = vmatpush1.msra.mxu0 0.0
    %4302 = vmatprep.subr.mxu0 0.0
    %4303 = vmatpush1.msra.mxu0 0.0
    %4304 = vmatprep.subr.mxu0 0.0
    %4305 = vmatpush1.msra.mxu0 0.0
    %4306 = vmatprep.subr.mxu0 0.0
    %4307 = vmatpush1.msra.mxu0 0.0
    %4308 = vmatprep.subr.mxu0 0.0
    %4309 = vmatpush1.msra.mxu0 0.0
    %4310 = vmatprep.subr.mxu0 0.0
    %4311 = vmatpush1.msra.mxu0 0.0
    %4312 = vmatprep.mubr.f32.mxu0 0.0
    %4313 = vmatmul.mubr.f32.gmra.mrb[0].mxu0 %v4176
    %v4314 = vpop.f32.mrb[0].mxu0
    %v4315 = vadd.f32 0.0, %v4314
    %v4316 = vpop.f32.mrb[0].mxu0
    %v4317 = vadd.f32 0.0, %v4316
    %4318 = vdwg.mxu0
    %v4320 = vrot.slane %v3864, 6
    %4322 = vmatprep.subr.mxu0 %v376
    %4323 = vmatpush1.msra.mxu0 %v375
    %4324 = vmatprep.subr.mxu0 %v380
    %4325 = vmatpush1.msra.mxu0 %v379
    %4326 = vmatprep.subr.mxu0 %v384
    %4327 = vmatpush1.msra.mxu0 %v383
    %4328 = vmatprep.subr.mxu0 %v388
    %4329 = vmatpush1.msra.mxu0 %v387
    %4330 = vmatprep.subr.mxu0 %v392
    %4331 = vmatpush1.msra.mxu0 %v391
    %4332 = vmatprep.subr.mxu0 %v396
    %4333 = vmatpush1.msra.mxu0 %v395
    %4334 = vmatprep.subr.mxu0 %v400
    %4335 = vmatpush1.msra.mxu0 %v399
    %4336 = vmatprep.subr.mxu0 %v404
    %4337 = vmatpush1.msra.mxu0 %v403
    %4338 = vmatprep.subr.mxu0 %v408
    %4339 = vmatpush1.msra.mxu0 %v407
    %4340 = vmatprep.subr.mxu0 %v412
    %4341 = vmatpush1.msra.mxu0 %v411
    %4342 = vmatprep.subr.mxu0 %v416
    %4343 = vmatpush1.msra.mxu0 %v415
    %4344 = vmatprep.subr.mxu0 %v420
    %4345 = vmatpush1.msra.mxu0 %v419
    %4346 = vmatprep.subr.mxu0 %v424
    %4347 = vmatpush1.msra.mxu0 %v423
    %4348 = vmatprep.subr.mxu0 %v428
    %4349 = vmatpush1.msra.mxu0 %v427
    %4350 = vmatprep.subr.mxu0 %v432
    %4351 = vmatpush1.msra.mxu0 %v431
    %4352 = vmatprep.subr.mxu0 %v436
    %4353 = vmatpush1.msra.mxu0 %v435
    %4354 = vmatprep.subr.mxu0 0.0
    %4355 = vmatpush1.msra.mxu0 0.0
    %4356 = vmatprep.subr.mxu0 0.0
    %4357 = vmatpush1.msra.mxu0 0.0
    %4358 = vmatprep.subr.mxu0 0.0
    %4359 = vmatpush1.msra.mxu0 0.0
    %4360 = vmatprep.subr.mxu0 0.0
    %4361 = vmatpush1.msra.mxu0 0.0
    %4362 = vmatprep.subr.mxu0 0.0
    %4363 = vmatpush1.msra.mxu0 0.0
    %4364 = vmatprep.subr.mxu0 0.0
    %4365 = vmatpush1.msra.mxu0 0.0
    %4366 = vmatprep.subr.mxu0 0.0
    %4367 = vmatpush1.msra.mxu0 0.0
    %4368 = vmatprep.subr.mxu0 0.0
    %4369 = vmatpush1.msra.mxu0 0.0
    %4370 = vmatprep.subr.mxu0 0.0
    %4371 = vmatpush1.msra.mxu0 0.0
    %4372 = vmatprep.subr.mxu0 0.0
    %4373 = vmatpush1.msra.mxu0 0.0
    %4374 = vmatprep.subr.mxu0 0.0
    %4375 = vmatpush1.msra.mxu0 0.0
    %4376 = vmatprep.subr.mxu0 0.0
    %4377 = vmatpush1.msra.mxu0 0.0
    %4378 = vmatprep.subr.mxu0 0.0
    %4379 = vmatpush1.msra.mxu0 0.0
    %4380 = vmatprep.subr.mxu0 0.0
    %4381 = vmatpush1.msra.mxu0 0.0
    %4382 = vmatprep.subr.mxu0 0.0
    %4383 = vmatpush1.msra.mxu0 0.0
    %4384 = vmatprep.subr.mxu0 0.0
    %4385 = vmatpush1.msra.mxu0 0.0
    %4386 = vmatprep.mubr.f32.mxu0 0.0
    %4387 = vmatmul.mubr.f32.gmra.mrb[0].mxu0 %v4320
    %v4388 = vpop.f32.mrb[0].mxu0
    %v4389 = vadd.f32 %v4244, %v4388
    %v4390 = vpop.f32.mrb[0].mxu0
    %v4391 = vadd.f32 %v4246, %v4390
    %4392 = vdwg.mxu0
    %4393 = vmatprep.subr.mxu0 %v378
    %4394 = vmatpush1.msra.mxu0 %v377
    %4395 = vmatprep.subr.mxu0 %v382
    %4396 = vmatpush1.msra.mxu0 %v381
    %4397 = vmatprep.subr.mxu0 %v386
    %4398 = vmatpush1.msra.mxu0 %v385
    %4399 = vmatprep.subr.mxu0 %v390
    %4400 = vmatpush1.msra.mxu0 %v389
    %4401 = vmatprep.subr.mxu0 %v394
    %4402 = vmatpush1.msra.mxu0 %v393
    %4403 = vmatprep.subr.mxu0 %v398
    %4404 = vmatpush1.msra.mxu0 %v397
    %4405 = vmatprep.subr.mxu0 %v402
    %4406 = vmatpush1.msra.mxu0 %v401
    %4407 = vmatprep.subr.mxu0 %v406
    %4408 = vmatpush1.msra.mxu0 %v405
    %4409 = vmatprep.subr.mxu0 %v410
    %4410 = vmatpush1.msra.mxu0 %v409
    %4411 = vmatprep.subr.mxu0 %v414
    %4412 = vmatpush1.msra.mxu0 %v413
    %4413 = vmatprep.subr.mxu0 %v418
    %4414 = vmatpush1.msra.mxu0 %v417
    %4415 = vmatprep.subr.mxu0 %v422
    %4416 = vmatpush1.msra.mxu0 %v421
    %4417 = vmatprep.subr.mxu0 %v426
    %4418 = vmatpush1.msra.mxu0 %v425
    %4419 = vmatprep.subr.mxu0 %v430
    %4420 = vmatpush1.msra.mxu0 %v429
    %4421 = vmatprep.subr.mxu0 %v434
    %4422 = vmatpush1.msra.mxu0 %v433
    %4423 = vmatprep.subr.mxu0 %v438
    %4424 = vmatpush1.msra.mxu0 %v437
    %4425 = vmatprep.subr.mxu0 0.0
    %4426 = vmatpush1.msra.mxu0 0.0
    %4427 = vmatprep.subr.mxu0 0.0
    %4428 = vmatpush1.msra.mxu0 0.0
    %4429 = vmatprep.subr.mxu0 0.0
    %4430 = vmatpush1.msra.mxu0 0.0
    %4431 = vmatprep.subr.mxu0 0.0
    %4432 = vmatpush1.msra.mxu0 0.0
    %4433 = vmatprep.subr.mxu0 0.0
    %4434 = vmatpush1.msra.mxu0 0.0
    %4435 = vmatprep.subr.mxu0 0.0
    %4436 = vmatpush1.msra.mxu0 0.0
    %4437 = vmatprep.subr.mxu0 0.0
    %4438 = vmatpush1.msra.mxu0 0.0
    %4439 = vmatprep.subr.mxu0 0.0
    %4440 = vmatpush1.msra.mxu0 0.0
    %4441 = vmatprep.subr.mxu0 0.0
    %4442 = vmatpush1.msra.mxu0 0.0
    %4443 = vmatprep.subr.mxu0 0.0
    %4444 = vmatpush1.msra.mxu0 0.0
    %4445 = vmatprep.subr.mxu0 0.0
    %4446 = vmatpush1.msra.mxu0 0.0
    %4447 = vmatprep.subr.mxu0 0.0
    %4448 = vmatpush1.msra.mxu0 0.0
    %4449 = vmatprep.subr.mxu0 0.0
    %4450 = vmatpush1.msra.mxu0 0.0
    %4451 = vmatprep.subr.mxu0 0.0
    %4452 = vmatpush1.msra.mxu0 0.0
    %4453 = vmatprep.subr.mxu0 0.0
    %4454 = vmatpush1.msra.mxu0 0.0
    %4455 = vmatprep.subr.mxu0 0.0
    %4456 = vmatpush1.msra.mxu0 0.0
    %4457 = vmatprep.mubr.f32.mxu0 0.0
    %4458 = vmatmul.mubr.f32.gmra.mrb[0].mxu0 %v4320
    %v4459 = vpop.f32.mrb[0].mxu0
    %v4460 = vadd.f32 %v4315, %v4459
    %v4461 = vpop.f32.mrb[0].mxu0
    %v4462 = vadd.f32 %v4317, %v4461
    %4463 = vdwg.mxu0
    %v4464 = vadd.f32 %v4389, %v1147
    %v4465 = vadd.f32 %v4391, %v1151
    %v4466 = vadd.f32 %v4460, %v1155
    %v4467 = vadd.f32 %v4462, %v1159
    %v4468 = vxor.u32 %v4464, 2147483648
    %v4469 = vxor.u32 %v4465, 2147483648
    %v4470 = vxor.u32 %v4466, 2147483648
    %v4471 = vmul.f32 %v4468, 1.442695
    %v4472 = vpow.pop %v4471
    %v4473 = vmul.f32 %v4469, 1.442695
    %v4474 = vpow.pop %v4473
    %v4475 = vmul.f32 %v4470, 1.442695
    %v4476 = vpow.pop %v4475
    %v4477 = vadd.f32 %v4472, 1.0
    %v4478 = vadd.f32 %v4474, 1.0
    %v4479 = vadd.f32 %v4476, 1.0
    %v4480 = vrcp.pop %v4477
    %v4481 = vmul.f32 1.0, %v4480
    %v4482 = vrcp.pop %v4478
    %v4483 = vmul.f32 1.0, %v4482
    %v4484 = vrcp.pop %v4479
    %v4485 = vmul.f32 1.0, %v4484
    %v4486 = vtanh.pop %v4467
    %v4487 = vmul.f32 %v4483, %v4174
    %v4488 = vmul.f32 %v4481, %v4486
    %v4489 = vadd.f32 %v4487, %v4488
    %v4490 = vtanh.pop %v4489
    %v4491 = vmul.f32 %v4485, %v4490
    %v4492 = vld [vmem:[#allocation10] sm:$0xff]
    %v4493 = vld [vmem:[#allocation10 + $0x8] sm:$0xff]
    %v4494 = vld [vmem:[#allocation10 + $0x10] sm:$0xff]
    %v4495 = vld [vmem:[#allocation10 + $0x18] sm:$0xff]
    %v4496 = vld [vmem:[#allocation10 + $0x20] sm:$0xff]
    %v4497 = vld [vmem:[#allocation10 + $0x28] sm:$0xff]
    %v4498 = vld [vmem:[#allocation10 + $0x30] sm:$0xff]
    %v4499 = vld [vmem:[#allocation10 + $0x38] sm:$0xff]
    %v4500 = vld [vmem:[#allocation10 + $0x40] sm:$0xff]
    %v4501 = vld [vmem:[#allocation10 + $0x48] sm:$0xff]
    %v4502 = vld [vmem:[#allocation10 + $0x50] sm:$0xff]
    %v4503 = vld [vmem:[#allocation10 + $0x58] sm:$0xff]
    %v4504 = vld [vmem:[#allocation10 + $0x60] sm:$0xff]
    %v4505 = vld [vmem:[#allocation10 + $0x68] sm:$0xff]
    %v4506 = vld [vmem:[#allocation10 + $0x70] sm:$0xff]
    %v4507 = vld [vmem:[#allocation10 + $0x78] sm:$0xff]
    %v4508 = vld [vmem:[%s7] sm:$0x1]
    %v4510 = vlaneseq
    %v4511 = vshrl.u32 %v4510, 7
    %v4512 = vsub.s32 0, %v4511
    %v4513 = vrot.slane %v4508, %v4512
    %4515 = vmatprep.subr.mxu0 0.0
    %4516 = vmatpush1.msra.mxu0 %v4492
    %4517 = vmatprep.subr.mxu0 0.0
    %4518 = vmatpush1.msra.mxu0 %v4493
    %4519 = vmatprep.subr.mxu0 0.0
    %4520 = vmatpush1.msra.mxu0 %v4494
    %4521 = vmatprep.subr.mxu0 0.0
    %4522 = vmatpush1.msra.mxu0 %v4495
    %4523 = vmatprep.subr.mxu0 0.0
    %4524 = vmatpush1.msra.mxu0 %v4496
    %4525 = vmatprep.subr.mxu0 0.0
    %4526 = vmatpush1.msra.mxu0 %v4497
    %4527 = vmatprep.subr.mxu0 0.0
    %4528 = vmatpush1.msra.mxu0 %v4498
    %4529 = vmatprep.subr.mxu0 0.0
    %4530 = vmatpush1.msra.mxu0 %v4499
    %4531 = vmatprep.subr.mxu0 0.0
    %4532 = vmatpush1.msra.mxu0 %v4500
    %4533 = vmatprep.subr.mxu0 0.0
    %4534 = vmatpush1.msra.mxu0 %v4501
    %4535 = vmatprep.subr.mxu0 0.0
    %4536 = vmatpush1.msra.mxu0 %v4502
    %4537 = vmatprep.subr.mxu0 0.0
    %4538 = vmatpush1.msra.mxu0 %v4503
    %4539 = vmatprep.subr.mxu0 0.0
    %4540 = vmatpush1.msra.mxu0 %v4504
    %4541 = vmatprep.subr.mxu0 0.0
    %4542 = vmatpush1.msra.mxu0 %v4505
    %4543 = vmatprep.subr.mxu0 0.0
    %4544 = vmatpush1.msra.mxu0 %v4506
    %4545 = vmatprep.subr.mxu0 0.0
    %4546 = vmatpush1.msra.mxu0 %v4507
    %4547 = vmatprep.subr.mxu0 0.0
    %4548 = vmatpush1.msra.mxu0 0.0
    %4549 = vmatprep.subr.mxu0 0.0
    %4550 = vmatpush1.msra.mxu0 0.0
    %4551 = vmatprep.subr.mxu0 0.0
    %4552 = vmatpush1.msra.mxu0 0.0
    %4553 = vmatprep.subr.mxu0 0.0
    %4554 = vmatpush1.msra.mxu0 0.0
    %4555 = vmatprep.subr.mxu0 0.0
    %4556 = vmatpush1.msra.mxu0 0.0
    %4557 = vmatprep.subr.mxu0 0.0
    %4558 = vmatpush1.msra.mxu0 0.0
    %4559 = vmatprep.subr.mxu0 0.0
    %4560 = vmatpush1.msra.mxu0 0.0
    %4561 = vmatprep.subr.mxu0 0.0
    %4562 = vmatpush1.msra.mxu0 0.0
    %4563 = vmatprep.subr.mxu0 0.0
    %4564 = vmatpush1.msra.mxu0 0.0
    %4565 = vmatprep.subr.mxu0 0.0
    %4566 = vmatpush1.msra.mxu0 0.0
    %4567 = vmatprep.subr.mxu0 0.0
    %4568 = vmatpush1.msra.mxu0 0.0
    %4569 = vmatprep.subr.mxu0 0.0
    %4570 = vmatpush1.msra.mxu0 0.0
    %4571 = vmatprep.subr.mxu0 0.0
    %4572 = vmatpush1.msra.mxu0 0.0
    %4573 = vmatprep.subr.mxu0 0.0
    %4574 = vmatpush1.msra.mxu0 0.0
    %4575 = vmatprep.subr.mxu0 0.0
    %4576 = vmatpush1.msra.mxu0 0.0
    %4577 = vmatprep.subr.mxu0 0.0
    %4578 = vmatpush1.msra.mxu0 0.0
    %4579 = vmatprep.mubr.f32.mxu0 0.0
    %4580 = vmatmul.mubr.f32.gmra.mrb[0].mxu0 %v4491
    %v4581 = vpop.f32.mrb[0].mxu0
    %v4582 = vadd.f32 %v4513, %v4581
    %v4583 = vpop.f32.mrb[0].mxu0
    %4584 = vdwg.mxu0
    %v4585 = vmax.f32 %v4582, 0.0
    %v4586 = vld [vmem:[#allocation11] sm:$0xff]
    %v4587 = vld [vmem:[#allocation11 + $0x8] sm:$0xff]
    %v4588 = vld [vmem:[#allocation11 + $0x10] sm:$0xff]
    %v4589 = vld [vmem:[#allocation11 + $0x18] sm:$0xff]
    %v4590 = vld [vmem:[#allocation11 + $0x20] sm:$0xff]
    %v4591 = vld [vmem:[#allocation11 + $0x28] sm:$0xff]
    %v4592 = vld [vmem:[#allocation11 + $0x30] sm:$0xff]
    %v4593 = vld [vmem:[#allocation11 + $0x38] sm:$0xff]
    %v4594 = vld [vmem:[#allocation11 + $0x40] sm:$0xff]
    %v4595 = vld [vmem:[#allocation11 + $0x48] sm:$0xff]
    %v4596 = vld [vmem:[#allocation11 + $0x50] sm:$0xff]
    %v4597 = vld [vmem:[#allocation11 + $0x58] sm:$0xff]
    %v4598 = vld [vmem:[#allocation11 + $0x60] sm:$0xff]
    %v4599 = vld [vmem:[#allocation11 + $0x68] sm:$0xff]
    %v4600 = vld [vmem:[#allocation11 + $0x70] sm:$0xff]
    %v4601 = vld [vmem:[#allocation11 + $0x78] sm:$0xff]
    %v4602 = vld [vmem:[%s9] sm:$0x1]
    %v4604 = vlaneseq
    %v4605 = vshrl.u32 %v4604, 7
    %v4606 = vsub.s32 0, %v4605
    %v4607 = vrot.slane %v4602, %v4606
    %4609 = vmatprep.subr.mxu0 0.0
    %4610 = vmatpush1.msra.mxu0 %v4586
    %4611 = vmatprep.subr.mxu0 0.0
    %4612 = vmatpush1.msra.mxu0 %v4587
    %4613 = vmatprep.subr.mxu0 0.0
    %4614 = vmatpush1.msra.mxu0 %v4588
    %4615 = vmatprep.subr.mxu0 0.0
    %4616 = vmatpush1.msra.mxu0 %v4589
    %4617 = vmatprep.subr.mxu0 0.0
    %4618 = vmatpush1.msra.mxu0 %v4590
    %4619 = vmatprep.subr.mxu0 0.0
    %4620 = vmatpush1.msra.mxu0 %v4591
    %4621 = vmatprep.subr.mxu0 0.0
    %4622 = vmatpush1.msra.mxu0 %v4592
    %4623 = vmatprep.subr.mxu0 0.0
    %4624 = vmatpush1.msra.mxu0 %v4593
    %4625 = vmatprep.subr.mxu0 0.0
    %4626 = vmatpush1.msra.mxu0 %v4594
    %4627 = vmatprep.subr.mxu0 0.0
    %4628 = vmatpush1.msra.mxu0 %v4595
    %4629 = vmatprep.subr.mxu0 0.0
    %4630 = vmatpush1.msra.mxu0 %v4596
    %4631 = vmatprep.subr.mxu0 0.0
    %4632 = vmatpush1.msra.mxu0 %v4597
    %4633 = vmatprep.subr.mxu0 0.0
    %4634 = vmatpush1.msra.mxu0 %v4598
    %4635 = vmatprep.subr.mxu0 0.0
    %4636 = vmatpush1.msra.mxu0 %v4599
    %4637 = vmatprep.subr.mxu0 0.0
    %4638 = vmatpush1.msra.mxu0 %v4600
    %4639 = vmatprep.subr.mxu0 0.0
    %4640 = vmatpush1.msra.mxu0 %v4601
    %4641 = vmatprep.subr.mxu0 0.0
    %4642 = vmatpush1.msra.mxu0 0.0
    %4643 = vmatprep.subr.mxu0 0.0
    %4644 = vmatpush1.msra.mxu0 0.0
    %4645 = vmatprep.subr.mxu0 0.0
    %4646 = vmatpush1.msra.mxu0 0.0
    %4647 = vmatprep.subr.mxu0 0.0
    %4648 = vmatpush1.msra.mxu0 0.0
    %4649 = vmatprep.subr.mxu0 0.0
    %4650 = vmatpush1.msra.mxu0 0.0
    %4651 = vmatprep.subr.mxu0 0.0
    %4652 = vmatpush1.msra.mxu0 0.0
    %4653 = vmatprep.subr.mxu0 0.0
    %4654 = vmatpush1.msra.mxu0 0.0
    %4655 = vmatprep.subr.mxu0 0.0
    %4656 = vmatpush1.msra.mxu0 0.0
    %4657 = vmatprep.subr.mxu0 0.0
    %4658 = vmatpush1.msra.mxu0 0.0
    %4659 = vmatprep.subr.mxu0 0.0
    %4660 = vmatpush1.msra.mxu0 0.0
    %4661 = vmatprep.subr.mxu0 0.0
    %4662 = vmatpush1.msra.mxu0 0.0
    %4663 = vmatprep.subr.mxu0 0.0
    %4664 = vmatpush1.msra.mxu0 0.0
    %4665 = vmatprep.subr.mxu0 0.0
    %4666 = vmatpush1.msra.mxu0 0.0
    %4667 = vmatprep.subr.mxu0 0.0
    %4668 = vmatpush1.msra.mxu0 0.0
    %4669 = vmatprep.subr.mxu0 0.0
    %4670 = vmatpush1.msra.mxu0 0.0
    %4671 = vmatprep.subr.mxu0 0.0
    %4672 = vmatpush1.msra.mxu0 0.0
    %4673 = vmatprep.mubr.f32.mxu0 0.0
    %4674 = vmatmul.mubr.f32.gmra.mrb[0].mxu0 %v4585
    %v4675 = vpop.f32.mrb[0].mxu0
    %v4676 = vadd.f32 %v4607, %v4675
    %v4677 = vpop.f32.mrb[0].mxu0
    %4678 = vdwg.mxu0
    %4679 = vst [vmem:[#allocation13] sm:$0x3] %v4676
    // Predicated region
    $region66: #{lstm_model_forward.1} parent=1 // pred_check
      _
    $region67: #{lstm_model_forward.1} parent=1 // pred_check_branch
      %4681 = sbr.rel (0) target = $region69
    $region68: #{lstm_model_forward.1} parent=1 // pred_region
      %s4683 = ssub.s32 32, 32
      %4684 = vsyncadd [#allocation4], %s4683
      %s4686 = sshll.u32 [#allocation13], 4
      %s4687 = int_to_ptr.vmem [resolvable:$true] %s4686
      %4689 = dma.vmem_to_hbm [thread:$0]  %s4687, 32, %s10, [#allocation4]
    $region69: #{lstm_model_forward.1} parent=1 // pred_fallthru
      _
    // Predicated region
    $region70: #{lstm_model_forward.1} parent=1 // pred_check
      _
    $region71: #{lstm_model_forward.1} parent=1 // pred_check_branch
      %4691 = sbr.rel (0) target = $region73
    $region72: #{lstm_model_forward.1} parent=1 // pred_region
      %4692 = dma.done [#allocation4], 32
    $region73: #{lstm_model_forward.1} parent=1 // pred_fallthru
      _
    %4693 = vsyncpa [#allocation3], 1
    %4694 = vsyncpa [#allocation6], 1
    %4695 = vsyncpa [#allocation9], 1
    %4696 = vsyncpa [#allocation12], 1
    %4697 = vsyncpa [#allocation4], 1

</llo_original>
